<compile_context>
chip_gen: v6e
topology: v6e:2x2x1
jax: 0.10.0
libtpu: 0.0.40
codegen_flags: <defaults>
</compile_context>

<pallas_src>
import functools

import jax
import jax.numpy as jnp
from jax import lax
from jax.experimental import pallas as pl
from jax.experimental.pallas import tpu as pltpu

_LANE = 128      # lane width (last dim)
_SUBLANE = 8     # sublane width (second-to-last dim)


def _round_up(n, m):
    return ((n + m - 1) // m) * m


def _silu(x):
    return x * jax.nn.sigmoid(x)


def _unroll_kernel(x0_ref, us_ref,
                   w1x_ref, w1u_ref, b1_ref,
                   w2_ref, b2_ref,
                   w3_ref, b3_ref,
                   out_ref,
                   *, horizon, compute_dtype):
    """One grid step == one batch chunk; the full T-step rollout runs inside."""
    bb, _ = x0_ref.shape
    h_p = w2_ref.shape[0]
    d_obs_p = w3_ref.shape[1]

    # Hoist weight loads and bias broadcasts out of the time loop (grid-invariant).
    w1x = w1x_ref[...].astype(compute_dtype)
    w1u = w1u_ref[...].astype(compute_dtype)
    w2 = w2_ref[...].astype(compute_dtype)
    w3 = w3_ref[...].astype(compute_dtype)
    b1 = jnp.broadcast_to(b1_ref[...], (bb, h_p))
    b2 = jnp.broadcast_to(b2_ref[...], (bb, h_p))
    b3 = jnp.broadcast_to(b3_ref[...], (bb, d_obs_p))

    def step(t, xt):
        ut = us_ref[t].astype(compute_dtype)                      # (bb, D_act_p)
        # Split-weight matmul realizes concat(x_t, u_t) @ W1 without the concat.
        h1 = (jnp.dot(xt.astype(compute_dtype), w1x,
                      preferred_element_type=jnp.float32)
              + jnp.dot(ut, w1u, preferred_element_type=jnp.float32)
              + b1)
        h1 = _silu(h1)
        h2 = _silu(jnp.dot(h1.astype(compute_dtype), w2,
                           preferred_element_type=jnp.float32) + b2)
        dx = jnp.dot(h2.astype(compute_dtype), w3,
                     preferred_element_type=jnp.float32) + b3
        xtp1 = xt + dx                                            # f32 residual (abs_pos=False)
        out_ref[t] = xtp1
        return xtp1                                               # carry x_t in vregs

    lax.fori_loop(0, horizon, step, x0_ref[...], unroll=True)


def diffusion_dx_unroll(x0, us, params, *, compute_dtype=jnp.float32, batch_block=256):
    """x0: (B, D_obs) f32; us: (T, B, D_act) f32 -> (T, B, D_obs) f32."""
    T, B, D_act = us.shape
    _, D_obs = x0.shape
    H = params["w2"].shape[0]

    # Lane-dense padding: features -> multiples of 128, batch -> multiple of 8.
    d_obs_p = _round_up(D_obs, _LANE)
    d_act_p = _round_up(D_act, _LANE)
    h_p = _round_up(H, _LANE)
    b_p = _round_up(B, _SUBLANE)
    if b_p > batch_block:
        b_p = _round_up(B, batch_block)
        bb = batch_block
    else:
        bb = b_p
    nb = b_p // bb   # number of independent batch chunks ("parallel" grid axis)

    f32 = jnp.float32
    pad2 = lambda a, r, c: jnp.pad(a.astype(f32), ((0, r - a.shape[0]), (0, c - a.shape[1])))

    x0_p = pad2(x0, b_p, d_obs_p)
    us_p = jnp.pad(us.astype(f32), ((0, 0), (0, b_p - B), (0, d_act_p - D_act)))
    w1x = pad2(params["w1x"], d_obs_p, h_p)
    w1u = pad2(params["w1u"], d_act_p, h_p)
    b1 = pad2(params["b1"], 1, h_p)
    w2 = pad2(params["w2"], h_p, h_p)
    b2 = pad2(params["b2"], 1, h_p)
    w3 = pad2(params["w3"], h_p, d_obs_p)
    b3 = pad2(params["b3"], 1, d_obs_p)

    const = lambda shape: pl.BlockSpec(shape, lambda b: tuple(0 for _ in shape))

    kernel = functools.partial(_unroll_kernel, horizon=T, compute_dtype=compute_dtype)

    out_p = pl.pallas_call(
        kernel,
        out_shape=jax.ShapeDtypeStruct((T, b_p, d_obs_p), jnp.float32),
        grid_spec=pltpu.PrefetchScalarGridSpec(
            num_scalar_prefetch=0,
            grid=(nb,),
            in_specs=[
                pl.BlockSpec((bb, d_obs_p), lambda b: (b, 0)),        # x0 chunk
                pl.BlockSpec((T, bb, d_act_p), lambda b: (0, b, 0)),  # all T action steps
                const((d_obs_p, h_p)),                                # w1x
                const((d_act_p, h_p)),                                # w1u
                const((1, h_p)),                                      # b1
                const((h_p, h_p)),                                    # w2
                const((1, h_p)),                                      # b2
                const((h_p, d_obs_p)),                                # w3
                const((1, d_obs_p)),                                  # b3
            ],
            out_specs=pl.BlockSpec((T, bb, d_obs_p), lambda b: (0, b, 0)),
        ),
        compiler_params=pltpu.CompilerParams(
            # Batch chunks are independent -> shard across TensorCores on v7x.
            dimension_semantics=("parallel",),
        ),
    )(x0_p, us_p, w1x, w1u, b1, w2, b2, w3, b3)

    return out_p[:, :B, :D_obs]


def diffusion_dx_unroll_ref(x0, us, params):
    """Pure-JAX reference mirroring the PyTorch unroll loop."""
    def step(xt, ut):
        h1 = _silu(xt @ params["w1x"] + ut @ params["w1u"] + params["b1"])
        h2 = _silu(h1 @ params["w2"] + params["b2"])
        dx = h2 @ params["w3"] + params["b3"]
        xtp1 = xt + dx
        return xtp1, xtp1

    _, pred_xs = jax.lax.scan(step, x0, us)
    return pred_xs


def make_params(key, obs_dim, action_dim, hidden):
    """Deterministic synthetic init (cond_dim = obs_dim + action_dim, as in __init__)."""
    k = jax.random.split(key, 6)
    s = lambda fan_in: 1.0 / jnp.sqrt(jnp.float32(fan_in))
    cond_dim = obs_dim + action_dim
    w1 = jax.random.normal(k[0], (cond_dim, hidden), jnp.float32) * s(cond_dim)
    return {
        "w1x": w1[:obs_dim],                                                     # (D_obs, H)
        "w1u": w1[obs_dim:],                                                     # (D_act, H)
        "b1": jax.random.normal(k[1], (1, hidden), jnp.float32) * 0.01,
        "w2": jax.random.normal(k[2], (hidden, hidden), jnp.float32) * s(hidden),
        "b2": jax.random.normal(k[3], (1, hidden), jnp.float32) * 0.01,
        "w3": jax.random.normal(k[4], (hidden, obs_dim), jnp.float32) * s(hidden),
        "b3": jax.random.normal(k[5], (1, obs_dim), jnp.float32) * 0.01,
    }


if __name__ == "__main__":
    B, obs_dim, action_dim, horizon, hidden = 2, 8, 4, 8, 32

    key = jax.random.PRNGKey(0)
    kx, ku, kp = jax.random.split(key, 3)
    x0 = jax.random.normal(kx, (B, obs_dim), jnp.float32)
    us = jax.random.normal(ku, (horizon, B, action_dim), jnp.float32)
    params = make_params(kp, obs_dim, action_dim, hidden)

    pred_xs = diffusion_dx_unroll(x0, us, params)
    pred_xs = jax.block_until_ready(pred_xs)

    ref = diffusion_dx_unroll_ref(x0, us, params)
    assert pred_xs.shape == (horizon, B, obs_dim)
    assert jnp.allclose(pred_xs, ref, atol=1e-4, rtol=1e-4), "mismatch vs reference"

    print("KERNEL_OK")
</pallas_src>

<mosaic_0001>
module attributes {stable_mosaic.version = 11 : i64} {
  func.func @_unroll_kernel(%arg0: i32, %arg1: memref<8x128xf32, #tpu.memory_space<vmem>>, %arg2: memref<8x8x128xf32, #tpu.memory_space<vmem>>, %arg3: memref<128x128xf32, #tpu.memory_space<vmem>>, %arg4: memref<128x128xf32, #tpu.memory_space<vmem>>, %arg5: memref<1x128xf32, #tpu.memory_space<vmem>>, %arg6: memref<128x128xf32, #tpu.memory_space<vmem>>, %arg7: memref<1x128xf32, #tpu.memory_space<vmem>>, %arg8: memref<128x128xf32, #tpu.memory_space<vmem>>, %arg9: memref<1x128xf32, #tpu.memory_space<vmem>>, %arg10: memref<8x8x128xf32, #tpu.memory_space<vmem>>) attributes {dimension_semantics = [#tpu.dimension_semantics<parallel>], iteration_bounds = array<i64: 1>, scalar_prefetch = 0 : i64, scratch_operands = 0 : i64, tpu.core_type = #tpu.core_type<tc>, window_params = [{transform_indices = @transform_0, window_bounds = array<i64: 8, 128>}, {transform_indices = @transform_1, window_bounds = array<i64: 8, 8, 128>}, {pipeline_mode = #tpu.pipeline_mode<synchronous>, transform_indices = @transform_2, window_bounds = array<i64: 128, 128>}, {pipeline_mode = #tpu.pipeline_mode<synchronous>, transform_indices = @transform_3, window_bounds = array<i64: 128, 128>}, {pipeline_mode = #tpu.pipeline_mode<synchronous>, transform_indices = @transform_4, window_bounds = array<i64: 1, 128>}, {pipeline_mode = #tpu.pipeline_mode<synchronous>, transform_indices = @transform_5, window_bounds = array<i64: 128, 128>}, {pipeline_mode = #tpu.pipeline_mode<synchronous>, transform_indices = @transform_6, window_bounds = array<i64: 1, 128>}, {pipeline_mode = #tpu.pipeline_mode<synchronous>, transform_indices = @transform_7, window_bounds = array<i64: 128, 128>}, {pipeline_mode = #tpu.pipeline_mode<synchronous>, transform_indices = @transform_8, window_bounds = array<i64: 1, 128>}, {transform_indices = @transform_9, window_bounds = array<i64: 8, 8, 128>}]} {
    %c0 = arith.constant 0 : index
    %c0_0 = arith.constant 0 : index
    %0 = vector.load %arg3[%c0, %c0_0] : memref<128x128xf32, #tpu.memory_space<vmem>>, vector<128x128xf32>
    %c0_1 = arith.constant 0 : index
    %c0_2 = arith.constant 0 : index
    %1 = vector.load %arg4[%c0_1, %c0_2] : memref<128x128xf32, #tpu.memory_space<vmem>>, vector<128x128xf32>
    %c0_3 = arith.constant 0 : index
    %c0_4 = arith.constant 0 : index
    %2 = vector.load %arg6[%c0_3, %c0_4] : memref<128x128xf32, #tpu.memory_space<vmem>>, vector<128x128xf32>
    %c0_5 = arith.constant 0 : index
    %c0_6 = arith.constant 0 : index
    %3 = vector.load %arg8[%c0_5, %c0_6] : memref<128x128xf32, #tpu.memory_space<vmem>>, vector<128x128xf32>
    %c0_7 = arith.constant 0 : index
    %c0_8 = arith.constant 0 : index
    %4 = vector.load %arg5[%c0_7, %c0_8] : memref<1x128xf32, #tpu.memory_space<vmem>>, vector<1x128xf32>
    %5 = vector.shape_cast %4 : vector<1x128xf32> to vector<1x128xf32>
    %6 = vector.broadcast %5 : vector<1x128xf32> to vector<8x128xf32>
    %c0_9 = arith.constant 0 : index
    %c0_10 = arith.constant 0 : index
    %7 = vector.load %arg7[%c0_9, %c0_10] : memref<1x128xf32, #tpu.memory_space<vmem>>, vector<1x128xf32>
    %8 = vector.shape_cast %7 : vector<1x128xf32> to vector<1x128xf32>
    %9 = vector.broadcast %8 : vector<1x128xf32> to vector<8x128xf32>
    %c0_11 = arith.constant 0 : index
    %c0_12 = arith.constant 0 : index
    %10 = vector.load %arg9[%c0_11, %c0_12] : memref<1x128xf32, #tpu.memory_space<vmem>>, vector<1x128xf32>
    %11 = vector.shape_cast %10 : vector<1x128xf32> to vector<1x128xf32>
    %12 = vector.broadcast %11 : vector<1x128xf32> to vector<8x128xf32>
    %c0_13 = arith.constant 0 : index
    %c0_14 = arith.constant 0 : index
    %13 = vector.load %arg1[%c0_13, %c0_14] : memref<8x128xf32, #tpu.memory_space<vmem>>, vector<8x128xf32>
    %c0_i32 = arith.constant 0 : i32
    %14 = arith.index_cast %c0_i32 : i32 to index
    %c0_15 = arith.constant 0 : index
    %c0_16 = arith.constant 0 : index
    %15 = vector.load %arg2[%14, %c0_15, %c0_16] : memref<8x8x128xf32, #tpu.memory_space<vmem>>, vector<1x8x128xf32>
    %16 = vector.shape_cast %15 : vector<1x8x128xf32> to vector<8x128xf32>
    %cst = arith.constant dense<0.000000e+00> : vector<8x128xf32>
    %17 = tpu.matmul %13, %0, %cst {dimension_numbers = #tpu.dot_dimension_numbers<[1], [0], [0], [1], [0, 0, 1, 1], [], []>} : vector<8x128xf32>, vector<128x128xf32>, vector<8x128xf32> -> vector<8x128xf32>
    %cst_17 = arith.constant dense<0.000000e+00> : vector<8x128xf32>
    %18 = tpu.matmul %16, %1, %cst_17 {dimension_numbers = #tpu.dot_dimension_numbers<[1], [0], [0], [1], [0, 0, 1, 1], [], []>} : vector<8x128xf32>, vector<128x128xf32>, vector<8x128xf32> -> vector<8x128xf32>
    %19 = arith.addf %17, %18 : vector<8x128xf32>
    %20 = arith.addf %19, %6 : vector<8x128xf32>
    %21 = arith.negf %20 : vector<8x128xf32>
    %22 = math.exp %21 : vector<8x128xf32>
    %cst_18 = arith.constant 1.000000e+00 : f32
    %23 = vector.broadcast %cst_18 : f32 to vector<8x128xf32>
    %24 = arith.addf %23, %22 : vector<8x128xf32>
    %25 = arith.divf %23, %24 : vector<8x128xf32>
    %26 = arith.mulf %20, %25 : vector<8x128xf32>
    %cst_19 = arith.constant dense<0.000000e+00> : vector<8x128xf32>
    %27 = tpu.matmul %26, %2, %cst_19 {dimension_numbers = #tpu.dot_dimension_numbers<[1], [0], [0], [1], [0, 0, 1, 1], [], []>} : vector<8x128xf32>, vector<128x128xf32>, vector<8x128xf32> -> vector<8x128xf32>
    %28 = arith.addf %27, %9 : vector<8x128xf32>
    %29 = arith.negf %28 : vector<8x128xf32>
    %30 = math.exp %29 : vector<8x128xf32>
    %cst_20 = arith.constant 1.000000e+00 : f32
    %31 = vector.broadcast %cst_20 : f32 to vector<8x128xf32>
    %32 = arith.addf %31, %30 : vector<8x128xf32>
    %33 = arith.divf %31, %32 : vector<8x128xf32>
    %34 = arith.mulf %28, %33 : vector<8x128xf32>
    %cst_21 = arith.constant dense<0.000000e+00> : vector<8x128xf32>
    %35 = tpu.matmul %34, %3, %cst_21 {dimension_numbers = #tpu.dot_dimension_numbers<[1], [0], [0], [1], [0, 0, 1, 1], [], []>} : vector<8x128xf32>, vector<128x128xf32>, vector<8x128xf32> -> vector<8x128xf32>
    %36 = arith.addf %35, %12 : vector<8x128xf32>
    %37 = arith.addf %13, %36 : vector<8x128xf32>
    %38 = arith.index_cast %c0_i32 : i32 to index
    %c0_22 = arith.constant 0 : index
    %c0_23 = arith.constant 0 : index
    %39 = vector.load %arg10[%38, %c0_22, %c0_23] : memref<8x8x128xf32, #tpu.memory_space<vmem>>, vector<1x8x128xf32>
    %40 = vector.shape_cast %39 : vector<1x8x128xf32> to vector<8x128xf32>
    %41 = vector.shape_cast %37 : vector<8x128xf32> to vector<1x8x128xf32>
    tpu.vector_store %arg10[%38, %c0_22, %c0_23], %41 {strides = array<i32>} : memref<8x8x128xf32, #tpu.memory_space<vmem>>, vector<1x8x128xf32>,
    %c1_i32 = arith.constant 1 : i32
    %42 = arith.index_cast %c1_i32 : i32 to index
    %c0_24 = arith.constant 0 : index
    %c0_25 = arith.constant 0 : index
    %43 = vector.load %arg2[%42, %c0_24, %c0_25] : memref<8x8x128xf32, #tpu.memory_space<vmem>>, vector<1x8x128xf32>
    %44 = vector.shape_cast %43 : vector<1x8x128xf32> to vector<8x128xf32>
    %cst_26 = arith.constant dense<0.000000e+00> : vector<8x128xf32>
    %45 = tpu.matmul %37, %0, %cst_26 {dimension_numbers = #tpu.dot_dimension_numbers<[1], [0], [0], [1], [0, 0, 1, 1], [], []>} : vector<8x128xf32>, vector<128x128xf32>, vector<8x128xf32> -> vector<8x128xf32>
    %cst_27 = arith.constant dense<0.000000e+00> : vector<8x128xf32>
    %46 = tpu.matmul %44, %1, %cst_27 {dimension_numbers = #tpu.dot_dimension_numbers<[1], [0], [0], [1], [0, 0, 1, 1], [], []>} : vector<8x128xf32>, vector<128x128xf32>, vector<8x128xf32> -> vector<8x128xf32>
    %47 = arith.addf %45, %46 : vector<8x128xf32>
    %48 = arith.addf %47, %6 : vector<8x128xf32>
    %49 = arith.negf %48 : vector<8x128xf32>
    %50 = math.exp %49 : vector<8x128xf32>
    %cst_28 = arith.constant 1.000000e+00 : f32
    %51 = vector.broadcast %cst_28 : f32 to vector<8x128xf32>
    %52 = arith.addf %51, %50 : vector<8x128xf32>
    %53 = arith.divf %51, %52 : vector<8x128xf32>
    %54 = arith.mulf %48, %53 : vector<8x128xf32>
    %cst_29 = arith.constant dense<0.000000e+00> : vector<8x128xf32>
    %55 = tpu.matmul %54, %2, %cst_29 {dimension_numbers = #tpu.dot_dimension_numbers<[1], [0], [0], [1], [0, 0, 1, 1], [], []>} : vector<8x128xf32>, vector<128x128xf32>, vector<8x128xf32> -> vector<8x128xf32>
    %56 = arith.addf %55, %9 : vector<8x128xf32>
    %57 = arith.negf %56 : vector<8x128xf32>
    %58 = math.exp %57 : vector<8x128xf32>
    %cst_30 = arith.constant 1.000000e+00 : f32
    %59 = vector.broadcast %cst_30 : f32 to vector<8x128xf32>
    %60 = arith.addf %59, %58 : vector<8x128xf32>
    %61 = arith.divf %59, %60 : vector<8x128xf32>
    %62 = arith.mulf %56, %61 : vector<8x128xf32>
    %cst_31 = arith.constant dense<0.000000e+00> : vector<8x128xf32>
    %63 = tpu.matmul %62, %3, %cst_31 {dimension_numbers = #tpu.dot_dimension_numbers<[1], [0], [0], [1], [0, 0, 1, 1], [], []>} : vector<8x128xf32>, vector<128x128xf32>, vector<8x128xf32> -> vector<8x128xf32>
    %64 = arith.addf %63, %12 : vector<8x128xf32>
    %65 = arith.addf %37, %64 : vector<8x128xf32>
    %66 = arith.index_cast %c1_i32 : i32 to index
    %c0_32 = arith.constant 0 : index
    %c0_33 = arith.constant 0 : index
    %67 = vector.load %arg10[%66, %c0_32, %c0_33] : memref<8x8x128xf32, #tpu.memory_space<vmem>>, vector<1x8x128xf32>
    %68 = vector.shape_cast %67 : vector<1x8x128xf32> to vector<8x128xf32>
    %69 = vector.shape_cast %65 : vector<8x128xf32> to vector<1x8x128xf32>
    tpu.vector_store %arg10[%66, %c0_32, %c0_33], %69 {strides = array<i32>} : memref<8x8x128xf32, #tpu.memory_space<vmem>>, vector<1x8x128xf32>,
    %c2_i32 = arith.constant 2 : i32
    %70 = arith.index_cast %c2_i32 : i32 to index
    %c0_34 = arith.constant 0 : index
    %c0_35 = arith.constant 0 : index
    %71 = vector.load %arg2[%70, %c0_34, %c0_35] : memref<8x8x128xf32, #tpu.memory_space<vmem>>, vector<1x8x128xf32>
    %72 = vector.shape_cast %71 : vector<1x8x128xf32> to vector<8x128xf32>
    %cst_36 = arith.constant dense<0.000000e+00> : vector<8x128xf32>
    %73 = tpu.matmul %65, %0, %cst_36 {dimension_numbers = #tpu.dot_dimension_numbers<[1], [0], [0], [1], [0, 0, 1, 1], [], []>} : vector<8x128xf32>, vector<128x128xf32>, vector<8x128xf32> -> vector<8x128xf32>
    %cst_37 = arith.constant dense<0.000000e+00> : vector<8x128xf32>
    %74 = tpu.matmul %72, %1, %cst_37 {dimension_numbers = #tpu.dot_dimension_numbers<[1], [0], [0], [1], [0, 0, 1, 1], [], []>} : vector<8x128xf32>, vector<128x128xf32>, vector<8x128xf32> -> vector<8x128xf32>
    %75 = arith.addf %73, %74 : vector<8x128xf32>
    %76 = arith.addf %75, %6 : vector<8x128xf32>
    %77 = arith.negf %76 : vector<8x128xf32>
    %78 = math.exp %77 : vector<8x128xf32>
    %cst_38 = arith.constant 1.000000e+00 : f32
    %79 = vector.broadcast %cst_38 : f32 to vector<8x128xf32>
    %80 = arith.addf %79, %78 : vector<8x128xf32>
    %81 = arith.divf %79, %80 : vector<8x128xf32>
    %82 = arith.mulf %76, %81 : vector<8x128xf32>
    %cst_39 = arith.constant dense<0.000000e+00> : vector<8x128xf32>
    %83 = tpu.matmul %82, %2, %cst_39 {dimension_numbers = #tpu.dot_dimension_numbers<[1], [0], [0], [1], [0, 0, 1, 1], [], []>} : vector<8x128xf32>, vector<128x128xf32>, vector<8x128xf32> -> vector<8x128xf32>
    %84 = arith.addf %83, %9 : vector<8x128xf32>
    %85 = arith.negf %84 : vector<8x128xf32>
    %86 = math.exp %85 : vector<8x128xf32>
    %cst_40 = arith.constant 1.000000e+00 : f32
    %87 = vector.broadcast %cst_40 : f32 to vector<8x128xf32>
    %88 = arith.addf %87, %86 : vector<8x128xf32>
    %89 = arith.divf %87, %88 : vector<8x128xf32>
    %90 = arith.mulf %84, %89 : vector<8x128xf32>
    %cst_41 = arith.constant dense<0.000000e+00> : vector<8x128xf32>
    %91 = tpu.matmul %90, %3, %cst_41 {dimension_numbers = #tpu.dot_dimension_numbers<[1], [0], [0], [1], [0, 0, 1, 1], [], []>} : vector<8x128xf32>, vector<128x128xf32>, vector<8x128xf32> -> vector<8x128xf32>
    %92 = arith.addf %91, %12 : vector<8x128xf32>
    %93 = arith.addf %65, %92 : vector<8x128xf32>
    %94 = arith.index_cast %c2_i32 : i32 to index
    %c0_42 = arith.constant 0 : index
    %c0_43 = arith.constant 0 : index
    %95 = vector.load %arg10[%94, %c0_42, %c0_43] : memref<8x8x128xf32, #tpu.memory_space<vmem>>, vector<1x8x128xf32>
    %96 = vector.shape_cast %95 : vector<1x8x128xf32> to vector<8x128xf32>
    %97 = vector.shape_cast %93 : vector<8x128xf32> to vector<1x8x128xf32>
    tpu.vector_store %arg10[%94, %c0_42, %c0_43], %97 {strides = array<i32>} : memref<8x8x128xf32, #tpu.memory_space<vmem>>, vector<1x8x128xf32>,
    %c3_i32 = arith.constant 3 : i32
    %98 = arith.index_cast %c3_i32 : i32 to index
    %c0_44 = arith.constant 0 : index
    %c0_45 = arith.constant 0 : index
    %99 = vector.load %arg2[%98, %c0_44, %c0_45] : memref<8x8x128xf32, #tpu.memory_space<vmem>>, vector<1x8x128xf32>
    %100 = vector.shape_cast %99 : vector<1x8x128xf32> to vector<8x128xf32>
    %cst_46 = arith.constant dense<0.000000e+00> : vector<8x128xf32>
    %101 = tpu.matmul %93, %0, %cst_46 {dimension_numbers = #tpu.dot_dimension_numbers<[1], [0], [0], [1], [0, 0, 1, 1], [], []>} : vector<8x128xf32>, vector<128x128xf32>, vector<8x128xf32> -> vector<8x128xf32>
    %cst_47 = arith.constant dense<0.000000e+00> : vector<8x128xf32>
    %102 = tpu.matmul %100, %1, %cst_47 {dimension_numbers = #tpu.dot_dimension_numbers<[1], [0], [0], [1], [0, 0, 1, 1], [], []>} : vector<8x128xf32>, vector<128x128xf32>, vector<8x128xf32> -> vector<8x128xf32>
    %103 = arith.addf %101, %102 : vector<8x128xf32>
    %104 = arith.addf %103, %6 : vector<8x128xf32>
    %105 = arith.negf %104 : vector<8x128xf32>
    %106 = math.exp %105 : vector<8x128xf32>
    %cst_48 = arith.constant 1.000000e+00 : f32
    %107 = vector.broadcast %cst_48 : f32 to vector<8x128xf32>
    %108 = arith.addf %107, %106 : vector<8x128xf32>
    %109 = arith.divf %107, %108 : vector<8x128xf32>
    %110 = arith.mulf %104, %109 : vector<8x128xf32>
    %cst_49 = arith.constant dense<0.000000e+00> : vector<8x128xf32>
    %111 = tpu.matmul %110, %2, %cst_49 {dimension_numbers = #tpu.dot_dimension_numbers<[1], [0], [0], [1], [0, 0, 1, 1], [], []>} : vector<8x128xf32>, vector<128x128xf32>, vector<8x128xf32> -> vector<8x128xf32>
    %112 = arith.addf %111, %9 : vector<8x128xf32>
    %113 = arith.negf %112 : vector<8x128xf32>
    %114 = math.exp %113 : vector<8x128xf32>
    %cst_50 = arith.constant 1.000000e+00 : f32
    %115 = vector.broadcast %cst_50 : f32 to vector<8x128xf32>
    %116 = arith.addf %115, %114 : vector<8x128xf32>
    %117 = arith.divf %115, %116 : vector<8x128xf32>
    %118 = arith.mulf %112, %117 : vector<8x128xf32>
    %cst_51 = arith.constant dense<0.000000e+00> : vector<8x128xf32>
    %119 = tpu.matmul %118, %3, %cst_51 {dimension_numbers = #tpu.dot_dimension_numbers<[1], [0], [0], [1], [0, 0, 1, 1], [], []>} : vector<8x128xf32>, vector<128x128xf32>, vector<8x128xf32> -> vector<8x128xf32>
    %120 = arith.addf %119, %12 : vector<8x128xf32>
    %121 = arith.addf %93, %120 : vector<8x128xf32>
    %122 = arith.index_cast %c3_i32 : i32 to index
    %c0_52 = arith.constant 0 : index
    %c0_53 = arith.constant 0 : index
    %123 = vector.load %arg10[%122, %c0_52, %c0_53] : memref<8x8x128xf32, #tpu.memory_space<vmem>>, vector<1x8x128xf32>
    %124 = vector.shape_cast %123 : vector<1x8x128xf32> to vector<8x128xf32>
    %125 = vector.shape_cast %121 : vector<8x128xf32> to vector<1x8x128xf32>
    tpu.vector_store %arg10[%122, %c0_52, %c0_53], %125 {strides = array<i32>} : memref<8x8x128xf32, #tpu.memory_space<vmem>>, vector<1x8x128xf32>,
    %c4_i32 = arith.constant 4 : i32
    %126 = arith.index_cast %c4_i32 : i32 to index
    %c0_54 = arith.constant 0 : index
    %c0_55 = arith.constant 0 : index
    %127 = vector.load %arg2[%126, %c0_54, %c0_55] : memref<8x8x128xf32, #tpu.memory_space<vmem>>, vector<1x8x128xf32>
    %128 = vector.shape_cast %127 : vector<1x8x128xf32> to vector<8x128xf32>
    %cst_56 = arith.constant dense<0.000000e+00> : vector<8x128xf32>
    %129 = tpu.matmul %121, %0, %cst_56 {dimension_numbers = #tpu.dot_dimension_numbers<[1], [0], [0], [1], [0, 0, 1, 1], [], []>} : vector<8x128xf32>, vector<128x128xf32>, vector<8x128xf32> -> vector<8x128xf32>
    %cst_57 = arith.constant dense<0.000000e+00> : vector<8x128xf32>
    %130 = tpu.matmul %128, %1, %cst_57 {dimension_numbers = #tpu.dot_dimension_numbers<[1], [0], [0], [1], [0, 0, 1, 1], [], []>} : vector<8x128xf32>, vector<128x128xf32>, vector<8x128xf32> -> vector<8x128xf32>
    %131 = arith.addf %129, %130 : vector<8x128xf32>
    %132 = arith.addf %131, %6 : vector<8x128xf32>
    %133 = arith.negf %132 : vector<8x128xf32>
    %134 = math.exp %133 : vector<8x128xf32>
    %cst_58 = arith.constant 1.000000e+00 : f32
    %135 = vector.broadcast %cst_58 : f32 to vector<8x128xf32>
    %136 = arith.addf %135, %134 : vector<8x128xf32>
    %137 = arith.divf %135, %136 : vector<8x128xf32>
    %138 = arith.mulf %132, %137 : vector<8x128xf32>
    %cst_59 = arith.constant dense<0.000000e+00> : vector<8x128xf32>
    %139 = tpu.matmul %138, %2, %cst_59 {dimension_numbers = #tpu.dot_dimension_numbers<[1], [0], [0], [1], [0, 0, 1, 1], [], []>} : vector<8x128xf32>, vector<128x128xf32>, vector<8x128xf32> -> vector<8x128xf32>
    %140 = arith.addf %139, %9 : vector<8x128xf32>
    %141 = arith.negf %140 : vector<8x128xf32>
    %142 = math.exp %141 : vector<8x128xf32>
    %cst_60 = arith.constant 1.000000e+00 : f32
    %143 = vector.broadcast %cst_60 : f32 to vector<8x128xf32>
    %144 = arith.addf %143, %142 : vector<8x128xf32>
    %145 = arith.divf %143, %144 : vector<8x128xf32>
    %146 = arith.mulf %140, %145 : vector<8x128xf32>
    %cst_61 = arith.constant dense<0.000000e+00> : vector<8x128xf32>
    %147 = tpu.matmul %146, %3, %cst_61 {dimension_numbers = #tpu.dot_dimension_numbers<[1], [0], [0], [1], [0, 0, 1, 1], [], []>} : vector<8x128xf32>, vector<128x128xf32>, vector<8x128xf32> -> vector<8x128xf32>
    %148 = arith.addf %147, %12 : vector<8x128xf32>
    %149 = arith.addf %121, %148 : vector<8x128xf32>
    %150 = arith.index_cast %c4_i32 : i32 to index
    %c0_62 = arith.constant 0 : index
    %c0_63 = arith.constant 0 : index
    %151 = vector.load %arg10[%150, %c0_62, %c0_63] : memref<8x8x128xf32, #tpu.memory_space<vmem>>, vector<1x8x128xf32>
    %152 = vector.shape_cast %151 : vector<1x8x128xf32> to vector<8x128xf32>
    %153 = vector.shape_cast %149 : vector<8x128xf32> to vector<1x8x128xf32>
    tpu.vector_store %arg10[%150, %c0_62, %c0_63], %153 {strides = array<i32>} : memref<8x8x128xf32, #tpu.memory_space<vmem>>, vector<1x8x128xf32>,
    %c5_i32 = arith.constant 5 : i32
    %154 = arith.index_cast %c5_i32 : i32 to index
    %c0_64 = arith.constant 0 : index
    %c0_65 = arith.constant 0 : index
    %155 = vector.load %arg2[%154, %c0_64, %c0_65] : memref<8x8x128xf32, #tpu.memory_space<vmem>>, vector<1x8x128xf32>
    %156 = vector.shape_cast %155 : vector<1x8x128xf32> to vector<8x128xf32>
    %cst_66 = arith.constant dense<0.000000e+00> : vector<8x128xf32>
    %157 = tpu.matmul %149, %0, %cst_66 {dimension_numbers = #tpu.dot_dimension_numbers<[1], [0], [0], [1], [0, 0, 1, 1], [], []>} : vector<8x128xf32>, vector<128x128xf32>, vector<8x128xf32> -> vector<8x128xf32>
    %cst_67 = arith.constant dense<0.000000e+00> : vector<8x128xf32>
    %158 = tpu.matmul %156, %1, %cst_67 {dimension_numbers = #tpu.dot_dimension_numbers<[1], [0], [0], [1], [0, 0, 1, 1], [], []>} : vector<8x128xf32>, vector<128x128xf32>, vector<8x128xf32> -> vector<8x128xf32>
    %159 = arith.addf %157, %158 : vector<8x128xf32>
    %160 = arith.addf %159, %6 : vector<8x128xf32>
    %161 = arith.negf %160 : vector<8x128xf32>
    %162 = math.exp %161 : vector<8x128xf32>
    %cst_68 = arith.constant 1.000000e+00 : f32
    %163 = vector.broadcast %cst_68 : f32 to vector<8x128xf32>
    %164 = arith.addf %163, %162 : vector<8x128xf32>
    %165 = arith.divf %163, %164 : vector<8x128xf32>
    %166 = arith.mulf %160, %165 : vector<8x128xf32>
    %cst_69 = arith.constant dense<0.000000e+00> : vector<8x128xf32>
    %167 = tpu.matmul %166, %2, %cst_69 {dimension_numbers = #tpu.dot_dimension_numbers<[1], [0], [0], [1], [0, 0, 1, 1], [], []>} : vector<8x128xf32>, vector<128x128xf32>, vector<8x128xf32> -> vector<8x128xf32>
    %168 = arith.addf %167, %9 : vector<8x128xf32>
    %169 = arith.negf %168 : vector<8x128xf32>
    %170 = math.exp %169 : vector<8x128xf32>
    %cst_70 = arith.constant 1.000000e+00 : f32
    %171 = vector.broadcast %cst_70 : f32 to vector<8x128xf32>
    %172 = arith.addf %171, %170 : vector<8x128xf32>
    %173 = arith.divf %171, %172 : vector<8x128xf32>
    %174 = arith.mulf %168, %173 : vector<8x128xf32>
    %cst_71 = arith.constant dense<0.000000e+00> : vector<8x128xf32>
    %175 = tpu.matmul %174, %3, %cst_71 {dimension_numbers = #tpu.dot_dimension_numbers<[1], [0], [0], [1], [0, 0, 1, 1], [], []>} : vector<8x128xf32>, vector<128x128xf32>, vector<8x128xf32> -> vector<8x128xf32>
    %176 = arith.addf %175, %12 : vector<8x128xf32>
    %177 = arith.addf %149, %176 : vector<8x128xf32>
    %178 = arith.index_cast %c5_i32 : i32 to index
    %c0_72 = arith.constant 0 : index
    %c0_73 = arith.constant 0 : index
    %179 = vector.load %arg10[%178, %c0_72, %c0_73] : memref<8x8x128xf32, #tpu.memory_space<vmem>>, vector<1x8x128xf32>
    %180 = vector.shape_cast %179 : vector<1x8x128xf32> to vector<8x128xf32>
    %181 = vector.shape_cast %177 : vector<8x128xf32> to vector<1x8x128xf32>
    tpu.vector_store %arg10[%178, %c0_72, %c0_73], %181 {strides = array<i32>} : memref<8x8x128xf32, #tpu.memory_space<vmem>>, vector<1x8x128xf32>,
    %c6_i32 = arith.constant 6 : i32
    %182 = arith.index_cast %c6_i32 : i32 to index
    %c0_74 = arith.constant 0 : index
    %c0_75 = arith.constant 0 : index
    %183 = vector.load %arg2[%182, %c0_74, %c0_75] : memref<8x8x128xf32, #tpu.memory_space<vmem>>, vector<1x8x128xf32>
    %184 = vector.shape_cast %183 : vector<1x8x128xf32> to vector<8x128xf32>
    %cst_76 = arith.constant dense<0.000000e+00> : vector<8x128xf32>
    %185 = tpu.matmul %177, %0, %cst_76 {dimension_numbers = #tpu.dot_dimension_numbers<[1], [0], [0], [1], [0, 0, 1, 1], [], []>} : vector<8x128xf32>, vector<128x128xf32>, vector<8x128xf32> -> vector<8x128xf32>
    %cst_77 = arith.constant dense<0.000000e+00> : vector<8x128xf32>
    %186 = tpu.matmul %184, %1, %cst_77 {dimension_numbers = #tpu.dot_dimension_numbers<[1], [0], [0], [1], [0, 0, 1, 1], [], []>} : vector<8x128xf32>, vector<128x128xf32>, vector<8x128xf32> -> vector<8x128xf32>
    %187 = arith.addf %185, %186 : vector<8x128xf32>
    %188 = arith.addf %187, %6 : vector<8x128xf32>
    %189 = arith.negf %188 : vector<8x128xf32>
    %190 = math.exp %189 : vector<8x128xf32>
    %cst_78 = arith.constant 1.000000e+00 : f32
    %191 = vector.broadcast %cst_78 : f32 to vector<8x128xf32>
    %192 = arith.addf %191, %190 : vector<8x128xf32>
    %193 = arith.divf %191, %192 : vector<8x128xf32>
    %194 = arith.mulf %188, %193 : vector<8x128xf32>
    %cst_79 = arith.constant dense<0.000000e+00> : vector<8x128xf32>
    %195 = tpu.matmul %194, %2, %cst_79 {dimension_numbers = #tpu.dot_dimension_numbers<[1], [0], [0], [1], [0, 0, 1, 1], [], []>} : vector<8x128xf32>, vector<128x128xf32>, vector<8x128xf32> -> vector<8x128xf32>
    %196 = arith.addf %195, %9 : vector<8x128xf32>
    %197 = arith.negf %196 : vector<8x128xf32>
    %198 = math.exp %197 : vector<8x128xf32>
    %cst_80 = arith.constant 1.000000e+00 : f32
    %199 = vector.broadcast %cst_80 : f32 to vector<8x128xf32>
    %200 = arith.addf %199, %198 : vector<8x128xf32>
    %201 = arith.divf %199, %200 : vector<8x128xf32>
    %202 = arith.mulf %196, %201 : vector<8x128xf32>
    %cst_81 = arith.constant dense<0.000000e+00> : vector<8x128xf32>
    %203 = tpu.matmul %202, %3, %cst_81 {dimension_numbers = #tpu.dot_dimension_numbers<[1], [0], [0], [1], [0, 0, 1, 1], [], []>} : vector<8x128xf32>, vector<128x128xf32>, vector<8x128xf32> -> vector<8x128xf32>
    %204 = arith.addf %203, %12 : vector<8x128xf32>
    %205 = arith.addf %177, %204 : vector<8x128xf32>
    %206 = arith.index_cast %c6_i32 : i32 to index
    %c0_82 = arith.constant 0 : index
    %c0_83 = arith.constant 0 : index
    %207 = vector.load %arg10[%206, %c0_82, %c0_83] : memref<8x8x128xf32, #tpu.memory_space<vmem>>, vector<1x8x128xf32>
    %208 = vector.shape_cast %207 : vector<1x8x128xf32> to vector<8x128xf32>
    %209 = vector.shape_cast %205 : vector<8x128xf32> to vector<1x8x128xf32>
    tpu.vector_store %arg10[%206, %c0_82, %c0_83], %209 {strides = array<i32>} : memref<8x8x128xf32, #tpu.memory_space<vmem>>, vector<1x8x128xf32>,
    %c7_i32 = arith.constant 7 : i32
    %210 = arith.index_cast %c7_i32 : i32 to index
    %c0_84 = arith.constant 0 : index
    %c0_85 = arith.constant 0 : index
    %211 = vector.load %arg2[%210, %c0_84, %c0_85] : memref<8x8x128xf32, #tpu.memory_space<vmem>>, vector<1x8x128xf32>
    %212 = vector.shape_cast %211 : vector<1x8x128xf32> to vector<8x128xf32>
    %cst_86 = arith.constant dense<0.000000e+00> : vector<8x128xf32>
    %213 = tpu.matmul %205, %0, %cst_86 {dimension_numbers = #tpu.dot_dimension_numbers<[1], [0], [0], [1], [0, 0, 1, 1], [], []>} : vector<8x128xf32>, vector<128x128xf32>, vector<8x128xf32> -> vector<8x128xf32>
    %cst_87 = arith.constant dense<0.000000e+00> : vector<8x128xf32>
    %214 = tpu.matmul %212, %1, %cst_87 {dimension_numbers = #tpu.dot_dimension_numbers<[1], [0], [0], [1], [0, 0, 1, 1], [], []>} : vector<8x128xf32>, vector<128x128xf32>, vector<8x128xf32> -> vector<8x128xf32>
    %215 = arith.addf %213, %214 : vector<8x128xf32>
    %216 = arith.addf %215, %6 : vector<8x128xf32>
    %217 = arith.negf %216 : vector<8x128xf32>
    %218 = math.exp %217 : vector<8x128xf32>
    %cst_88 = arith.constant 1.000000e+00 : f32
    %219 = vector.broadcast %cst_88 : f32 to vector<8x128xf32>
    %220 = arith.addf %219, %218 : vector<8x128xf32>
    %221 = arith.divf %219, %220 : vector<8x128xf32>
    %222 = arith.mulf %216, %221 : vector<8x128xf32>
    %cst_89 = arith.constant dense<0.000000e+00> : vector<8x128xf32>
    %223 = tpu.matmul %222, %2, %cst_89 {dimension_numbers = #tpu.dot_dimension_numbers<[1], [0], [0], [1], [0, 0, 1, 1], [], []>} : vector<8x128xf32>, vector<128x128xf32>, vector<8x128xf32> -> vector<8x128xf32>
    %224 = arith.addf %223, %9 : vector<8x128xf32>
    %225 = arith.negf %224 : vector<8x128xf32>
    %226 = math.exp %225 : vector<8x128xf32>
    %cst_90 = arith.constant 1.000000e+00 : f32
    %227 = vector.broadcast %cst_90 : f32 to vector<8x128xf32>
    %228 = arith.addf %227, %226 : vector<8x128xf32>
    %229 = arith.divf %227, %228 : vector<8x128xf32>
    %230 = arith.mulf %224, %229 : vector<8x128xf32>
    %cst_91 = arith.constant dense<0.000000e+00> : vector<8x128xf32>
    %231 = tpu.matmul %230, %3, %cst_91 {dimension_numbers = #tpu.dot_dimension_numbers<[1], [0], [0], [1], [0, 0, 1, 1], [], []>} : vector<8x128xf32>, vector<128x128xf32>, vector<8x128xf32> -> vector<8x128xf32>
    %232 = arith.addf %231, %12 : vector<8x128xf32>
    %233 = arith.addf %205, %232 : vector<8x128xf32>
    %234 = arith.index_cast %c7_i32 : i32 to index
    %c0_92 = arith.constant 0 : index
    %c0_93 = arith.constant 0 : index
    %235 = vector.load %arg10[%234, %c0_92, %c0_93] : memref<8x8x128xf32, #tpu.memory_space<vmem>>, vector<1x8x128xf32>
    %236 = vector.shape_cast %235 : vector<1x8x128xf32> to vector<8x128xf32>
    %237 = vector.shape_cast %233 : vector<8x128xf32> to vector<1x8x128xf32>
    tpu.vector_store %arg10[%234, %c0_92, %c0_93], %237 {strides = array<i32>} : memref<8x8x128xf32, #tpu.memory_space<vmem>>, vector<1x8x128xf32>,
    %c8_i32 = arith.constant 8 : i32
    return
  }
  func.func @transform_0(%arg0: i32) -> (i32, i32) {
    %c0_i32 = arith.constant 0 : i32
    %c0_i32_0 = arith.constant 0 : i32
    return %arg0, %c0_i32 : i32, i32
  }
  func.func @transform_1(%arg0: i32) -> (i32, i32, i32) {
    %c0_i32 = arith.constant 0 : i32
    %c0_i32_0 = arith.constant 0 : i32
    %c0_i32_1 = arith.constant 0 : i32
    return %c0_i32, %arg0, %c0_i32_0 : i32, i32, i32
  }
  func.func @transform_2(%arg0: i32) -> (i32, i32) {
    %c0_i32 = arith.constant 0 : i32
    %c0_i32_0 = arith.constant 0 : i32
    %c0_i32_1 = arith.constant 0 : i32
    return %c0_i32, %c0_i32_0 : i32, i32
  }
  func.func @transform_3(%arg0: i32) -> (i32, i32) {
    %c0_i32 = arith.constant 0 : i32
    %c0_i32_0 = arith.constant 0 : i32
    %c0_i32_1 = arith.constant 0 : i32
    return %c0_i32, %c0_i32_0 : i32, i32
  }
  func.func @transform_4(%arg0: i32) -> (i32, i32) {
    %c0_i32 = arith.constant 0 : i32
    %c0_i32_0 = arith.constant 0 : i32
    %c0_i32_1 = arith.constant 0 : i32
    return %c0_i32, %c0_i32_0 : i32, i32
  }
  func.func @transform_5(%arg0: i32) -> (i32, i32) {
    %c0_i32 = arith.constant 0 : i32
    %c0_i32_0 = arith.constant 0 : i32
    %c0_i32_1 = arith.constant 0 : i32
    return %c0_i32, %c0_i32_0 : i32, i32
  }
  func.func @transform_6(%arg0: i32) -> (i32, i32) {
    %c0_i32 = arith.constant 0 : i32
    %c0_i32_0 = arith.constant 0 : i32
    %c0_i32_1 = arith.constant 0 : i32
    return %c0_i32, %c0_i32_0 : i32, i32
  }
  func.func @transform_7(%arg0: i32) -> (i32, i32) {
    %c0_i32 = arith.constant 0 : i32
    %c0_i32_0 = arith.constant 0 : i32
    %c0_i32_1 = arith.constant 0 : i32
    return %c0_i32, %c0_i32_0 : i32, i32
  }
  func.func @transform_8(%arg0: i32) -> (i32, i32) {
    %c0_i32 = arith.constant 0 : i32
    %c0_i32_0 = arith.constant 0 : i32
    %c0_i32_1 = arith.constant 0 : i32
    return %c0_i32, %c0_i32_0 : i32, i32
  }
  func.func @transform_9(%arg0: i32) -> (i32, i32, i32) {
    %c0_i32 = arith.constant 0 : i32
    %c0_i32_0 = arith.constant 0 : i32
    %c0_i32_1 = arith.constant 0 : i32
    return %c0_i32, %arg0, %c0_i32_0 : i32, i32, i32
  }
}

</mosaic_0001>

<llo_original>
// kernel: tpu_custom_call.1
$region0: #{tpu_custom_call.1}
  #allocation0 [shape = 'u32[]', space=smem, size = 0x4, offset = 0x4, fixed_abs, tag = 'smem constant byte address 0x4 - core index']
  #allocation1 [shape = 'u32[144,128]{1,0:T(1,128)}', space=vmem, size = 0x12000, scoped, tag = 'internal scratch']
  %s0 = inlined_call_operand.hbm [shape: f32[8,128], index: 0, kind: input, shape index: {}]
  %s1 = inlined_call_operand.hbm [shape: f32[8,8,128], index: 1, kind: input, shape index: {}]
  %s2 = inlined_call_operand.hbm [shape: f32[128,128], index: 2, kind: input, shape index: {}]
  %s3 = inlined_call_operand.hbm [shape: f32[128,128], index: 3, kind: input, shape index: {}]
  %s4 = inlined_call_operand.vmem [shape: f32[1,128], index: 4, kind: input, shape index: {}]
  %s5 = inlined_call_operand.hbm [shape: f32[128,128], index: 5, kind: input, shape index: {}]
  %s6 = inlined_call_operand.vmem [shape: f32[1,128], index: 6, kind: input, shape index: {}]
  %s7 = inlined_call_operand.hbm [shape: f32[128,128], index: 7, kind: input, shape index: {}]
  %s8 = inlined_call_operand.vmem [shape: f32[1,128], index: 8, kind: input, shape index: {}]
  %s9 = inlined_call_operand.hbm [shape: f32[8,8,128], index: 9, kind: output, shape index: {}]
  %s10 = sld [smem:[#allocation0]]
  $region70: #{tpu_custom_call.1} parent=0
    _
  %s12 = ssub.s32 1, %s10
  %s13 = scalar_select 0, %s12, %s10
  $region1: #{tpu_custom_call.1} parent=0
    #allocation2 [shape = 'u8[4096]{0}', space=vmem, size = 0x1000, scoped, tag = 'input window, operand 0, single buffered']
    #allocation3 [shape = 's32[1]{0}', space=sflag, size = 0x4, scoped, tag = 'scoped memory for tpu_custom_call.1']
    #allocation4 [shape = 's32[1]{0}', space=sflag, size = 0x4, scoped, tag = 'scoped memory for tpu_custom_call.1']
    #allocation5 [shape = 'u8[32768]{0}', space=vmem, size = 0x8000, scoped, tag = 'input window, operand 1, single buffered']
    #allocation6 [shape = 's32[1]{0}', space=sflag, size = 0x4, scoped, tag = 'scoped memory for tpu_custom_call.1']
    #allocation7 [shape = 'u8[65536]{0}', space=vmem, size = 0x10000, scoped, tag = 'input window, operand 2, single buffered']
    #allocation8 [shape = 'u8[65536]{0}', space=vmem, size = 0x10000, scoped, tag = 'input window, operand 3, single buffered']
    #allocation9 [shape = 's32[1]{0}', space=sflag, size = 0x4, scoped, tag = 'scoped memory for tpu_custom_call.1']
    #allocation10 [shape = 'u8[65536]{0}', space=vmem, size = 0x10000, scoped, tag = 'input window, operand 5, single buffered']
    #allocation11 [shape = 'u8[65536]{0}', space=vmem, size = 0x10000, scoped, tag = 'input window, operand 7, single buffered']
    #allocation12 [shape = 's32[1]{0}', space=sflag, size = 0x4, scoped, tag = 'scoped memory for tpu_custom_call.1']
    #allocation13 [shape = 'u8[32768]{0}', space=vmem, size = 0x8000, scoped, tag = 'output window, operand 0, single buffered']
    %14 = vsyncpa [#allocation3], 0
    %15 = vsyncpa [#allocation6], 0
    %16 = vsyncpa [#allocation9], 0
    %17 = vsyncpa [#allocation12], 0
    %18 = vsyncpa [#allocation4], 0
    // Predicated region
    $region2: #{tpu_custom_call.1} parent=1 // pred_check
      _
    $region3: #{tpu_custom_call.1} parent=1 // pred_check_branch
      %20 = sbr.rel (0) target = $region5
    $region4: #{tpu_custom_call.1} parent=1 // pred_region
      %s22 = ssub.s32 128, 128
      %23 = vsyncadd [#allocation3], %s22
      %s25 = sshll.u32 [#allocation2], 4
      %s26 = int_to_ptr.vmem [resolvable:$true] %s25
      %28 = dma.hbm_to_vmem [thread:$0]  %s0, 128, %s26, [#allocation3]
    $region5: #{tpu_custom_call.1} parent=1 // pred_fallthru
      _
    // Predicated region
    $region6: #{tpu_custom_call.1} parent=1 // pred_check
      _
    $region7: #{tpu_custom_call.1} parent=1 // pred_check_branch
      %30 = sbr.rel (0) target = $region9
    $region8: #{tpu_custom_call.1} parent=1 // pred_region
      %s32 = ssub.s32 1024, 1024
      %33 = vsyncadd [#allocation6], %s32
      %s34 = sshll.u32 [#allocation5], 4
      %s35 = int_to_ptr.vmem [resolvable:$true] %s34
      %40 = dma.hbm_to_vmem [thread:$0]  %s1, 1024, %s35, [#allocation6], 128, 128, 8
    $region9: #{tpu_custom_call.1} parent=1 // pred_fallthru
      _
    // Predicated region
    $region10: #{tpu_custom_call.1} parent=1 // pred_check
      _
    $region11: #{tpu_custom_call.1} parent=1 // pred_check_branch
      %42 = sbr.rel (0) target = $region13
    $region12: #{tpu_custom_call.1} parent=1 // pred_region
      %s44 = ssub.s32 2048, 2048
      %45 = vsyncadd [#allocation6], %s44
      %s46 = sshll.u32 [#allocation7], 4
      %s47 = int_to_ptr.vmem [resolvable:$true] %s46
      %52 = dma.hbm_to_vmem [thread:$0]  %s2, 2048, %s47, [#allocation6], 128, 128, 8
    $region13: #{tpu_custom_call.1} parent=1 // pred_fallthru
      _
    // Predicated region
    $region14: #{tpu_custom_call.1} parent=1 // pred_check
      _
    $region15: #{tpu_custom_call.1} parent=1 // pred_check_branch
      %54 = sbr.rel (0) target = $region17
    $region16: #{tpu_custom_call.1} parent=1 // pred_region
      %s56 = ssub.s32 2048, 2048
      %57 = vsyncadd [#allocation9], %s56
      %s58 = sshll.u32 [#allocation8], 4
      %s59 = int_to_ptr.vmem [resolvable:$true] %s58
      %64 = dma.hbm_to_vmem [thread:$0]  %s3, 2048, %s59, [#allocation9], 128, 128, 8
    $region17: #{tpu_custom_call.1} parent=1 // pred_fallthru
      _
    // Predicated region
    $region18: #{tpu_custom_call.1} parent=1 // pred_check
      _
    $region19: #{tpu_custom_call.1} parent=1 // pred_check_branch
      %66 = sbr.rel (0) target = $region21
    $region20: #{tpu_custom_call.1} parent=1 // pred_region
      _
    $region21: #{tpu_custom_call.1} parent=1 // pred_fallthru
      _
    // Predicated region
    $region22: #{tpu_custom_call.1} parent=1 // pred_check
      _
    $region23: #{tpu_custom_call.1} parent=1 // pred_check_branch
      %68 = sbr.rel (0) target = $region25
    $region24: #{tpu_custom_call.1} parent=1 // pred_region
      %s70 = ssub.s32 2048, 2048
      %71 = vsyncadd [#allocation9], %s70
      %s72 = sshll.u32 [#allocation10], 4
      %s73 = int_to_ptr.vmem [resolvable:$true] %s72
      %78 = dma.hbm_to_vmem [thread:$0]  %s5, 2048, %s73, [#allocation9], 128, 128, 8
    $region25: #{tpu_custom_call.1} parent=1 // pred_fallthru
      _
    // Predicated region
    $region26: #{tpu_custom_call.1} parent=1 // pred_check
      _
    $region27: #{tpu_custom_call.1} parent=1 // pred_check_branch
      %80 = sbr.rel (0) target = $region29
    $region28: #{tpu_custom_call.1} parent=1 // pred_region
      _
    $region29: #{tpu_custom_call.1} parent=1 // pred_fallthru
      _
    // Predicated region
    $region30: #{tpu_custom_call.1} parent=1 // pred_check
      _
    $region31: #{tpu_custom_call.1} parent=1 // pred_check_branch
      %82 = sbr.rel (0) target = $region33
    $region32: #{tpu_custom_call.1} parent=1 // pred_region
      %s84 = ssub.s32 2048, 2048
      %85 = vsyncadd [#allocation12], %s84
      %s86 = sshll.u32 [#allocation11], 4
      %s87 = int_to_ptr.vmem [resolvable:$true] %s86
      %92 = dma.hbm_to_vmem [thread:$0]  %s7, 2048, %s87, [#allocation12], 128, 128, 8
    $region33: #{tpu_custom_call.1} parent=1 // pred_fallthru
      _
    // Predicated region
    $region34: #{tpu_custom_call.1} parent=1 // pred_check
      _
    $region35: #{tpu_custom_call.1} parent=1 // pred_check_branch
      %94 = sbr.rel (0) target = $region37
    $region36: #{tpu_custom_call.1} parent=1 // pred_region
      _
    $region37: #{tpu_custom_call.1} parent=1 // pred_fallthru
      _
    // Predicated region
    $region38: #{tpu_custom_call.1} parent=1 // pred_check
      _
    $region39: #{tpu_custom_call.1} parent=1 // pred_check_branch
      %96 = sbr.rel (0) target = $region41
    $region40: #{tpu_custom_call.1} parent=1 // pred_region
      %97 = dma.done [#allocation3], 128
    $region41: #{tpu_custom_call.1} parent=1 // pred_fallthru
      _
    // Predicated region
    $region42: #{tpu_custom_call.1} parent=1 // pred_check
      _
    $region43: #{tpu_custom_call.1} parent=1 // pred_check_branch
      %99 = sbr.rel (0) target = $region45
    $region44: #{tpu_custom_call.1} parent=1 // pred_region
      %100 = dma.done [#allocation6], 1024
    $region45: #{tpu_custom_call.1} parent=1 // pred_fallthru
      _
    // Predicated region
    $region46: #{tpu_custom_call.1} parent=1 // pred_check
      _
    $region47: #{tpu_custom_call.1} parent=1 // pred_check_branch
      %102 = sbr.rel (0) target = $region49
    $region48: #{tpu_custom_call.1} parent=1 // pred_region
      %103 = dma.done [#allocation6], 2048
    $region49: #{tpu_custom_call.1} parent=1 // pred_fallthru
      _
    // Predicated region
    $region50: #{tpu_custom_call.1} parent=1 // pred_check
      _
    $region51: #{tpu_custom_call.1} parent=1 // pred_check_branch
      %105 = sbr.rel (0) target = $region53
    $region52: #{tpu_custom_call.1} parent=1 // pred_region
      %106 = dma.done [#allocation9], 2048
    $region53: #{tpu_custom_call.1} parent=1 // pred_fallthru
      _
    // Predicated region
    $region54: #{tpu_custom_call.1} parent=1 // pred_check
      _
    $region55: #{tpu_custom_call.1} parent=1 // pred_check_branch
      %108 = sbr.rel (0) target = $region57
    $region56: #{tpu_custom_call.1} parent=1 // pred_region
      %109 = dma.done [#allocation9], 2048
    $region57: #{tpu_custom_call.1} parent=1 // pred_fallthru
      _
    // Predicated region
    $region58: #{tpu_custom_call.1} parent=1 // pred_check
      _
    $region59: #{tpu_custom_call.1} parent=1 // pred_check_branch
      %111 = sbr.rel (0) target = $region61
    $region60: #{tpu_custom_call.1} parent=1 // pred_region
      %112 = dma.done [#allocation12], 2048
    $region61: #{tpu_custom_call.1} parent=1 // pred_fallthru
      _
    %v113 = vld [vmem:[#allocation7] sm:$0xff]
    %v114 = vld [vmem:[#allocation7 + $0x8] sm:$0xff]
    %v115 = vld [vmem:[#allocation7 + $0x10] sm:$0xff]
    %v116 = vld [vmem:[#allocation7 + $0x18] sm:$0xff]
    %v117 = vld [vmem:[#allocation7 + $0x20] sm:$0xff]
    %v118 = vld [vmem:[#allocation7 + $0x28] sm:$0xff]
    %v119 = vld [vmem:[#allocation7 + $0x30] sm:$0xff]
    %v120 = vld [vmem:[#allocation7 + $0x38] sm:$0xff]
    %v121 = vld [vmem:[#allocation7 + $0x40] sm:$0xff]
    %v122 = vld [vmem:[#allocation7 + $0x48] sm:$0xff]
    %v123 = vld [vmem:[#allocation7 + $0x50] sm:$0xff]
    %v124 = vld [vmem:[#allocation7 + $0x58] sm:$0xff]
    %v125 = vld [vmem:[#allocation7 + $0x60] sm:$0xff]
    %v126 = vld [vmem:[#allocation7 + $0x68] sm:$0xff]
    %v127 = vld [vmem:[#allocation7 + $0x70] sm:$0xff]
    %v128 = vld [vmem:[#allocation7 + $0x78] sm:$0xff]
    %v129 = vld [vmem:[#allocation8] sm:$0xff]
    %v130 = vld [vmem:[#allocation8 + $0x8] sm:$0xff]
    %v131 = vld [vmem:[#allocation8 + $0x10] sm:$0xff]
    %v132 = vld [vmem:[#allocation8 + $0x18] sm:$0xff]
    %v133 = vld [vmem:[#allocation8 + $0x20] sm:$0xff]
    %v134 = vld [vmem:[#allocation8 + $0x28] sm:$0xff]
    %v135 = vld [vmem:[#allocation8 + $0x30] sm:$0xff]
    %v136 = vld [vmem:[#allocation8 + $0x38] sm:$0xff]
    %v137 = vld [vmem:[#allocation8 + $0x40] sm:$0xff]
    %v138 = vld [vmem:[#allocation8 + $0x48] sm:$0xff]
    %v139 = vld [vmem:[#allocation8 + $0x50] sm:$0xff]
    %v140 = vld [vmem:[#allocation8 + $0x58] sm:$0xff]
    %v141 = vld [vmem:[#allocation8 + $0x60] sm:$0xff]
    %v142 = vld [vmem:[#allocation8 + $0x68] sm:$0xff]
    %v143 = vld [vmem:[#allocation8 + $0x70] sm:$0xff]
    %v144 = vld [vmem:[#allocation8 + $0x78] sm:$0xff]
    %v145 = vld [vmem:[#allocation10] sm:$0xff]
    %v146 = vld [vmem:[#allocation10 + $0x8] sm:$0xff]
    %v147 = vld [vmem:[#allocation10 + $0x10] sm:$0xff]
    %v148 = vld [vmem:[#allocation10 + $0x18] sm:$0xff]
    %v149 = vld [vmem:[#allocation10 + $0x20] sm:$0xff]
    %v150 = vld [vmem:[#allocation10 + $0x28] sm:$0xff]
    %v151 = vld [vmem:[#allocation10 + $0x30] sm:$0xff]
    %v152 = vld [vmem:[#allocation10 + $0x38] sm:$0xff]
    %v153 = vld [vmem:[#allocation10 + $0x40] sm:$0xff]
    %v154 = vld [vmem:[#allocation10 + $0x48] sm:$0xff]
    %v155 = vld [vmem:[#allocation10 + $0x50] sm:$0xff]
    %v156 = vld [vmem:[#allocation10 + $0x58] sm:$0xff]
    %v157 = vld [vmem:[#allocation10 + $0x60] sm:$0xff]
    %v158 = vld [vmem:[#allocation10 + $0x68] sm:$0xff]
    %v159 = vld [vmem:[#allocation10 + $0x70] sm:$0xff]
    %v160 = vld [vmem:[#allocation10 + $0x78] sm:$0xff]
    %v161 = vld [vmem:[#allocation11] sm:$0xff]
    %v162 = vld [vmem:[#allocation11 + $0x8] sm:$0xff]
    %v163 = vld [vmem:[#allocation11 + $0x10] sm:$0xff]
    %v164 = vld [vmem:[#allocation11 + $0x18] sm:$0xff]
    %v165 = vld [vmem:[#allocation11 + $0x20] sm:$0xff]
    %v166 = vld [vmem:[#allocation11 + $0x28] sm:$0xff]
    %v167 = vld [vmem:[#allocation11 + $0x30] sm:$0xff]
    %v168 = vld [vmem:[#allocation11 + $0x38] sm:$0xff]
    %v169 = vld [vmem:[#allocation11 + $0x40] sm:$0xff]
    %v170 = vld [vmem:[#allocation11 + $0x48] sm:$0xff]
    %v171 = vld [vmem:[#allocation11 + $0x50] sm:$0xff]
    %v172 = vld [vmem:[#allocation11 + $0x58] sm:$0xff]
    %v173 = vld [vmem:[#allocation11 + $0x60] sm:$0xff]
    %v174 = vld [vmem:[#allocation11 + $0x68] sm:$0xff]
    %v175 = vld [vmem:[#allocation11 + $0x70] sm:$0xff]
    %v176 = vld [vmem:[#allocation11 + $0x78] sm:$0xff]
    %v177 = vld [vmem:[%s4] sm:$0x1]
    %v179 = vlaneseq
    %v180 = vshrl.u32 %v179, 7
    %v181 = vsub.s32 0, %v180
    %v182 = vrot.slane %v177, %v181
    %v184 = vld [vmem:[%s6] sm:$0x1]
    %v186 = vlaneseq
    %v187 = vshrl.u32 %v186, 7
    %v188 = vsub.s32 0, %v187
    %v189 = vrot.slane %v184, %v188
    %v191 = vld [vmem:[%s8] sm:$0x1]
    %v193 = vlaneseq
    %v194 = vshrl.u32 %v193, 7
    %v195 = vsub.s32 0, %v194
    %v196 = vrot.slane %v191, %v195
    %v198 = vld [vmem:[#allocation2] sm:$0xff]
    %v199 = vld [vmem:[#allocation5] sm:$0xff]
    %200 = vmatprep.subr.mxu0 0.0
    %201 = vmatpush1.msra.mxu0 %v144
    %202 = vmatprep.subr.mxu0 0.0
    %203 = vmatpush1.msra.mxu0 %v143
    %204 = vmatprep.subr.mxu0 0.0
    %205 = vmatpush1.msra.mxu0 %v142
    %206 = vmatprep.subr.mxu0 0.0
    %207 = vmatpush1.msra.mxu0 %v141
    %208 = vmatprep.subr.mxu0 0.0
    %209 = vmatpush1.msra.mxu0 %v140
    %210 = vmatprep.subr.mxu0 0.0
    %211 = vmatpush1.msra.mxu0 %v139
    %212 = vmatprep.subr.mxu0 0.0
    %213 = vmatpush1.msra.mxu0 %v138
    %214 = vmatprep.subr.mxu0 0.0
    %215 = vmatpush1.msra.mxu0 %v137
    %216 = vmatprep.subr.mxu0 0.0
    %217 = vmatpush1.msra.mxu0 %v136
    %218 = vmatprep.subr.mxu0 0.0
    %219 = vmatpush1.msra.mxu0 %v135
    %220 = vmatprep.subr.mxu0 0.0
    %221 = vmatpush1.msra.mxu0 %v134
    %222 = vmatprep.subr.mxu0 0.0
    %223 = vmatpush1.msra.mxu0 %v133
    %224 = vmatprep.subr.mxu0 0.0
    %225 = vmatpush1.msra.mxu0 %v132
    %226 = vmatprep.subr.mxu0 0.0
    %227 = vmatpush1.msra.mxu0 %v131
    %228 = vmatprep.subr.mxu0 0.0
    %229 = vmatpush1.msra.mxu0 %v130
    %230 = vmatprep.subr.mxu0 0.0
    %231 = vmatpush1.msra.mxu0 %v129
    %232 = vmatprep.subr.mxu0 0.0
    %233 = vmatpush2.msra.mxu0 0.0
    %234 = vmatprep.subr.mxu0 0.0
    %235 = vmatpush2.msra.mxu0 0.0
    %236 = vmatprep.subr.mxu0 0.0
    %237 = vmatpush2.msra.mxu0 0.0
    %238 = vmatprep.subr.mxu0 0.0
    %239 = vmatpush2.msra.mxu0 0.0
    %240 = vmatprep.subr.mxu0 0.0
    %241 = vmatpush2.msra.mxu0 0.0
    %242 = vmatprep.subr.mxu0 0.0
    %243 = vmatpush2.msra.mxu0 0.0
    %244 = vmatprep.subr.mxu0 0.0
    %245 = vmatpush2.msra.mxu0 0.0
    %246 = vmatprep.subr.mxu0 0.0
    %247 = vmatpush2.msra.mxu0 0.0
    %248 = vmatprep.subr.mxu0 0.0
    %249 = vmatpush2.msra.mxu0 0.0
    %250 = vmatprep.subr.mxu0 0.0
    %251 = vmatpush2.msra.mxu0 0.0
    %252 = vmatprep.subr.mxu0 0.0
    %253 = vmatpush2.msra.mxu0 0.0
    %254 = vmatprep.subr.mxu0 0.0
    %255 = vmatpush2.msra.mxu0 0.0
    %256 = vmatprep.subr.mxu0 0.0
    %257 = vmatpush2.msra.mxu0 0.0
    %258 = vmatprep.subr.mxu0 0.0
    %259 = vmatpush2.msra.mxu0 0.0
    %260 = vmatprep.subr.mxu0 0.0
    %261 = vmatpush2.msra.mxu0 0.0
    %262 = vmatprep.subr.mxu0 0.0
    %263 = vmatpush2.msra.mxu0 0.0
    %264 = vmatprep.mubr.f32.mxu0 0.0
    %265 = vmatmul.mubr.f32.gmra.mxu0 %v199
    %v266 = vpop.f32.mrf.mxu0
    %v267 = vadd.f32 0.0, %v266
    %v268 = vpop.f32.mrf.mxu0
    %269 = vdwg.mxu0
    %270 = vmatprep.subr.mxu0 0.0
    %271 = vmatpush1.msra.mxu0 %v128
    %272 = vmatprep.subr.mxu0 0.0
    %273 = vmatpush1.msra.mxu0 %v127
    %274 = vmatprep.subr.mxu0 0.0
    %275 = vmatpush1.msra.mxu0 %v126
    %276 = vmatprep.subr.mxu0 0.0
    %277 = vmatpush1.msra.mxu0 %v125
    %278 = vmatprep.subr.mxu0 0.0
    %279 = vmatpush1.msra.mxu0 %v124
    %280 = vmatprep.subr.mxu0 0.0
    %281 = vmatpush1.msra.mxu0 %v123
    %282 = vmatprep.subr.mxu0 0.0
    %283 = vmatpush1.msra.mxu0 %v122
    %284 = vmatprep.subr.mxu0 0.0
    %285 = vmatpush1.msra.mxu0 %v121
    %286 = vmatprep.subr.mxu0 0.0
    %287 = vmatpush1.msra.mxu0 %v120
    %288 = vmatprep.subr.mxu0 0.0
    %289 = vmatpush1.msra.mxu0 %v119
    %290 = vmatprep.subr.mxu0 0.0
    %291 = vmatpush1.msra.mxu0 %v118
    %292 = vmatprep.subr.mxu0 0.0
    %293 = vmatpush1.msra.mxu0 %v117
    %294 = vmatprep.subr.mxu0 0.0
    %295 = vmatpush1.msra.mxu0 %v116
    %296 = vmatprep.subr.mxu0 0.0
    %297 = vmatpush1.msra.mxu0 %v115
    %298 = vmatprep.subr.mxu0 0.0
    %299 = vmatpush1.msra.mxu0 %v114
    %300 = vmatprep.subr.mxu0 0.0
    %301 = vmatpush1.msra.mxu0 %v113
    %302 = vmatprep.subr.mxu0 0.0
    %303 = vmatpush2.msra.mxu0 0.0
    %304 = vmatprep.subr.mxu0 0.0
    %305 = vmatpush2.msra.mxu0 0.0
    %306 = vmatprep.subr.mxu0 0.0
    %307 = vmatpush2.msra.mxu0 0.0
    %308 = vmatprep.subr.mxu0 0.0
    %309 = vmatpush2.msra.mxu0 0.0
    %310 = vmatprep.subr.mxu0 0.0
    %311 = vmatpush2.msra.mxu0 0.0
    %312 = vmatprep.subr.mxu0 0.0
    %313 = vmatpush2.msra.mxu0 0.0
    %314 = vmatprep.subr.mxu0 0.0
    %315 = vmatpush2.msra.mxu0 0.0
    %316 = vmatprep.subr.mxu0 0.0
    %317 = vmatpush2.msra.mxu0 0.0
    %318 = vmatprep.subr.mxu0 0.0
    %319 = vmatpush2.msra.mxu0 0.0
    %320 = vmatprep.subr.mxu0 0.0
    %321 = vmatpush2.msra.mxu0 0.0
    %322 = vmatprep.subr.mxu0 0.0
    %323 = vmatpush2.msra.mxu0 0.0
    %324 = vmatprep.subr.mxu0 0.0
    %325 = vmatpush2.msra.mxu0 0.0
    %326 = vmatprep.subr.mxu0 0.0
    %327 = vmatpush2.msra.mxu0 0.0
    %328 = vmatprep.subr.mxu0 0.0
    %329 = vmatpush2.msra.mxu0 0.0
    %330 = vmatprep.subr.mxu0 0.0
    %331 = vmatpush2.msra.mxu0 0.0
    %332 = vmatprep.subr.mxu0 0.0
    %333 = vmatpush2.msra.mxu0 0.0
    %334 = vmatprep.mubr.f32.mxu0 0.0
    %335 = vmatmul.mubr.f32.gmra.mxu0 %v198
    %v336 = vpop.f32.mrf.mxu0
    %v337 = vadd.f32 %v267, %v336
    %v338 = vpop.f32.mrf.mxu0
    %339 = vdwg.mxu0
    %v340 = vadd.f32 %v337, %v182
    %v341 = vxor.u32 %v340, 2147483648
    %v342 = vmul.f32 %v341, 1.442695
    %v343 = vpow.pop %v342
    %v344 = vadd.f32 %v343, 1.0
    %v345 = vrcp.pop %v344
    %v346 = vmul.f32 1.0, %v345
    %v347 = vmul.f32 %v340, %v346
    %348 = vmatprep.subr.mxu0 0.0
    %349 = vmatpush1.msra.mxu0 %v160
    %350 = vmatprep.subr.mxu0 0.0
    %351 = vmatpush1.msra.mxu0 %v159
    %352 = vmatprep.subr.mxu0 0.0
    %353 = vmatpush1.msra.mxu0 %v158
    %354 = vmatprep.subr.mxu0 0.0
    %355 = vmatpush1.msra.mxu0 %v157
    %356 = vmatprep.subr.mxu0 0.0
    %357 = vmatpush1.msra.mxu0 %v156
    %358 = vmatprep.subr.mxu0 0.0
    %359 = vmatpush1.msra.mxu0 %v155
    %360 = vmatprep.subr.mxu0 0.0
    %361 = vmatpush1.msra.mxu0 %v154
    %362 = vmatprep.subr.mxu0 0.0
    %363 = vmatpush1.msra.mxu0 %v153
    %364 = vmatprep.subr.mxu0 0.0
    %365 = vmatpush1.msra.mxu0 %v152
    %366 = vmatprep.subr.mxu0 0.0
    %367 = vmatpush1.msra.mxu0 %v151
    %368 = vmatprep.subr.mxu0 0.0
    %369 = vmatpush1.msra.mxu0 %v150
    %370 = vmatprep.subr.mxu0 0.0
    %371 = vmatpush1.msra.mxu0 %v149
    %372 = vmatprep.subr.mxu0 0.0
    %373 = vmatpush1.msra.mxu0 %v148
    %374 = vmatprep.subr.mxu0 0.0
    %375 = vmatpush1.msra.mxu0 %v147
    %376 = vmatprep.subr.mxu0 0.0
    %377 = vmatpush1.msra.mxu0 %v146
    %378 = vmatprep.subr.mxu0 0.0
    %379 = vmatpush1.msra.mxu0 %v145
    %380 = vmatprep.subr.mxu0 0.0
    %381 = vmatpush2.msra.mxu0 0.0
    %382 = vmatprep.subr.mxu0 0.0
    %383 = vmatpush2.msra.mxu0 0.0
    %384 = vmatprep.subr.mxu0 0.0
    %385 = vmatpush2.msra.mxu0 0.0
    %386 = vmatprep.subr.mxu0 0.0
    %387 = vmatpush2.msra.mxu0 0.0
    %388 = vmatprep.subr.mxu0 0.0
    %389 = vmatpush2.msra.mxu0 0.0
    %390 = vmatprep.subr.mxu0 0.0
    %391 = vmatpush2.msra.mxu0 0.0
    %392 = vmatprep.subr.mxu0 0.0
    %393 = vmatpush2.msra.mxu0 0.0
    %394 = vmatprep.subr.mxu0 0.0
    %395 = vmatpush2.msra.mxu0 0.0
    %396 = vmatprep.subr.mxu0 0.0
    %397 = vmatpush2.msra.mxu0 0.0
    %398 = vmatprep.subr.mxu0 0.0
    %399 = vmatpush2.msra.mxu0 0.0
    %400 = vmatprep.subr.mxu0 0.0
    %401 = vmatpush2.msra.mxu0 0.0
    %402 = vmatprep.subr.mxu0 0.0
    %403 = vmatpush2.msra.mxu0 0.0
    %404 = vmatprep.subr.mxu0 0.0
    %405 = vmatpush2.msra.mxu0 0.0
    %406 = vmatprep.subr.mxu0 0.0
    %407 = vmatpush2.msra.mxu0 0.0
    %408 = vmatprep.subr.mxu0 0.0
    %409 = vmatpush2.msra.mxu0 0.0
    %410 = vmatprep.subr.mxu0 0.0
    %411 = vmatpush2.msra.mxu0 0.0
    %412 = vmatprep.mubr.f32.mxu0 0.0
    %413 = vmatmul.mubr.f32.gmra.mxu0 %v347
    %v414 = vpop.f32.mrf.mxu0
    %v415 = vadd.f32 %v189, %v414
    %v416 = vpop.f32.mrf.mxu0
    %417 = vdwg.mxu0
    %v418 = vxor.u32 %v415, 2147483648
    %v419 = vmul.f32 %v418, 1.442695
    %v420 = vpow.pop %v419
    %v421 = vadd.f32 %v420, 1.0
    %v422 = vrcp.pop %v421
    %v423 = vmul.f32 1.0, %v422
    %v424 = vmul.f32 %v415, %v423
    %425 = vmatprep.subr.mxu0 0.0
    %426 = vmatpush1.msra.mxu0 %v176
    %427 = vmatprep.subr.mxu0 0.0
    %428 = vmatpush1.msra.mxu0 %v175
    %429 = vmatprep.subr.mxu0 0.0
    %430 = vmatpush1.msra.mxu0 %v174
    %431 = vmatprep.subr.mxu0 0.0
    %432 = vmatpush1.msra.mxu0 %v173
    %433 = vmatprep.subr.mxu0 0.0
    %434 = vmatpush1.msra.mxu0 %v172
    %435 = vmatprep.subr.mxu0 0.0
    %436 = vmatpush1.msra.mxu0 %v171
    %437 = vmatprep.subr.mxu0 0.0
    %438 = vmatpush1.msra.mxu0 %v170
    %439 = vmatprep.subr.mxu0 0.0
    %440 = vmatpush1.msra.mxu0 %v169
    %441 = vmatprep.subr.mxu0 0.0
    %442 = vmatpush1.msra.mxu0 %v168
    %443 = vmatprep.subr.mxu0 0.0
    %444 = vmatpush1.msra.mxu0 %v167
    %445 = vmatprep.subr.mxu0 0.0
    %446 = vmatpush1.msra.mxu0 %v166
    %447 = vmatprep.subr.mxu0 0.0
    %448 = vmatpush1.msra.mxu0 %v165
    %449 = vmatprep.subr.mxu0 0.0
    %450 = vmatpush1.msra.mxu0 %v164
    %451 = vmatprep.subr.mxu0 0.0
    %452 = vmatpush1.msra.mxu0 %v163
    %453 = vmatprep.subr.mxu0 0.0
    %454 = vmatpush1.msra.mxu0 %v162
    %455 = vmatprep.subr.mxu0 0.0
    %456 = vmatpush1.msra.mxu0 %v161
    %457 = vmatprep.subr.mxu0 0.0
    %458 = vmatpush2.msra.mxu0 0.0
    %459 = vmatprep.subr.mxu0 0.0
    %460 = vmatpush2.msra.mxu0 0.0
    %461 = vmatprep.subr.mxu0 0.0
    %462 = vmatpush2.msra.mxu0 0.0
    %463 = vmatprep.subr.mxu0 0.0
    %464 = vmatpush2.msra.mxu0 0.0
    %465 = vmatprep.subr.mxu0 0.0
    %466 = vmatpush2.msra.mxu0 0.0
    %467 = vmatprep.subr.mxu0 0.0
    %468 = vmatpush2.msra.mxu0 0.0
    %469 = vmatprep.subr.mxu0 0.0
    %470 = vmatpush2.msra.mxu0 0.0
    %471 = vmatprep.subr.mxu0 0.0
    %472 = vmatpush2.msra.mxu0 0.0
    %473 = vmatprep.subr.mxu0 0.0
    %474 = vmatpush2.msra.mxu0 0.0
    %475 = vmatprep.subr.mxu0 0.0
    %476 = vmatpush2.msra.mxu0 0.0
    %477 = vmatprep.subr.mxu0 0.0
    %478 = vmatpush2.msra.mxu0 0.0
    %479 = vmatprep.subr.mxu0 0.0
    %480 = vmatpush2.msra.mxu0 0.0
    %481 = vmatprep.subr.mxu0 0.0
    %482 = vmatpush2.msra.mxu0 0.0
    %483 = vmatprep.subr.mxu0 0.0
    %484 = vmatpush2.msra.mxu0 0.0
    %485 = vmatprep.subr.mxu0 0.0
    %486 = vmatpush2.msra.mxu0 0.0
    %487 = vmatprep.subr.mxu0 0.0
    %488 = vmatpush2.msra.mxu0 0.0
    %489 = vmatprep.mubr.f32.mxu0 0.0
    %490 = vmatmul.mubr.f32.gmra.mxu0 %v424
    %v491 = vpop.f32.mrf.mxu0
    %v492 = vadd.f32 %v196, %v491
    %v493 = vpop.f32.mrf.mxu0
    %494 = vdwg.mxu0
    %v495 = vadd.f32 %v198, %v492
    %496 = vst [vmem:[#allocation13] sm:$0xff] %v495
    %s497 = scalar_lea.vmem [#allocation5], 8
    %v498 = vld [vmem:[%s497] sm:$0xff]
    %499 = vmatprep.subr.mxu0 0.0
    %500 = vmatpush1.msra.mxu0 %v144
    %501 = vmatprep.subr.mxu0 0.0
    %502 = vmatpush1.msra.mxu0 %v143
    %503 = vmatprep.subr.mxu0 0.0
    %504 = vmatpush1.msra.mxu0 %v142
    %505 = vmatprep.subr.mxu0 0.0
    %506 = vmatpush1.msra.mxu0 %v141
    %507 = vmatprep.subr.mxu0 0.0
    %508 = vmatpush1.msra.mxu0 %v140
    %509 = vmatprep.subr.mxu0 0.0
    %510 = vmatpush1.msra.mxu0 %v139
    %511 = vmatprep.subr.mxu0 0.0
    %512 = vmatpush1.msra.mxu0 %v138
    %513 = vmatprep.subr.mxu0 0.0
    %514 = vmatpush1.msra.mxu0 %v137
    %515 = vmatprep.subr.mxu0 0.0
    %516 = vmatpush1.msra.mxu0 %v136
    %517 = vmatprep.subr.mxu0 0.0
    %518 = vmatpush1.msra.mxu0 %v135
    %519 = vmatprep.subr.mxu0 0.0
    %520 = vmatpush1.msra.mxu0 %v134
    %521 = vmatprep.subr.mxu0 0.0
    %522 = vmatpush1.msra.mxu0 %v133
    %523 = vmatprep.subr.mxu0 0.0
    %524 = vmatpush1.msra.mxu0 %v132
    %525 = vmatprep.subr.mxu0 0.0
    %526 = vmatpush1.msra.mxu0 %v131
    %527 = vmatprep.subr.mxu0 0.0
    %528 = vmatpush1.msra.mxu0 %v130
    %529 = vmatprep.subr.mxu0 0.0
    %530 = vmatpush1.msra.mxu0 %v129
    %531 = vmatprep.subr.mxu0 0.0
    %532 = vmatpush2.msra.mxu0 0.0
    %533 = vmatprep.subr.mxu0 0.0
    %534 = vmatpush2.msra.mxu0 0.0
    %535 = vmatprep.subr.mxu0 0.0
    %536 = vmatpush2.msra.mxu0 0.0
    %537 = vmatprep.subr.mxu0 0.0
    %538 = vmatpush2.msra.mxu0 0.0
    %539 = vmatprep.subr.mxu0 0.0
    %540 = vmatpush2.msra.mxu0 0.0
    %541 = vmatprep.subr.mxu0 0.0
    %542 = vmatpush2.msra.mxu0 0.0
    %543 = vmatprep.subr.mxu0 0.0
    %544 = vmatpush2.msra.mxu0 0.0
    %545 = vmatprep.subr.mxu0 0.0
    %546 = vmatpush2.msra.mxu0 0.0
    %547 = vmatprep.subr.mxu0 0.0
    %548 = vmatpush2.msra.mxu0 0.0
    %549 = vmatprep.subr.mxu0 0.0
    %550 = vmatpush2.msra.mxu0 0.0
    %551 = vmatprep.subr.mxu0 0.0
    %552 = vmatpush2.msra.mxu0 0.0
    %553 = vmatprep.subr.mxu0 0.0
    %554 = vmatpush2.msra.mxu0 0.0
    %555 = vmatprep.subr.mxu0 0.0
    %556 = vmatpush2.msra.mxu0 0.0
    %557 = vmatprep.subr.mxu0 0.0
    %558 = vmatpush2.msra.mxu0 0.0
    %559 = vmatprep.subr.mxu0 0.0
    %560 = vmatpush2.msra.mxu0 0.0
    %561 = vmatprep.subr.mxu0 0.0
    %562 = vmatpush2.msra.mxu0 0.0
    %563 = vmatprep.mubr.f32.mxu0 0.0
    %564 = vmatmul.mubr.f32.gmra.mxu0 %v498
    %v565 = vpop.f32.mrf.mxu0
    %v566 = vadd.f32 0.0, %v565
    %v567 = vpop.f32.mrf.mxu0
    %568 = vdwg.mxu0
    %569 = vmatprep.subr.mxu0 0.0
    %570 = vmatpush1.msra.mxu0 %v128
    %571 = vmatprep.subr.mxu0 0.0
    %572 = vmatpush1.msra.mxu0 %v127
    %573 = vmatprep.subr.mxu0 0.0
    %574 = vmatpush1.msra.mxu0 %v126
    %575 = vmatprep.subr.mxu0 0.0
    %576 = vmatpush1.msra.mxu0 %v125
    %577 = vmatprep.subr.mxu0 0.0
    %578 = vmatpush1.msra.mxu0 %v124
    %579 = vmatprep.subr.mxu0 0.0
    %580 = vmatpush1.msra.mxu0 %v123
    %581 = vmatprep.subr.mxu0 0.0
    %582 = vmatpush1.msra.mxu0 %v122
    %583 = vmatprep.subr.mxu0 0.0
    %584 = vmatpush1.msra.mxu0 %v121
    %585 = vmatprep.subr.mxu0 0.0
    %586 = vmatpush1.msra.mxu0 %v120
    %587 = vmatprep.subr.mxu0 0.0
    %588 = vmatpush1.msra.mxu0 %v119
    %589 = vmatprep.subr.mxu0 0.0
    %590 = vmatpush1.msra.mxu0 %v118
    %591 = vmatprep.subr.mxu0 0.0
    %592 = vmatpush1.msra.mxu0 %v117
    %593 = vmatprep.subr.mxu0 0.0
    %594 = vmatpush1.msra.mxu0 %v116
    %595 = vmatprep.subr.mxu0 0.0
    %596 = vmatpush1.msra.mxu0 %v115
    %597 = vmatprep.subr.mxu0 0.0
    %598 = vmatpush1.msra.mxu0 %v114
    %599 = vmatprep.subr.mxu0 0.0
    %600 = vmatpush1.msra.mxu0 %v113
    %601 = vmatprep.subr.mxu0 0.0
    %602 = vmatpush2.msra.mxu0 0.0
    %603 = vmatprep.subr.mxu0 0.0
    %604 = vmatpush2.msra.mxu0 0.0
    %605 = vmatprep.subr.mxu0 0.0
    %606 = vmatpush2.msra.mxu0 0.0
    %607 = vmatprep.subr.mxu0 0.0
    %608 = vmatpush2.msra.mxu0 0.0
    %609 = vmatprep.subr.mxu0 0.0
    %610 = vmatpush2.msra.mxu0 0.0
    %611 = vmatprep.subr.mxu0 0.0
    %612 = vmatpush2.msra.mxu0 0.0
    %613 = vmatprep.subr.mxu0 0.0
    %614 = vmatpush2.msra.mxu0 0.0
    %615 = vmatprep.subr.mxu0 0.0
    %616 = vmatpush2.msra.mxu0 0.0
    %617 = vmatprep.subr.mxu0 0.0
    %618 = vmatpush2.msra.mxu0 0.0
    %619 = vmatprep.subr.mxu0 0.0
    %620 = vmatpush2.msra.mxu0 0.0
    %621 = vmatprep.subr.mxu0 0.0
    %622 = vmatpush2.msra.mxu0 0.0
    %623 = vmatprep.subr.mxu0 0.0
    %624 = vmatpush2.msra.mxu0 0.0
    %625 = vmatprep.subr.mxu0 0.0
    %626 = vmatpush2.msra.mxu0 0.0
    %627 = vmatprep.subr.mxu0 0.0
    %628 = vmatpush2.msra.mxu0 0.0
    %629 = vmatprep.subr.mxu0 0.0
    %630 = vmatpush2.msra.mxu0 0.0
    %631 = vmatprep.subr.mxu0 0.0
    %632 = vmatpush2.msra.mxu0 0.0
    %633 = vmatprep.mubr.f32.mxu0 0.0
    %634 = vmatmul.mubr.f32.gmra.mxu0 %v495
    %v635 = vpop.f32.mrf.mxu0
    %v636 = vadd.f32 %v566, %v635
    %v637 = vpop.f32.mrf.mxu0
    %638 = vdwg.mxu0
    %v639 = vadd.f32 %v636, %v182
    %v640 = vxor.u32 %v639, 2147483648
    %v641 = vmul.f32 %v640, 1.442695
    %v642 = vpow.pop %v641
    %v643 = vadd.f32 %v642, 1.0
    %v644 = vrcp.pop %v643
    %v645 = vmul.f32 1.0, %v644
    %v646 = vmul.f32 %v639, %v645
    %647 = vmatprep.subr.mxu0 0.0
    %648 = vmatpush1.msra.mxu0 %v160
    %649 = vmatprep.subr.mxu0 0.0
    %650 = vmatpush1.msra.mxu0 %v159
    %651 = vmatprep.subr.mxu0 0.0
    %652 = vmatpush1.msra.mxu0 %v158
    %653 = vmatprep.subr.mxu0 0.0
    %654 = vmatpush1.msra.mxu0 %v157
    %655 = vmatprep.subr.mxu0 0.0
    %656 = vmatpush1.msra.mxu0 %v156
    %657 = vmatprep.subr.mxu0 0.0
    %658 = vmatpush1.msra.mxu0 %v155
    %659 = vmatprep.subr.mxu0 0.0
    %660 = vmatpush1.msra.mxu0 %v154
    %661 = vmatprep.subr.mxu0 0.0
    %662 = vmatpush1.msra.mxu0 %v153
    %663 = vmatprep.subr.mxu0 0.0
    %664 = vmatpush1.msra.mxu0 %v152
    %665 = vmatprep.subr.mxu0 0.0
    %666 = vmatpush1.msra.mxu0 %v151
    %667 = vmatprep.subr.mxu0 0.0
    %668 = vmatpush1.msra.mxu0 %v150
    %669 = vmatprep.subr.mxu0 0.0
    %670 = vmatpush1.msra.mxu0 %v149
    %671 = vmatprep.subr.mxu0 0.0
    %672 = vmatpush1.msra.mxu0 %v148
    %673 = vmatprep.subr.mxu0 0.0
    %674 = vmatpush1.msra.mxu0 %v147
    %675 = vmatprep.subr.mxu0 0.0
    %676 = vmatpush1.msra.mxu0 %v146
    %677 = vmatprep.subr.mxu0 0.0
    %678 = vmatpush1.msra.mxu0 %v145
    %679 = vmatprep.subr.mxu0 0.0
    %680 = vmatpush2.msra.mxu0 0.0
    %681 = vmatprep.subr.mxu0 0.0
    %682 = vmatpush2.msra.mxu0 0.0
    %683 = vmatprep.subr.mxu0 0.0
    %684 = vmatpush2.msra.mxu0 0.0
    %685 = vmatprep.subr.mxu0 0.0
    %686 = vmatpush2.msra.mxu0 0.0
    %687 = vmatprep.subr.mxu0 0.0
    %688 = vmatpush2.msra.mxu0 0.0
    %689 = vmatprep.subr.mxu0 0.0
    %690 = vmatpush2.msra.mxu0 0.0
    %691 = vmatprep.subr.mxu0 0.0
    %692 = vmatpush2.msra.mxu0 0.0
    %693 = vmatprep.subr.mxu0 0.0
    %694 = vmatpush2.msra.mxu0 0.0
    %695 = vmatprep.subr.mxu0 0.0
    %696 = vmatpush2.msra.mxu0 0.0
    %697 = vmatprep.subr.mxu0 0.0
    %698 = vmatpush2.msra.mxu0 0.0
    %699 = vmatprep.subr.mxu0 0.0
    %700 = vmatpush2.msra.mxu0 0.0
    %701 = vmatprep.subr.mxu0 0.0
    %702 = vmatpush2.msra.mxu0 0.0
    %703 = vmatprep.subr.mxu0 0.0
    %704 = vmatpush2.msra.mxu0 0.0
    %705 = vmatprep.subr.mxu0 0.0
    %706 = vmatpush2.msra.mxu0 0.0
    %707 = vmatprep.subr.mxu0 0.0
    %708 = vmatpush2.msra.mxu0 0.0
    %709 = vmatprep.subr.mxu0 0.0
    %710 = vmatpush2.msra.mxu0 0.0
    %711 = vmatprep.mubr.f32.mxu0 0.0
    %712 = vmatmul.mubr.f32.gmra.mxu0 %v646
    %v713 = vpop.f32.mrf.mxu0
    %v714 = vadd.f32 %v189, %v713
    %v715 = vpop.f32.mrf.mxu0
    %716 = vdwg.mxu0
    %v717 = vxor.u32 %v714, 2147483648
    %v718 = vmul.f32 %v717, 1.442695
    %v719 = vpow.pop %v718
    %v720 = vadd.f32 %v719, 1.0
    %v721 = vrcp.pop %v720
    %v722 = vmul.f32 1.0, %v721
    %v723 = vmul.f32 %v714, %v722
    %724 = vmatprep.subr.mxu0 0.0
    %725 = vmatpush1.msra.mxu0 %v176
    %726 = vmatprep.subr.mxu0 0.0
    %727 = vmatpush1.msra.mxu0 %v175
    %728 = vmatprep.subr.mxu0 0.0
    %729 = vmatpush1.msra.mxu0 %v174
    %730 = vmatprep.subr.mxu0 0.0
    %731 = vmatpush1.msra.mxu0 %v173
    %732 = vmatprep.subr.mxu0 0.0
    %733 = vmatpush1.msra.mxu0 %v172
    %734 = vmatprep.subr.mxu0 0.0
    %735 = vmatpush1.msra.mxu0 %v171
    %736 = vmatprep.subr.mxu0 0.0
    %737 = vmatpush1.msra.mxu0 %v170
    %738 = vmatprep.subr.mxu0 0.0
    %739 = vmatpush1.msra.mxu0 %v169
    %740 = vmatprep.subr.mxu0 0.0
    %741 = vmatpush1.msra.mxu0 %v168
    %742 = vmatprep.subr.mxu0 0.0
    %743 = vmatpush1.msra.mxu0 %v167
    %744 = vmatprep.subr.mxu0 0.0
    %745 = vmatpush1.msra.mxu0 %v166
    %746 = vmatprep.subr.mxu0 0.0
    %747 = vmatpush1.msra.mxu0 %v165
    %748 = vmatprep.subr.mxu0 0.0
    %749 = vmatpush1.msra.mxu0 %v164
    %750 = vmatprep.subr.mxu0 0.0
    %751 = vmatpush1.msra.mxu0 %v163
    %752 = vmatprep.subr.mxu0 0.0
    %753 = vmatpush1.msra.mxu0 %v162
    %754 = vmatprep.subr.mxu0 0.0
    %755 = vmatpush1.msra.mxu0 %v161
    %756 = vmatprep.subr.mxu0 0.0
    %757 = vmatpush2.msra.mxu0 0.0
    %758 = vmatprep.subr.mxu0 0.0
    %759 = vmatpush2.msra.mxu0 0.0
    %760 = vmatprep.subr.mxu0 0.0
    %761 = vmatpush2.msra.mxu0 0.0
    %762 = vmatprep.subr.mxu0 0.0
    %763 = vmatpush2.msra.mxu0 0.0
    %764 = vmatprep.subr.mxu0 0.0
    %765 = vmatpush2.msra.mxu0 0.0
    %766 = vmatprep.subr.mxu0 0.0
    %767 = vmatpush2.msra.mxu0 0.0
    %768 = vmatprep.subr.mxu0 0.0
    %769 = vmatpush2.msra.mxu0 0.0
    %770 = vmatprep.subr.mxu0 0.0
    %771 = vmatpush2.msra.mxu0 0.0
    %772 = vmatprep.subr.mxu0 0.0
    %773 = vmatpush2.msra.mxu0 0.0
    %774 = vmatprep.subr.mxu0 0.0
    %775 = vmatpush2.msra.mxu0 0.0
    %776 = vmatprep.subr.mxu0 0.0
    %777 = vmatpush2.msra.mxu0 0.0
    %778 = vmatprep.subr.mxu0 0.0
    %779 = vmatpush2.msra.mxu0 0.0
    %780 = vmatprep.subr.mxu0 0.0
    %781 = vmatpush2.msra.mxu0 0.0
    %782 = vmatprep.subr.mxu0 0.0
    %783 = vmatpush2.msra.mxu0 0.0
    %784 = vmatprep.subr.mxu0 0.0
    %785 = vmatpush2.msra.mxu0 0.0
    %786 = vmatprep.subr.mxu0 0.0
    %787 = vmatpush2.msra.mxu0 0.0
    %788 = vmatprep.mubr.f32.mxu0 0.0
    %789 = vmatmul.mubr.f32.gmra.mxu0 %v723
    %v790 = vpop.f32.mrf.mxu0
    %v791 = vadd.f32 %v196, %v790
    %v792 = vpop.f32.mrf.mxu0
    %793 = vdwg.mxu0
    %v794 = vadd.f32 %v495, %v791
    %s795 = scalar_lea.vmem [#allocation13], 8
    %796 = vst [vmem:[%s795] sm:$0xff] %v794
    %s797 = scalar_lea.vmem [#allocation5], 16
    %v798 = vld [vmem:[%s797] sm:$0xff]
    %799 = vmatprep.subr.mxu0 0.0
    %800 = vmatpush1.msra.mxu0 %v144
    %801 = vmatprep.subr.mxu0 0.0
    %802 = vmatpush1.msra.mxu0 %v143
    %803 = vmatprep.subr.mxu0 0.0
    %804 = vmatpush1.msra.mxu0 %v142
    %805 = vmatprep.subr.mxu0 0.0
    %806 = vmatpush1.msra.mxu0 %v141
    %807 = vmatprep.subr.mxu0 0.0
    %808 = vmatpush1.msra.mxu0 %v140
    %809 = vmatprep.subr.mxu0 0.0
    %810 = vmatpush1.msra.mxu0 %v139
    %811 = vmatprep.subr.mxu0 0.0
    %812 = vmatpush1.msra.mxu0 %v138
    %813 = vmatprep.subr.mxu0 0.0
    %814 = vmatpush1.msra.mxu0 %v137
    %815 = vmatprep.subr.mxu0 0.0
    %816 = vmatpush1.msra.mxu0 %v136
    %817 = vmatprep.subr.mxu0 0.0
    %818 = vmatpush1.msra.mxu0 %v135
    %819 = vmatprep.subr.mxu0 0.0
    %820 = vmatpush1.msra.mxu0 %v134
    %821 = vmatprep.subr.mxu0 0.0
    %822 = vmatpush1.msra.mxu0 %v133
    %823 = vmatprep.subr.mxu0 0.0
    %824 = vmatpush1.msra.mxu0 %v132
    %825 = vmatprep.subr.mxu0 0.0
    %826 = vmatpush1.msra.mxu0 %v131
    %827 = vmatprep.subr.mxu0 0.0
    %828 = vmatpush1.msra.mxu0 %v130
    %829 = vmatprep.subr.mxu0 0.0
    %830 = vmatpush1.msra.mxu0 %v129
    %831 = vmatprep.subr.mxu0 0.0
    %832 = vmatpush2.msra.mxu0 0.0
    %833 = vmatprep.subr.mxu0 0.0
    %834 = vmatpush2.msra.mxu0 0.0
    %835 = vmatprep.subr.mxu0 0.0
    %836 = vmatpush2.msra.mxu0 0.0
    %837 = vmatprep.subr.mxu0 0.0
    %838 = vmatpush2.msra.mxu0 0.0
    %839 = vmatprep.subr.mxu0 0.0
    %840 = vmatpush2.msra.mxu0 0.0
    %841 = vmatprep.subr.mxu0 0.0
    %842 = vmatpush2.msra.mxu0 0.0
    %843 = vmatprep.subr.mxu0 0.0
    %844 = vmatpush2.msra.mxu0 0.0
    %845 = vmatprep.subr.mxu0 0.0
    %846 = vmatpush2.msra.mxu0 0.0
    %847 = vmatprep.subr.mxu0 0.0
    %848 = vmatpush2.msra.mxu0 0.0
    %849 = vmatprep.subr.mxu0 0.0
    %850 = vmatpush2.msra.mxu0 0.0
    %851 = vmatprep.subr.mxu0 0.0
    %852 = vmatpush2.msra.mxu0 0.0
    %853 = vmatprep.subr.mxu0 0.0
    %854 = vmatpush2.msra.mxu0 0.0
    %855 = vmatprep.subr.mxu0 0.0
    %856 = vmatpush2.msra.mxu0 0.0
    %857 = vmatprep.subr.mxu0 0.0
    %858 = vmatpush2.msra.mxu0 0.0
    %859 = vmatprep.subr.mxu0 0.0
    %860 = vmatpush2.msra.mxu0 0.0
    %861 = vmatprep.subr.mxu0 0.0
    %862 = vmatpush2.msra.mxu0 0.0
    %863 = vmatprep.mubr.f32.mxu0 0.0
    %864 = vmatmul.mubr.f32.gmra.mxu0 %v798
    %v865 = vpop.f32.mrf.mxu0
    %v866 = vadd.f32 0.0, %v865
    %v867 = vpop.f32.mrf.mxu0
    %868 = vdwg.mxu0
    %869 = vmatprep.subr.mxu0 0.0
    %870 = vmatpush1.msra.mxu0 %v128
    %871 = vmatprep.subr.mxu0 0.0
    %872 = vmatpush1.msra.mxu0 %v127
    %873 = vmatprep.subr.mxu0 0.0
    %874 = vmatpush1.msra.mxu0 %v126
    %875 = vmatprep.subr.mxu0 0.0
    %876 = vmatpush1.msra.mxu0 %v125
    %877 = vmatprep.subr.mxu0 0.0
    %878 = vmatpush1.msra.mxu0 %v124
    %879 = vmatprep.subr.mxu0 0.0
    %880 = vmatpush1.msra.mxu0 %v123
    %881 = vmatprep.subr.mxu0 0.0
    %882 = vmatpush1.msra.mxu0 %v122
    %883 = vmatprep.subr.mxu0 0.0
    %884 = vmatpush1.msra.mxu0 %v121
    %885 = vmatprep.subr.mxu0 0.0
    %886 = vmatpush1.msra.mxu0 %v120
    %887 = vmatprep.subr.mxu0 0.0
    %888 = vmatpush1.msra.mxu0 %v119
    %889 = vmatprep.subr.mxu0 0.0
    %890 = vmatpush1.msra.mxu0 %v118
    %891 = vmatprep.subr.mxu0 0.0
    %892 = vmatpush1.msra.mxu0 %v117
    %893 = vmatprep.subr.mxu0 0.0
    %894 = vmatpush1.msra.mxu0 %v116
    %895 = vmatprep.subr.mxu0 0.0
    %896 = vmatpush1.msra.mxu0 %v115
    %897 = vmatprep.subr.mxu0 0.0
    %898 = vmatpush1.msra.mxu0 %v114
    %899 = vmatprep.subr.mxu0 0.0
    %900 = vmatpush1.msra.mxu0 %v113
    %901 = vmatprep.subr.mxu0 0.0
    %902 = vmatpush2.msra.mxu0 0.0
    %903 = vmatprep.subr.mxu0 0.0
    %904 = vmatpush2.msra.mxu0 0.0
    %905 = vmatprep.subr.mxu0 0.0
    %906 = vmatpush2.msra.mxu0 0.0
    %907 = vmatprep.subr.mxu0 0.0
    %908 = vmatpush2.msra.mxu0 0.0
    %909 = vmatprep.subr.mxu0 0.0
    %910 = vmatpush2.msra.mxu0 0.0
    %911 = vmatprep.subr.mxu0 0.0
    %912 = vmatpush2.msra.mxu0 0.0
    %913 = vmatprep.subr.mxu0 0.0
    %914 = vmatpush2.msra.mxu0 0.0
    %915 = vmatprep.subr.mxu0 0.0
    %916 = vmatpush2.msra.mxu0 0.0
    %917 = vmatprep.subr.mxu0 0.0
    %918 = vmatpush2.msra.mxu0 0.0
    %919 = vmatprep.subr.mxu0 0.0
    %920 = vmatpush2.msra.mxu0 0.0
    %921 = vmatprep.subr.mxu0 0.0
    %922 = vmatpush2.msra.mxu0 0.0
    %923 = vmatprep.subr.mxu0 0.0
    %924 = vmatpush2.msra.mxu0 0.0
    %925 = vmatprep.subr.mxu0 0.0
    %926 = vmatpush2.msra.mxu0 0.0
    %927 = vmatprep.subr.mxu0 0.0
    %928 = vmatpush2.msra.mxu0 0.0
    %929 = vmatprep.subr.mxu0 0.0
    %930 = vmatpush2.msra.mxu0 0.0
    %931 = vmatprep.subr.mxu0 0.0
    %932 = vmatpush2.msra.mxu0 0.0
    %933 = vmatprep.mubr.f32.mxu0 0.0
    %934 = vmatmul.mubr.f32.gmra.mxu0 %v794
    %v935 = vpop.f32.mrf.mxu0
    %v936 = vadd.f32 %v866, %v935
    %v937 = vpop.f32.mrf.mxu0
    %938 = vdwg.mxu0
    %v939 = vadd.f32 %v936, %v182
    %v940 = vxor.u32 %v939, 2147483648
    %v941 = vmul.f32 %v940, 1.442695
    %v942 = vpow.pop %v941
    %v943 = vadd.f32 %v942, 1.0
    %v944 = vrcp.pop %v943
    %v945 = vmul.f32 1.0, %v944
    %v946 = vmul.f32 %v939, %v945
    %947 = vmatprep.subr.mxu0 0.0
    %948 = vmatpush1.msra.mxu0 %v160
    %949 = vmatprep.subr.mxu0 0.0
    %950 = vmatpush1.msra.mxu0 %v159
    %951 = vmatprep.subr.mxu0 0.0
    %952 = vmatpush1.msra.mxu0 %v158
    %953 = vmatprep.subr.mxu0 0.0
    %954 = vmatpush1.msra.mxu0 %v157
    %955 = vmatprep.subr.mxu0 0.0
    %956 = vmatpush1.msra.mxu0 %v156
    %957 = vmatprep.subr.mxu0 0.0
    %958 = vmatpush1.msra.mxu0 %v155
    %959 = vmatprep.subr.mxu0 0.0
    %960 = vmatpush1.msra.mxu0 %v154
    %961 = vmatprep.subr.mxu0 0.0
    %962 = vmatpush1.msra.mxu0 %v153
    %963 = vmatprep.subr.mxu0 0.0
    %964 = vmatpush1.msra.mxu0 %v152
    %965 = vmatprep.subr.mxu0 0.0
    %966 = vmatpush1.msra.mxu0 %v151
    %967 = vmatprep.subr.mxu0 0.0
    %968 = vmatpush1.msra.mxu0 %v150
    %969 = vmatprep.subr.mxu0 0.0
    %970 = vmatpush1.msra.mxu0 %v149
    %971 = vmatprep.subr.mxu0 0.0
    %972 = vmatpush1.msra.mxu0 %v148
    %973 = vmatprep.subr.mxu0 0.0
    %974 = vmatpush1.msra.mxu0 %v147
    %975 = vmatprep.subr.mxu0 0.0
    %976 = vmatpush1.msra.mxu0 %v146
    %977 = vmatprep.subr.mxu0 0.0
    %978 = vmatpush1.msra.mxu0 %v145
    %979 = vmatprep.subr.mxu0 0.0
    %980 = vmatpush2.msra.mxu0 0.0
    %981 = vmatprep.subr.mxu0 0.0
    %982 = vmatpush2.msra.mxu0 0.0
    %983 = vmatprep.subr.mxu0 0.0
    %984 = vmatpush2.msra.mxu0 0.0
    %985 = vmatprep.subr.mxu0 0.0
    %986 = vmatpush2.msra.mxu0 0.0
    %987 = vmatprep.subr.mxu0 0.0
    %988 = vmatpush2.msra.mxu0 0.0
    %989 = vmatprep.subr.mxu0 0.0
    %990 = vmatpush2.msra.mxu0 0.0
    %991 = vmatprep.subr.mxu0 0.0
    %992 = vmatpush2.msra.mxu0 0.0
    %993 = vmatprep.subr.mxu0 0.0
    %994 = vmatpush2.msra.mxu0 0.0
    %995 = vmatprep.subr.mxu0 0.0
    %996 = vmatpush2.msra.mxu0 0.0
    %997 = vmatprep.subr.mxu0 0.0
    %998 = vmatpush2.msra.mxu0 0.0
    %999 = vmatprep.subr.mxu0 0.0
    %1000 = vmatpush2.msra.mxu0 0.0
    %1001 = vmatprep.subr.mxu0 0.0
    %1002 = vmatpush2.msra.mxu0 0.0
    %1003 = vmatprep.subr.mxu0 0.0
    %1004 = vmatpush2.msra.mxu0 0.0
    %1005 = vmatprep.subr.mxu0 0.0
    %1006 = vmatpush2.msra.mxu0 0.0
    %1007 = vmatprep.subr.mxu0 0.0
    %1008 = vmatpush2.msra.mxu0 0.0
    %1009 = vmatprep.subr.mxu0 0.0
    %1010 = vmatpush2.msra.mxu0 0.0
    %1011 = vmatprep.mubr.f32.mxu0 0.0
    %1012 = vmatmul.mubr.f32.gmra.mxu0 %v946
    %v1013 = vpop.f32.mrf.mxu0
    %v1014 = vadd.f32 %v189, %v1013
    %v1015 = vpop.f32.mrf.mxu0
    %1016 = vdwg.mxu0
    %v1017 = vxor.u32 %v1014, 2147483648
    %v1018 = vmul.f32 %v1017, 1.442695
    %v1019 = vpow.pop %v1018
    %v1020 = vadd.f32 %v1019, 1.0
    %v1021 = vrcp.pop %v1020
    %v1022 = vmul.f32 1.0, %v1021
    %v1023 = vmul.f32 %v1014, %v1022
    %1024 = vmatprep.subr.mxu0 0.0
    %1025 = vmatpush1.msra.mxu0 %v176
    %1026 = vmatprep.subr.mxu0 0.0
    %1027 = vmatpush1.msra.mxu0 %v175
    %1028 = vmatprep.subr.mxu0 0.0
    %1029 = vmatpush1.msra.mxu0 %v174
    %1030 = vmatprep.subr.mxu0 0.0
    %1031 = vmatpush1.msra.mxu0 %v173
    %1032 = vmatprep.subr.mxu0 0.0
    %1033 = vmatpush1.msra.mxu0 %v172
    %1034 = vmatprep.subr.mxu0 0.0
    %1035 = vmatpush1.msra.mxu0 %v171
    %1036 = vmatprep.subr.mxu0 0.0
    %1037 = vmatpush1.msra.mxu0 %v170
    %1038 = vmatprep.subr.mxu0 0.0
    %1039 = vmatpush1.msra.mxu0 %v169
    %1040 = vmatprep.subr.mxu0 0.0
    %1041 = vmatpush1.msra.mxu0 %v168
    %1042 = vmatprep.subr.mxu0 0.0
    %1043 = vmatpush1.msra.mxu0 %v167
    %1044 = vmatprep.subr.mxu0 0.0
    %1045 = vmatpush1.msra.mxu0 %v166
    %1046 = vmatprep.subr.mxu0 0.0
    %1047 = vmatpush1.msra.mxu0 %v165
    %1048 = vmatprep.subr.mxu0 0.0
    %1049 = vmatpush1.msra.mxu0 %v164
    %1050 = vmatprep.subr.mxu0 0.0
    %1051 = vmatpush1.msra.mxu0 %v163
    %1052 = vmatprep.subr.mxu0 0.0
    %1053 = vmatpush1.msra.mxu0 %v162
    %1054 = vmatprep.subr.mxu0 0.0
    %1055 = vmatpush1.msra.mxu0 %v161
    %1056 = vmatprep.subr.mxu0 0.0
    %1057 = vmatpush2.msra.mxu0 0.0
    %1058 = vmatprep.subr.mxu0 0.0
    %1059 = vmatpush2.msra.mxu0 0.0
    %1060 = vmatprep.subr.mxu0 0.0
    %1061 = vmatpush2.msra.mxu0 0.0
    %1062 = vmatprep.subr.mxu0 0.0
    %1063 = vmatpush2.msra.mxu0 0.0
    %1064 = vmatprep.subr.mxu0 0.0
    %1065 = vmatpush2.msra.mxu0 0.0
    %1066 = vmatprep.subr.mxu0 0.0
    %1067 = vmatpush2.msra.mxu0 0.0
    %1068 = vmatprep.subr.mxu0 0.0
    %1069 = vmatpush2.msra.mxu0 0.0
    %1070 = vmatprep.subr.mxu0 0.0
    %1071 = vmatpush2.msra.mxu0 0.0
    %1072 = vmatprep.subr.mxu0 0.0
    %1073 = vmatpush2.msra.mxu0 0.0
    %1074 = vmatprep.subr.mxu0 0.0
    %1075 = vmatpush2.msra.mxu0 0.0
    %1076 = vmatprep.subr.mxu0 0.0
    %1077 = vmatpush2.msra.mxu0 0.0
    %1078 = vmatprep.subr.mxu0 0.0
    %1079 = vmatpush2.msra.mxu0 0.0
    %1080 = vmatprep.subr.mxu0 0.0
    %1081 = vmatpush2.msra.mxu0 0.0
    %1082 = vmatprep.subr.mxu0 0.0
    %1083 = vmatpush2.msra.mxu0 0.0
    %1084 = vmatprep.subr.mxu0 0.0
    %1085 = vmatpush2.msra.mxu0 0.0
    %1086 = vmatprep.subr.mxu0 0.0
    %1087 = vmatpush2.msra.mxu0 0.0
    %1088 = vmatprep.mubr.f32.mxu0 0.0
    %1089 = vmatmul.mubr.f32.gmra.mxu0 %v1023
    %v1090 = vpop.f32.mrf.mxu0
    %v1091 = vadd.f32 %v196, %v1090
    %v1092 = vpop.f32.mrf.mxu0
    %1093 = vdwg.mxu0
    %v1094 = vadd.f32 %v794, %v1091
    %s1095 = scalar_lea.vmem [#allocation13], 16
    %1096 = vst [vmem:[%s1095] sm:$0xff] %v1094
    %s1097 = scalar_lea.vmem [#allocation5], 24
    %v1098 = vld [vmem:[%s1097] sm:$0xff]
    %1099 = vmatprep.subr.mxu0 0.0
    %1100 = vmatpush1.msra.mxu0 %v144
    %1101 = vmatprep.subr.mxu0 0.0
    %1102 = vmatpush1.msra.mxu0 %v143
    %1103 = vmatprep.subr.mxu0 0.0
    %1104 = vmatpush1.msra.mxu0 %v142
    %1105 = vmatprep.subr.mxu0 0.0
    %1106 = vmatpush1.msra.mxu0 %v141
    %1107 = vmatprep.subr.mxu0 0.0
    %1108 = vmatpush1.msra.mxu0 %v140
    %1109 = vmatprep.subr.mxu0 0.0
    %1110 = vmatpush1.msra.mxu0 %v139
    %1111 = vmatprep.subr.mxu0 0.0
    %1112 = vmatpush1.msra.mxu0 %v138
    %1113 = vmatprep.subr.mxu0 0.0
    %1114 = vmatpush1.msra.mxu0 %v137
    %1115 = vmatprep.subr.mxu0 0.0
    %1116 = vmatpush1.msra.mxu0 %v136
    %1117 = vmatprep.subr.mxu0 0.0
    %1118 = vmatpush1.msra.mxu0 %v135
    %1119 = vmatprep.subr.mxu0 0.0
    %1120 = vmatpush1.msra.mxu0 %v134
    %1121 = vmatprep.subr.mxu0 0.0
    %1122 = vmatpush1.msra.mxu0 %v133
    %1123 = vmatprep.subr.mxu0 0.0
    %1124 = vmatpush1.msra.mxu0 %v132
    %1125 = vmatprep.subr.mxu0 0.0
    %1126 = vmatpush1.msra.mxu0 %v131
    %1127 = vmatprep.subr.mxu0 0.0
    %1128 = vmatpush1.msra.mxu0 %v130
    %1129 = vmatprep.subr.mxu0 0.0
    %1130 = vmatpush1.msra.mxu0 %v129
    %1131 = vmatprep.subr.mxu0 0.0
    %1132 = vmatpush2.msra.mxu0 0.0
    %1133 = vmatprep.subr.mxu0 0.0
    %1134 = vmatpush2.msra.mxu0 0.0
    %1135 = vmatprep.subr.mxu0 0.0
    %1136 = vmatpush2.msra.mxu0 0.0
    %1137 = vmatprep.subr.mxu0 0.0
    %1138 = vmatpush2.msra.mxu0 0.0
    %1139 = vmatprep.subr.mxu0 0.0
    %1140 = vmatpush2.msra.mxu0 0.0
    %1141 = vmatprep.subr.mxu0 0.0
    %1142 = vmatpush2.msra.mxu0 0.0
    %1143 = vmatprep.subr.mxu0 0.0
    %1144 = vmatpush2.msra.mxu0 0.0
    %1145 = vmatprep.subr.mxu0 0.0
    %1146 = vmatpush2.msra.mxu0 0.0
    %1147 = vmatprep.subr.mxu0 0.0
    %1148 = vmatpush2.msra.mxu0 0.0
    %1149 = vmatprep.subr.mxu0 0.0
    %1150 = vmatpush2.msra.mxu0 0.0
    %1151 = vmatprep.subr.mxu0 0.0
    %1152 = vmatpush2.msra.mxu0 0.0
    %1153 = vmatprep.subr.mxu0 0.0
    %1154 = vmatpush2.msra.mxu0 0.0
    %1155 = vmatprep.subr.mxu0 0.0
    %1156 = vmatpush2.msra.mxu0 0.0
    %1157 = vmatprep.subr.mxu0 0.0
    %1158 = vmatpush2.msra.mxu0 0.0
    %1159 = vmatprep.subr.mxu0 0.0
    %1160 = vmatpush2.msra.mxu0 0.0
    %1161 = vmatprep.subr.mxu0 0.0
    %1162 = vmatpush2.msra.mxu0 0.0
    %1163 = vmatprep.mubr.f32.mxu0 0.0
    %1164 = vmatmul.mubr.f32.gmra.mxu0 %v1098
    %v1165 = vpop.f32.mrf.mxu0
    %v1166 = vadd.f32 0.0, %v1165
    %v1167 = vpop.f32.mrf.mxu0
    %1168 = vdwg.mxu0
    %1169 = vmatprep.subr.mxu0 0.0
    %1170 = vmatpush1.msra.mxu0 %v128
    %1171 = vmatprep.subr.mxu0 0.0
    %1172 = vmatpush1.msra.mxu0 %v127
    %1173 = vmatprep.subr.mxu0 0.0
    %1174 = vmatpush1.msra.mxu0 %v126
    %1175 = vmatprep.subr.mxu0 0.0
    %1176 = vmatpush1.msra.mxu0 %v125
    %1177 = vmatprep.subr.mxu0 0.0
    %1178 = vmatpush1.msra.mxu0 %v124
    %1179 = vmatprep.subr.mxu0 0.0
    %1180 = vmatpush1.msra.mxu0 %v123
    %1181 = vmatprep.subr.mxu0 0.0
    %1182 = vmatpush1.msra.mxu0 %v122
    %1183 = vmatprep.subr.mxu0 0.0
    %1184 = vmatpush1.msra.mxu0 %v121
    %1185 = vmatprep.subr.mxu0 0.0
    %1186 = vmatpush1.msra.mxu0 %v120
    %1187 = vmatprep.subr.mxu0 0.0
    %1188 = vmatpush1.msra.mxu0 %v119
    %1189 = vmatprep.subr.mxu0 0.0
    %1190 = vmatpush1.msra.mxu0 %v118
    %1191 = vmatprep.subr.mxu0 0.0
    %1192 = vmatpush1.msra.mxu0 %v117
    %1193 = vmatprep.subr.mxu0 0.0
    %1194 = vmatpush1.msra.mxu0 %v116
    %1195 = vmatprep.subr.mxu0 0.0
    %1196 = vmatpush1.msra.mxu0 %v115
    %1197 = vmatprep.subr.mxu0 0.0
    %1198 = vmatpush1.msra.mxu0 %v114
    %1199 = vmatprep.subr.mxu0 0.0
    %1200 = vmatpush1.msra.mxu0 %v113
    %1201 = vmatprep.subr.mxu0 0.0
    %1202 = vmatpush2.msra.mxu0 0.0
    %1203 = vmatprep.subr.mxu0 0.0
    %1204 = vmatpush2.msra.mxu0 0.0
    %1205 = vmatprep.subr.mxu0 0.0
    %1206 = vmatpush2.msra.mxu0 0.0
    %1207 = vmatprep.subr.mxu0 0.0
    %1208 = vmatpush2.msra.mxu0 0.0
    %1209 = vmatprep.subr.mxu0 0.0
    %1210 = vmatpush2.msra.mxu0 0.0
    %1211 = vmatprep.subr.mxu0 0.0
    %1212 = vmatpush2.msra.mxu0 0.0
    %1213 = vmatprep.subr.mxu0 0.0
    %1214 = vmatpush2.msra.mxu0 0.0
    %1215 = vmatprep.subr.mxu0 0.0
    %1216 = vmatpush2.msra.mxu0 0.0
    %1217 = vmatprep.subr.mxu0 0.0
    %1218 = vmatpush2.msra.mxu0 0.0
    %1219 = vmatprep.subr.mxu0 0.0
    %1220 = vmatpush2.msra.mxu0 0.0
    %1221 = vmatprep.subr.mxu0 0.0
    %1222 = vmatpush2.msra.mxu0 0.0
    %1223 = vmatprep.subr.mxu0 0.0
    %1224 = vmatpush2.msra.mxu0 0.0
    %1225 = vmatprep.subr.mxu0 0.0
    %1226 = vmatpush2.msra.mxu0 0.0
    %1227 = vmatprep.subr.mxu0 0.0
    %1228 = vmatpush2.msra.mxu0 0.0
    %1229 = vmatprep.subr.mxu0 0.0
    %1230 = vmatpush2.msra.mxu0 0.0
    %1231 = vmatprep.subr.mxu0 0.0
    %1232 = vmatpush2.msra.mxu0 0.0
    %1233 = vmatprep.mubr.f32.mxu0 0.0
    %1234 = vmatmul.mubr.f32.gmra.mxu0 %v1094
    %v1235 = vpop.f32.mrf.mxu0
    %v1236 = vadd.f32 %v1166, %v1235
    %v1237 = vpop.f32.mrf.mxu0
    %1238 = vdwg.mxu0
    %v1239 = vadd.f32 %v1236, %v182
    %v1240 = vxor.u32 %v1239, 2147483648
    %v1241 = vmul.f32 %v1240, 1.442695
    %v1242 = vpow.pop %v1241
    %v1243 = vadd.f32 %v1242, 1.0
    %v1244 = vrcp.pop %v1243
    %v1245 = vmul.f32 1.0, %v1244
    %v1246 = vmul.f32 %v1239, %v1245
    %1247 = vmatprep.subr.mxu0 0.0
    %1248 = vmatpush1.msra.mxu0 %v160
    %1249 = vmatprep.subr.mxu0 0.0
    %1250 = vmatpush1.msra.mxu0 %v159
    %1251 = vmatprep.subr.mxu0 0.0
    %1252 = vmatpush1.msra.mxu0 %v158
    %1253 = vmatprep.subr.mxu0 0.0
    %1254 = vmatpush1.msra.mxu0 %v157
    %1255 = vmatprep.subr.mxu0 0.0
    %1256 = vmatpush1.msra.mxu0 %v156
    %1257 = vmatprep.subr.mxu0 0.0
    %1258 = vmatpush1.msra.mxu0 %v155
    %1259 = vmatprep.subr.mxu0 0.0
    %1260 = vmatpush1.msra.mxu0 %v154
    %1261 = vmatprep.subr.mxu0 0.0
    %1262 = vmatpush1.msra.mxu0 %v153
    %1263 = vmatprep.subr.mxu0 0.0
    %1264 = vmatpush1.msra.mxu0 %v152
    %1265 = vmatprep.subr.mxu0 0.0
    %1266 = vmatpush1.msra.mxu0 %v151
    %1267 = vmatprep.subr.mxu0 0.0
    %1268 = vmatpush1.msra.mxu0 %v150
    %1269 = vmatprep.subr.mxu0 0.0
    %1270 = vmatpush1.msra.mxu0 %v149
    %1271 = vmatprep.subr.mxu0 0.0
    %1272 = vmatpush1.msra.mxu0 %v148
    %1273 = vmatprep.subr.mxu0 0.0
    %1274 = vmatpush1.msra.mxu0 %v147
    %1275 = vmatprep.subr.mxu0 0.0
    %1276 = vmatpush1.msra.mxu0 %v146
    %1277 = vmatprep.subr.mxu0 0.0
    %1278 = vmatpush1.msra.mxu0 %v145
    %1279 = vmatprep.subr.mxu0 0.0
    %1280 = vmatpush2.msra.mxu0 0.0
    %1281 = vmatprep.subr.mxu0 0.0
    %1282 = vmatpush2.msra.mxu0 0.0
    %1283 = vmatprep.subr.mxu0 0.0
    %1284 = vmatpush2.msra.mxu0 0.0
    %1285 = vmatprep.subr.mxu0 0.0
    %1286 = vmatpush2.msra.mxu0 0.0
    %1287 = vmatprep.subr.mxu0 0.0
    %1288 = vmatpush2.msra.mxu0 0.0
    %1289 = vmatprep.subr.mxu0 0.0
    %1290 = vmatpush2.msra.mxu0 0.0
    %1291 = vmatprep.subr.mxu0 0.0
    %1292 = vmatpush2.msra.mxu0 0.0
    %1293 = vmatprep.subr.mxu0 0.0
    %1294 = vmatpush2.msra.mxu0 0.0
    %1295 = vmatprep.subr.mxu0 0.0
    %1296 = vmatpush2.msra.mxu0 0.0
    %1297 = vmatprep.subr.mxu0 0.0
    %1298 = vmatpush2.msra.mxu0 0.0
    %1299 = vmatprep.subr.mxu0 0.0
    %1300 = vmatpush2.msra.mxu0 0.0
    %1301 = vmatprep.subr.mxu0 0.0
    %1302 = vmatpush2.msra.mxu0 0.0
    %1303 = vmatprep.subr.mxu0 0.0
    %1304 = vmatpush2.msra.mxu0 0.0
    %1305 = vmatprep.subr.mxu0 0.0
    %1306 = vmatpush2.msra.mxu0 0.0
    %1307 = vmatprep.subr.mxu0 0.0
    %1308 = vmatpush2.msra.mxu0 0.0
    %1309 = vmatprep.subr.mxu0 0.0
    %1310 = vmatpush2.msra.mxu0 0.0
    %1311 = vmatprep.mubr.f32.mxu0 0.0
    %1312 = vmatmul.mubr.f32.gmra.mxu0 %v1246
    %v1313 = vpop.f32.mrf.mxu0
    %v1314 = vadd.f32 %v189, %v1313
    %v1315 = vpop.f32.mrf.mxu0
    %1316 = vdwg.mxu0
    %v1317 = vxor.u32 %v1314, 2147483648
    %v1318 = vmul.f32 %v1317, 1.442695
    %v1319 = vpow.pop %v1318
    %v1320 = vadd.f32 %v1319, 1.0
    %v1321 = vrcp.pop %v1320
    %v1322 = vmul.f32 1.0, %v1321
    %v1323 = vmul.f32 %v1314, %v1322
    %1324 = vmatprep.subr.mxu0 0.0
    %1325 = vmatpush1.msra.mxu0 %v176
    %1326 = vmatprep.subr.mxu0 0.0
    %1327 = vmatpush1.msra.mxu0 %v175
    %1328 = vmatprep.subr.mxu0 0.0
    %1329 = vmatpush1.msra.mxu0 %v174
    %1330 = vmatprep.subr.mxu0 0.0
    %1331 = vmatpush1.msra.mxu0 %v173
    %1332 = vmatprep.subr.mxu0 0.0
    %1333 = vmatpush1.msra.mxu0 %v172
    %1334 = vmatprep.subr.mxu0 0.0
    %1335 = vmatpush1.msra.mxu0 %v171
    %1336 = vmatprep.subr.mxu0 0.0
    %1337 = vmatpush1.msra.mxu0 %v170
    %1338 = vmatprep.subr.mxu0 0.0
    %1339 = vmatpush1.msra.mxu0 %v169
    %1340 = vmatprep.subr.mxu0 0.0
    %1341 = vmatpush1.msra.mxu0 %v168
    %1342 = vmatprep.subr.mxu0 0.0
    %1343 = vmatpush1.msra.mxu0 %v167
    %1344 = vmatprep.subr.mxu0 0.0
    %1345 = vmatpush1.msra.mxu0 %v166
    %1346 = vmatprep.subr.mxu0 0.0
    %1347 = vmatpush1.msra.mxu0 %v165
    %1348 = vmatprep.subr.mxu0 0.0
    %1349 = vmatpush1.msra.mxu0 %v164
    %1350 = vmatprep.subr.mxu0 0.0
    %1351 = vmatpush1.msra.mxu0 %v163
    %1352 = vmatprep.subr.mxu0 0.0
    %1353 = vmatpush1.msra.mxu0 %v162
    %1354 = vmatprep.subr.mxu0 0.0
    %1355 = vmatpush1.msra.mxu0 %v161
    %1356 = vmatprep.subr.mxu0 0.0
    %1357 = vmatpush2.msra.mxu0 0.0
    %1358 = vmatprep.subr.mxu0 0.0
    %1359 = vmatpush2.msra.mxu0 0.0
    %1360 = vmatprep.subr.mxu0 0.0
    %1361 = vmatpush2.msra.mxu0 0.0
    %1362 = vmatprep.subr.mxu0 0.0
    %1363 = vmatpush2.msra.mxu0 0.0
    %1364 = vmatprep.subr.mxu0 0.0
    %1365 = vmatpush2.msra.mxu0 0.0
    %1366 = vmatprep.subr.mxu0 0.0
    %1367 = vmatpush2.msra.mxu0 0.0
    %1368 = vmatprep.subr.mxu0 0.0
    %1369 = vmatpush2.msra.mxu0 0.0
    %1370 = vmatprep.subr.mxu0 0.0
    %1371 = vmatpush2.msra.mxu0 0.0
    %1372 = vmatprep.subr.mxu0 0.0
    %1373 = vmatpush2.msra.mxu0 0.0
    %1374 = vmatprep.subr.mxu0 0.0
    %1375 = vmatpush2.msra.mxu0 0.0
    %1376 = vmatprep.subr.mxu0 0.0
    %1377 = vmatpush2.msra.mxu0 0.0
    %1378 = vmatprep.subr.mxu0 0.0
    %1379 = vmatpush2.msra.mxu0 0.0
    %1380 = vmatprep.subr.mxu0 0.0
    %1381 = vmatpush2.msra.mxu0 0.0
    %1382 = vmatprep.subr.mxu0 0.0
    %1383 = vmatpush2.msra.mxu0 0.0
    %1384 = vmatprep.subr.mxu0 0.0
    %1385 = vmatpush2.msra.mxu0 0.0
    %1386 = vmatprep.subr.mxu0 0.0
    %1387 = vmatpush2.msra.mxu0 0.0
    %1388 = vmatprep.mubr.f32.mxu0 0.0
    %1389 = vmatmul.mubr.f32.gmra.mxu0 %v1323
    %v1390 = vpop.f32.mrf.mxu0
    %v1391 = vadd.f32 %v196, %v1390
    %v1392 = vpop.f32.mrf.mxu0
    %1393 = vdwg.mxu0
    %v1394 = vadd.f32 %v1094, %v1391
    %s1395 = scalar_lea.vmem [#allocation13], 24
    %1396 = vst [vmem:[%s1395] sm:$0xff] %v1394
    %s1397 = scalar_lea.vmem [#allocation5], 32
    %v1398 = vld [vmem:[%s1397] sm:$0xff]
    %1399 = vmatprep.subr.mxu0 0.0
    %1400 = vmatpush1.msra.mxu0 %v144
    %1401 = vmatprep.subr.mxu0 0.0
    %1402 = vmatpush1.msra.mxu0 %v143
    %1403 = vmatprep.subr.mxu0 0.0
    %1404 = vmatpush1.msra.mxu0 %v142
    %1405 = vmatprep.subr.mxu0 0.0
    %1406 = vmatpush1.msra.mxu0 %v141
    %1407 = vmatprep.subr.mxu0 0.0
    %1408 = vmatpush1.msra.mxu0 %v140
    %1409 = vmatprep.subr.mxu0 0.0
    %1410 = vmatpush1.msra.mxu0 %v139
    %1411 = vmatprep.subr.mxu0 0.0
    %1412 = vmatpush1.msra.mxu0 %v138
    %1413 = vmatprep.subr.mxu0 0.0
    %1414 = vmatpush1.msra.mxu0 %v137
    %1415 = vmatprep.subr.mxu0 0.0
    %1416 = vmatpush1.msra.mxu0 %v136
    %1417 = vmatprep.subr.mxu0 0.0
    %1418 = vmatpush1.msra.mxu0 %v135
    %1419 = vmatprep.subr.mxu0 0.0
    %1420 = vmatpush1.msra.mxu0 %v134
    %1421 = vmatprep.subr.mxu0 0.0
    %1422 = vmatpush1.msra.mxu0 %v133
    %1423 = vmatprep.subr.mxu0 0.0
    %1424 = vmatpush1.msra.mxu0 %v132
    %1425 = vmatprep.subr.mxu0 0.0
    %1426 = vmatpush1.msra.mxu0 %v131
    %1427 = vmatprep.subr.mxu0 0.0
    %1428 = vmatpush1.msra.mxu0 %v130
    %1429 = vmatprep.subr.mxu0 0.0
    %1430 = vmatpush1.msra.mxu0 %v129
    %1431 = vmatprep.subr.mxu0 0.0
    %1432 = vmatpush2.msra.mxu0 0.0
    %1433 = vmatprep.subr.mxu0 0.0
    %1434 = vmatpush2.msra.mxu0 0.0
    %1435 = vmatprep.subr.mxu0 0.0
    %1436 = vmatpush2.msra.mxu0 0.0
    %1437 = vmatprep.subr.mxu0 0.0
    %1438 = vmatpush2.msra.mxu0 0.0
    %1439 = vmatprep.subr.mxu0 0.0
    %1440 = vmatpush2.msra.mxu0 0.0
    %1441 = vmatprep.subr.mxu0 0.0
    %1442 = vmatpush2.msra.mxu0 0.0
    %1443 = vmatprep.subr.mxu0 0.0
    %1444 = vmatpush2.msra.mxu0 0.0
    %1445 = vmatprep.subr.mxu0 0.0
    %1446 = vmatpush2.msra.mxu0 0.0
    %1447 = vmatprep.subr.mxu0 0.0
    %1448 = vmatpush2.msra.mxu0 0.0
    %1449 = vmatprep.subr.mxu0 0.0
    %1450 = vmatpush2.msra.mxu0 0.0
    %1451 = vmatprep.subr.mxu0 0.0
    %1452 = vmatpush2.msra.mxu0 0.0
    %1453 = vmatprep.subr.mxu0 0.0
    %1454 = vmatpush2.msra.mxu0 0.0
    %1455 = vmatprep.subr.mxu0 0.0
    %1456 = vmatpush2.msra.mxu0 0.0
    %1457 = vmatprep.subr.mxu0 0.0
    %1458 = vmatpush2.msra.mxu0 0.0
    %1459 = vmatprep.subr.mxu0 0.0
    %1460 = vmatpush2.msra.mxu0 0.0
    %1461 = vmatprep.subr.mxu0 0.0
    %1462 = vmatpush2.msra.mxu0 0.0
    %1463 = vmatprep.mubr.f32.mxu0 0.0
    %1464 = vmatmul.mubr.f32.gmra.mxu0 %v1398
    %v1465 = vpop.f32.mrf.mxu0
    %v1466 = vadd.f32 0.0, %v1465
    %v1467 = vpop.f32.mrf.mxu0
    %1468 = vdwg.mxu0
    %1469 = vmatprep.subr.mxu0 0.0
    %1470 = vmatpush1.msra.mxu0 %v128
    %1471 = vmatprep.subr.mxu0 0.0
    %1472 = vmatpush1.msra.mxu0 %v127
    %1473 = vmatprep.subr.mxu0 0.0
    %1474 = vmatpush1.msra.mxu0 %v126
    %1475 = vmatprep.subr.mxu0 0.0
    %1476 = vmatpush1.msra.mxu0 %v125
    %1477 = vmatprep.subr.mxu0 0.0
    %1478 = vmatpush1.msra.mxu0 %v124
    %1479 = vmatprep.subr.mxu0 0.0
    %1480 = vmatpush1.msra.mxu0 %v123
    %1481 = vmatprep.subr.mxu0 0.0
    %1482 = vmatpush1.msra.mxu0 %v122
    %1483 = vmatprep.subr.mxu0 0.0
    %1484 = vmatpush1.msra.mxu0 %v121
    %1485 = vmatprep.subr.mxu0 0.0
    %1486 = vmatpush1.msra.mxu0 %v120
    %1487 = vmatprep.subr.mxu0 0.0
    %1488 = vmatpush1.msra.mxu0 %v119
    %1489 = vmatprep.subr.mxu0 0.0
    %1490 = vmatpush1.msra.mxu0 %v118
    %1491 = vmatprep.subr.mxu0 0.0
    %1492 = vmatpush1.msra.mxu0 %v117
    %1493 = vmatprep.subr.mxu0 0.0
    %1494 = vmatpush1.msra.mxu0 %v116
    %1495 = vmatprep.subr.mxu0 0.0
    %1496 = vmatpush1.msra.mxu0 %v115
    %1497 = vmatprep.subr.mxu0 0.0
    %1498 = vmatpush1.msra.mxu0 %v114
    %1499 = vmatprep.subr.mxu0 0.0
    %1500 = vmatpush1.msra.mxu0 %v113
    %1501 = vmatprep.subr.mxu0 0.0
    %1502 = vmatpush2.msra.mxu0 0.0
    %1503 = vmatprep.subr.mxu0 0.0
    %1504 = vmatpush2.msra.mxu0 0.0
    %1505 = vmatprep.subr.mxu0 0.0
    %1506 = vmatpush2.msra.mxu0 0.0
    %1507 = vmatprep.subr.mxu0 0.0
    %1508 = vmatpush2.msra.mxu0 0.0
    %1509 = vmatprep.subr.mxu0 0.0
    %1510 = vmatpush2.msra.mxu0 0.0
    %1511 = vmatprep.subr.mxu0 0.0
    %1512 = vmatpush2.msra.mxu0 0.0
    %1513 = vmatprep.subr.mxu0 0.0
    %1514 = vmatpush2.msra.mxu0 0.0
    %1515 = vmatprep.subr.mxu0 0.0
    %1516 = vmatpush2.msra.mxu0 0.0
    %1517 = vmatprep.subr.mxu0 0.0
    %1518 = vmatpush2.msra.mxu0 0.0
    %1519 = vmatprep.subr.mxu0 0.0
    %1520 = vmatpush2.msra.mxu0 0.0
    %1521 = vmatprep.subr.mxu0 0.0
    %1522 = vmatpush2.msra.mxu0 0.0
    %1523 = vmatprep.subr.mxu0 0.0
    %1524 = vmatpush2.msra.mxu0 0.0
    %1525 = vmatprep.subr.mxu0 0.0
    %1526 = vmatpush2.msra.mxu0 0.0
    %1527 = vmatprep.subr.mxu0 0.0
    %1528 = vmatpush2.msra.mxu0 0.0
    %1529 = vmatprep.subr.mxu0 0.0
    %1530 = vmatpush2.msra.mxu0 0.0
    %1531 = vmatprep.subr.mxu0 0.0
    %1532 = vmatpush2.msra.mxu0 0.0
    %1533 = vmatprep.mubr.f32.mxu0 0.0
    %1534 = vmatmul.mubr.f32.gmra.mxu0 %v1394
    %v1535 = vpop.f32.mrf.mxu0
    %v1536 = vadd.f32 %v1466, %v1535
    %v1537 = vpop.f32.mrf.mxu0
    %1538 = vdwg.mxu0
    %v1539 = vadd.f32 %v1536, %v182
    %v1540 = vxor.u32 %v1539, 2147483648
    %v1541 = vmul.f32 %v1540, 1.442695
    %v1542 = vpow.pop %v1541
    %v1543 = vadd.f32 %v1542, 1.0
    %v1544 = vrcp.pop %v1543
    %v1545 = vmul.f32 1.0, %v1544
    %v1546 = vmul.f32 %v1539, %v1545
    %1547 = vmatprep.subr.mxu0 0.0
    %1548 = vmatpush1.msra.mxu0 %v160
    %1549 = vmatprep.subr.mxu0 0.0
    %1550 = vmatpush1.msra.mxu0 %v159
    %1551 = vmatprep.subr.mxu0 0.0
    %1552 = vmatpush1.msra.mxu0 %v158
    %1553 = vmatprep.subr.mxu0 0.0
    %1554 = vmatpush1.msra.mxu0 %v157
    %1555 = vmatprep.subr.mxu0 0.0
    %1556 = vmatpush1.msra.mxu0 %v156
    %1557 = vmatprep.subr.mxu0 0.0
    %1558 = vmatpush1.msra.mxu0 %v155
    %1559 = vmatprep.subr.mxu0 0.0
    %1560 = vmatpush1.msra.mxu0 %v154
    %1561 = vmatprep.subr.mxu0 0.0
    %1562 = vmatpush1.msra.mxu0 %v153
    %1563 = vmatprep.subr.mxu0 0.0
    %1564 = vmatpush1.msra.mxu0 %v152
    %1565 = vmatprep.subr.mxu0 0.0
    %1566 = vmatpush1.msra.mxu0 %v151
    %1567 = vmatprep.subr.mxu0 0.0
    %1568 = vmatpush1.msra.mxu0 %v150
    %1569 = vmatprep.subr.mxu0 0.0
    %1570 = vmatpush1.msra.mxu0 %v149
    %1571 = vmatprep.subr.mxu0 0.0
    %1572 = vmatpush1.msra.mxu0 %v148
    %1573 = vmatprep.subr.mxu0 0.0
    %1574 = vmatpush1.msra.mxu0 %v147
    %1575 = vmatprep.subr.mxu0 0.0
    %1576 = vmatpush1.msra.mxu0 %v146
    %1577 = vmatprep.subr.mxu0 0.0
    %1578 = vmatpush1.msra.mxu0 %v145
    %1579 = vmatprep.subr.mxu0 0.0
    %1580 = vmatpush2.msra.mxu0 0.0
    %1581 = vmatprep.subr.mxu0 0.0
    %1582 = vmatpush2.msra.mxu0 0.0
    %1583 = vmatprep.subr.mxu0 0.0
    %1584 = vmatpush2.msra.mxu0 0.0
    %1585 = vmatprep.subr.mxu0 0.0
    %1586 = vmatpush2.msra.mxu0 0.0
    %1587 = vmatprep.subr.mxu0 0.0
    %1588 = vmatpush2.msra.mxu0 0.0
    %1589 = vmatprep.subr.mxu0 0.0
    %1590 = vmatpush2.msra.mxu0 0.0
    %1591 = vmatprep.subr.mxu0 0.0
    %1592 = vmatpush2.msra.mxu0 0.0
    %1593 = vmatprep.subr.mxu0 0.0
    %1594 = vmatpush2.msra.mxu0 0.0
    %1595 = vmatprep.subr.mxu0 0.0
    %1596 = vmatpush2.msra.mxu0 0.0
    %1597 = vmatprep.subr.mxu0 0.0
    %1598 = vmatpush2.msra.mxu0 0.0
    %1599 = vmatprep.subr.mxu0 0.0
    %1600 = vmatpush2.msra.mxu0 0.0
    %1601 = vmatprep.subr.mxu0 0.0
    %1602 = vmatpush2.msra.mxu0 0.0
    %1603 = vmatprep.subr.mxu0 0.0
    %1604 = vmatpush2.msra.mxu0 0.0
    %1605 = vmatprep.subr.mxu0 0.0
    %1606 = vmatpush2.msra.mxu0 0.0
    %1607 = vmatprep.subr.mxu0 0.0
    %1608 = vmatpush2.msra.mxu0 0.0
    %1609 = vmatprep.subr.mxu0 0.0
    %1610 = vmatpush2.msra.mxu0 0.0
    %1611 = vmatprep.mubr.f32.mxu0 0.0
    %1612 = vmatmul.mubr.f32.gmra.mxu0 %v1546
    %v1613 = vpop.f32.mrf.mxu0
    %v1614 = vadd.f32 %v189, %v1613
    %v1615 = vpop.f32.mrf.mxu0
    %1616 = vdwg.mxu0
    %v1617 = vxor.u32 %v1614, 2147483648
    %v1618 = vmul.f32 %v1617, 1.442695
    %v1619 = vpow.pop %v1618
    %v1620 = vadd.f32 %v1619, 1.0
    %v1621 = vrcp.pop %v1620
    %v1622 = vmul.f32 1.0, %v1621
    %v1623 = vmul.f32 %v1614, %v1622
    %1624 = vmatprep.subr.mxu0 0.0
    %1625 = vmatpush1.msra.mxu0 %v176
    %1626 = vmatprep.subr.mxu0 0.0
    %1627 = vmatpush1.msra.mxu0 %v175
    %1628 = vmatprep.subr.mxu0 0.0
    %1629 = vmatpush1.msra.mxu0 %v174
    %1630 = vmatprep.subr.mxu0 0.0
    %1631 = vmatpush1.msra.mxu0 %v173
    %1632 = vmatprep.subr.mxu0 0.0
    %1633 = vmatpush1.msra.mxu0 %v172
    %1634 = vmatprep.subr.mxu0 0.0
    %1635 = vmatpush1.msra.mxu0 %v171
    %1636 = vmatprep.subr.mxu0 0.0
    %1637 = vmatpush1.msra.mxu0 %v170
    %1638 = vmatprep.subr.mxu0 0.0
    %1639 = vmatpush1.msra.mxu0 %v169
    %1640 = vmatprep.subr.mxu0 0.0
    %1641 = vmatpush1.msra.mxu0 %v168
    %1642 = vmatprep.subr.mxu0 0.0
    %1643 = vmatpush1.msra.mxu0 %v167
    %1644 = vmatprep.subr.mxu0 0.0
    %1645 = vmatpush1.msra.mxu0 %v166
    %1646 = vmatprep.subr.mxu0 0.0
    %1647 = vmatpush1.msra.mxu0 %v165
    %1648 = vmatprep.subr.mxu0 0.0
    %1649 = vmatpush1.msra.mxu0 %v164
    %1650 = vmatprep.subr.mxu0 0.0
    %1651 = vmatpush1.msra.mxu0 %v163
    %1652 = vmatprep.subr.mxu0 0.0
    %1653 = vmatpush1.msra.mxu0 %v162
    %1654 = vmatprep.subr.mxu0 0.0
    %1655 = vmatpush1.msra.mxu0 %v161
    %1656 = vmatprep.subr.mxu0 0.0
    %1657 = vmatpush2.msra.mxu0 0.0
    %1658 = vmatprep.subr.mxu0 0.0
    %1659 = vmatpush2.msra.mxu0 0.0
    %1660 = vmatprep.subr.mxu0 0.0
    %1661 = vmatpush2.msra.mxu0 0.0
    %1662 = vmatprep.subr.mxu0 0.0
    %1663 = vmatpush2.msra.mxu0 0.0
    %1664 = vmatprep.subr.mxu0 0.0
    %1665 = vmatpush2.msra.mxu0 0.0
    %1666 = vmatprep.subr.mxu0 0.0
    %1667 = vmatpush2.msra.mxu0 0.0
    %1668 = vmatprep.subr.mxu0 0.0
    %1669 = vmatpush2.msra.mxu0 0.0
    %1670 = vmatprep.subr.mxu0 0.0
    %1671 = vmatpush2.msra.mxu0 0.0
    %1672 = vmatprep.subr.mxu0 0.0
    %1673 = vmatpush2.msra.mxu0 0.0
    %1674 = vmatprep.subr.mxu0 0.0
    %1675 = vmatpush2.msra.mxu0 0.0
    %1676 = vmatprep.subr.mxu0 0.0
    %1677 = vmatpush2.msra.mxu0 0.0
    %1678 = vmatprep.subr.mxu0 0.0
    %1679 = vmatpush2.msra.mxu0 0.0
    %1680 = vmatprep.subr.mxu0 0.0
    %1681 = vmatpush2.msra.mxu0 0.0
    %1682 = vmatprep.subr.mxu0 0.0
    %1683 = vmatpush2.msra.mxu0 0.0
    %1684 = vmatprep.subr.mxu0 0.0
    %1685 = vmatpush2.msra.mxu0 0.0
    %1686 = vmatprep.subr.mxu0 0.0
    %1687 = vmatpush2.msra.mxu0 0.0
    %1688 = vmatprep.mubr.f32.mxu0 0.0
    %1689 = vmatmul.mubr.f32.gmra.mxu0 %v1623
    %v1690 = vpop.f32.mrf.mxu0
    %v1691 = vadd.f32 %v196, %v1690
    %v1692 = vpop.f32.mrf.mxu0
    %1693 = vdwg.mxu0
    %v1694 = vadd.f32 %v1394, %v1691
    %s1695 = scalar_lea.vmem [#allocation13], 32
    %1696 = vst [vmem:[%s1695] sm:$0xff] %v1694
    %s1697 = scalar_lea.vmem [#allocation5], 40
    %v1698 = vld [vmem:[%s1697] sm:$0xff]
    %1699 = vmatprep.subr.mxu0 0.0
    %1700 = vmatpush1.msra.mxu0 %v144
    %1701 = vmatprep.subr.mxu0 0.0
    %1702 = vmatpush1.msra.mxu0 %v143
    %1703 = vmatprep.subr.mxu0 0.0
    %1704 = vmatpush1.msra.mxu0 %v142
    %1705 = vmatprep.subr.mxu0 0.0
    %1706 = vmatpush1.msra.mxu0 %v141
    %1707 = vmatprep.subr.mxu0 0.0
    %1708 = vmatpush1.msra.mxu0 %v140
    %1709 = vmatprep.subr.mxu0 0.0
    %1710 = vmatpush1.msra.mxu0 %v139
    %1711 = vmatprep.subr.mxu0 0.0
    %1712 = vmatpush1.msra.mxu0 %v138
    %1713 = vmatprep.subr.mxu0 0.0
    %1714 = vmatpush1.msra.mxu0 %v137
    %1715 = vmatprep.subr.mxu0 0.0
    %1716 = vmatpush1.msra.mxu0 %v136
    %1717 = vmatprep.subr.mxu0 0.0
    %1718 = vmatpush1.msra.mxu0 %v135
    %1719 = vmatprep.subr.mxu0 0.0
    %1720 = vmatpush1.msra.mxu0 %v134
    %1721 = vmatprep.subr.mxu0 0.0
    %1722 = vmatpush1.msra.mxu0 %v133
    %1723 = vmatprep.subr.mxu0 0.0
    %1724 = vmatpush1.msra.mxu0 %v132
    %1725 = vmatprep.subr.mxu0 0.0
    %1726 = vmatpush1.msra.mxu0 %v131
    %1727 = vmatprep.subr.mxu0 0.0
    %1728 = vmatpush1.msra.mxu0 %v130
    %1729 = vmatprep.subr.mxu0 0.0
    %1730 = vmatpush1.msra.mxu0 %v129
    %1731 = vmatprep.subr.mxu0 0.0
    %1732 = vmatpush2.msra.mxu0 0.0
    %1733 = vmatprep.subr.mxu0 0.0
    %1734 = vmatpush2.msra.mxu0 0.0
    %1735 = vmatprep.subr.mxu0 0.0
    %1736 = vmatpush2.msra.mxu0 0.0
    %1737 = vmatprep.subr.mxu0 0.0
    %1738 = vmatpush2.msra.mxu0 0.0
    %1739 = vmatprep.subr.mxu0 0.0
    %1740 = vmatpush2.msra.mxu0 0.0
    %1741 = vmatprep.subr.mxu0 0.0
    %1742 = vmatpush2.msra.mxu0 0.0
    %1743 = vmatprep.subr.mxu0 0.0
    %1744 = vmatpush2.msra.mxu0 0.0
    %1745 = vmatprep.subr.mxu0 0.0
    %1746 = vmatpush2.msra.mxu0 0.0
    %1747 = vmatprep.subr.mxu0 0.0
    %1748 = vmatpush2.msra.mxu0 0.0
    %1749 = vmatprep.subr.mxu0 0.0
    %1750 = vmatpush2.msra.mxu0 0.0
    %1751 = vmatprep.subr.mxu0 0.0
    %1752 = vmatpush2.msra.mxu0 0.0
    %1753 = vmatprep.subr.mxu0 0.0
    %1754 = vmatpush2.msra.mxu0 0.0
    %1755 = vmatprep.subr.mxu0 0.0
    %1756 = vmatpush2.msra.mxu0 0.0
    %1757 = vmatprep.subr.mxu0 0.0
    %1758 = vmatpush2.msra.mxu0 0.0
    %1759 = vmatprep.subr.mxu0 0.0
    %1760 = vmatpush2.msra.mxu0 0.0
    %1761 = vmatprep.subr.mxu0 0.0
    %1762 = vmatpush2.msra.mxu0 0.0
    %1763 = vmatprep.mubr.f32.mxu0 0.0
    %1764 = vmatmul.mubr.f32.gmra.mxu0 %v1698
    %v1765 = vpop.f32.mrf.mxu0
    %v1766 = vadd.f32 0.0, %v1765
    %v1767 = vpop.f32.mrf.mxu0
    %1768 = vdwg.mxu0
    %1769 = vmatprep.subr.mxu0 0.0
    %1770 = vmatpush1.msra.mxu0 %v128
    %1771 = vmatprep.subr.mxu0 0.0
    %1772 = vmatpush1.msra.mxu0 %v127
    %1773 = vmatprep.subr.mxu0 0.0
    %1774 = vmatpush1.msra.mxu0 %v126
    %1775 = vmatprep.subr.mxu0 0.0
    %1776 = vmatpush1.msra.mxu0 %v125
    %1777 = vmatprep.subr.mxu0 0.0
    %1778 = vmatpush1.msra.mxu0 %v124
    %1779 = vmatprep.subr.mxu0 0.0
    %1780 = vmatpush1.msra.mxu0 %v123
    %1781 = vmatprep.subr.mxu0 0.0
    %1782 = vmatpush1.msra.mxu0 %v122
    %1783 = vmatprep.subr.mxu0 0.0
    %1784 = vmatpush1.msra.mxu0 %v121
    %1785 = vmatprep.subr.mxu0 0.0
    %1786 = vmatpush1.msra.mxu0 %v120
    %1787 = vmatprep.subr.mxu0 0.0
    %1788 = vmatpush1.msra.mxu0 %v119
    %1789 = vmatprep.subr.mxu0 0.0
    %1790 = vmatpush1.msra.mxu0 %v118
    %1791 = vmatprep.subr.mxu0 0.0
    %1792 = vmatpush1.msra.mxu0 %v117
    %1793 = vmatprep.subr.mxu0 0.0
    %1794 = vmatpush1.msra.mxu0 %v116
    %1795 = vmatprep.subr.mxu0 0.0
    %1796 = vmatpush1.msra.mxu0 %v115
    %1797 = vmatprep.subr.mxu0 0.0
    %1798 = vmatpush1.msra.mxu0 %v114
    %1799 = vmatprep.subr.mxu0 0.0
    %1800 = vmatpush1.msra.mxu0 %v113
    %1801 = vmatprep.subr.mxu0 0.0
    %1802 = vmatpush2.msra.mxu0 0.0
    %1803 = vmatprep.subr.mxu0 0.0
    %1804 = vmatpush2.msra.mxu0 0.0
    %1805 = vmatprep.subr.mxu0 0.0
    %1806 = vmatpush2.msra.mxu0 0.0
    %1807 = vmatprep.subr.mxu0 0.0
    %1808 = vmatpush2.msra.mxu0 0.0
    %1809 = vmatprep.subr.mxu0 0.0
    %1810 = vmatpush2.msra.mxu0 0.0
    %1811 = vmatprep.subr.mxu0 0.0
    %1812 = vmatpush2.msra.mxu0 0.0
    %1813 = vmatprep.subr.mxu0 0.0
    %1814 = vmatpush2.msra.mxu0 0.0
    %1815 = vmatprep.subr.mxu0 0.0
    %1816 = vmatpush2.msra.mxu0 0.0
    %1817 = vmatprep.subr.mxu0 0.0
    %1818 = vmatpush2.msra.mxu0 0.0
    %1819 = vmatprep.subr.mxu0 0.0
    %1820 = vmatpush2.msra.mxu0 0.0
    %1821 = vmatprep.subr.mxu0 0.0
    %1822 = vmatpush2.msra.mxu0 0.0
    %1823 = vmatprep.subr.mxu0 0.0
    %1824 = vmatpush2.msra.mxu0 0.0
    %1825 = vmatprep.subr.mxu0 0.0
    %1826 = vmatpush2.msra.mxu0 0.0
    %1827 = vmatprep.subr.mxu0 0.0
    %1828 = vmatpush2.msra.mxu0 0.0
    %1829 = vmatprep.subr.mxu0 0.0
    %1830 = vmatpush2.msra.mxu0 0.0
    %1831 = vmatprep.subr.mxu0 0.0
    %1832 = vmatpush2.msra.mxu0 0.0
    %1833 = vmatprep.mubr.f32.mxu0 0.0
    %1834 = vmatmul.mubr.f32.gmra.mxu0 %v1694
    %v1835 = vpop.f32.mrf.mxu0
    %v1836 = vadd.f32 %v1766, %v1835
    %v1837 = vpop.f32.mrf.mxu0
    %1838 = vdwg.mxu0
    %v1839 = vadd.f32 %v1836, %v182
    %v1840 = vxor.u32 %v1839, 2147483648
    %v1841 = vmul.f32 %v1840, 1.442695
    %v1842 = vpow.pop %v1841
    %v1843 = vadd.f32 %v1842, 1.0
    %v1844 = vrcp.pop %v1843
    %v1845 = vmul.f32 1.0, %v1844
    %v1846 = vmul.f32 %v1839, %v1845
    %1847 = vmatprep.subr.mxu0 0.0
    %1848 = vmatpush1.msra.mxu0 %v160
    %1849 = vmatprep.subr.mxu0 0.0
    %1850 = vmatpush1.msra.mxu0 %v159
    %1851 = vmatprep.subr.mxu0 0.0
    %1852 = vmatpush1.msra.mxu0 %v158
    %1853 = vmatprep.subr.mxu0 0.0
    %1854 = vmatpush1.msra.mxu0 %v157
    %1855 = vmatprep.subr.mxu0 0.0
    %1856 = vmatpush1.msra.mxu0 %v156
    %1857 = vmatprep.subr.mxu0 0.0
    %1858 = vmatpush1.msra.mxu0 %v155
    %1859 = vmatprep.subr.mxu0 0.0
    %1860 = vmatpush1.msra.mxu0 %v154
    %1861 = vmatprep.subr.mxu0 0.0
    %1862 = vmatpush1.msra.mxu0 %v153
    %1863 = vmatprep.subr.mxu0 0.0
    %1864 = vmatpush1.msra.mxu0 %v152
    %1865 = vmatprep.subr.mxu0 0.0
    %1866 = vmatpush1.msra.mxu0 %v151
    %1867 = vmatprep.subr.mxu0 0.0
    %1868 = vmatpush1.msra.mxu0 %v150
    %1869 = vmatprep.subr.mxu0 0.0
    %1870 = vmatpush1.msra.mxu0 %v149
    %1871 = vmatprep.subr.mxu0 0.0
    %1872 = vmatpush1.msra.mxu0 %v148
    %1873 = vmatprep.subr.mxu0 0.0
    %1874 = vmatpush1.msra.mxu0 %v147
    %1875 = vmatprep.subr.mxu0 0.0
    %1876 = vmatpush1.msra.mxu0 %v146
    %1877 = vmatprep.subr.mxu0 0.0
    %1878 = vmatpush1.msra.mxu0 %v145
    %1879 = vmatprep.subr.mxu0 0.0
    %1880 = vmatpush2.msra.mxu0 0.0
    %1881 = vmatprep.subr.mxu0 0.0
    %1882 = vmatpush2.msra.mxu0 0.0
    %1883 = vmatprep.subr.mxu0 0.0
    %1884 = vmatpush2.msra.mxu0 0.0
    %1885 = vmatprep.subr.mxu0 0.0
    %1886 = vmatpush2.msra.mxu0 0.0
    %1887 = vmatprep.subr.mxu0 0.0
    %1888 = vmatpush2.msra.mxu0 0.0
    %1889 = vmatprep.subr.mxu0 0.0
    %1890 = vmatpush2.msra.mxu0 0.0
    %1891 = vmatprep.subr.mxu0 0.0
    %1892 = vmatpush2.msra.mxu0 0.0
    %1893 = vmatprep.subr.mxu0 0.0
    %1894 = vmatpush2.msra.mxu0 0.0
    %1895 = vmatprep.subr.mxu0 0.0
    %1896 = vmatpush2.msra.mxu0 0.0
    %1897 = vmatprep.subr.mxu0 0.0
    %1898 = vmatpush2.msra.mxu0 0.0
    %1899 = vmatprep.subr.mxu0 0.0
    %1900 = vmatpush2.msra.mxu0 0.0
    %1901 = vmatprep.subr.mxu0 0.0
    %1902 = vmatpush2.msra.mxu0 0.0
    %1903 = vmatprep.subr.mxu0 0.0
    %1904 = vmatpush2.msra.mxu0 0.0
    %1905 = vmatprep.subr.mxu0 0.0
    %1906 = vmatpush2.msra.mxu0 0.0
    %1907 = vmatprep.subr.mxu0 0.0
    %1908 = vmatpush2.msra.mxu0 0.0
    %1909 = vmatprep.subr.mxu0 0.0
    %1910 = vmatpush2.msra.mxu0 0.0
    %1911 = vmatprep.mubr.f32.mxu0 0.0
    %1912 = vmatmul.mubr.f32.gmra.mxu0 %v1846
    %v1913 = vpop.f32.mrf.mxu0
    %v1914 = vadd.f32 %v189, %v1913
    %v1915 = vpop.f32.mrf.mxu0
    %1916 = vdwg.mxu0
    %v1917 = vxor.u32 %v1914, 2147483648
    %v1918 = vmul.f32 %v1917, 1.442695
    %v1919 = vpow.pop %v1918
    %v1920 = vadd.f32 %v1919, 1.0
    %v1921 = vrcp.pop %v1920
    %v1922 = vmul.f32 1.0, %v1921
    %v1923 = vmul.f32 %v1914, %v1922
    %1924 = vmatprep.subr.mxu0 0.0
    %1925 = vmatpush1.msra.mxu0 %v176
    %1926 = vmatprep.subr.mxu0 0.0
    %1927 = vmatpush1.msra.mxu0 %v175
    %1928 = vmatprep.subr.mxu0 0.0
    %1929 = vmatpush1.msra.mxu0 %v174
    %1930 = vmatprep.subr.mxu0 0.0
    %1931 = vmatpush1.msra.mxu0 %v173
    %1932 = vmatprep.subr.mxu0 0.0
    %1933 = vmatpush1.msra.mxu0 %v172
    %1934 = vmatprep.subr.mxu0 0.0
    %1935 = vmatpush1.msra.mxu0 %v171
    %1936 = vmatprep.subr.mxu0 0.0
    %1937 = vmatpush1.msra.mxu0 %v170
    %1938 = vmatprep.subr.mxu0 0.0
    %1939 = vmatpush1.msra.mxu0 %v169
    %1940 = vmatprep.subr.mxu0 0.0
    %1941 = vmatpush1.msra.mxu0 %v168
    %1942 = vmatprep.subr.mxu0 0.0
    %1943 = vmatpush1.msra.mxu0 %v167
    %1944 = vmatprep.subr.mxu0 0.0
    %1945 = vmatpush1.msra.mxu0 %v166
    %1946 = vmatprep.subr.mxu0 0.0
    %1947 = vmatpush1.msra.mxu0 %v165
    %1948 = vmatprep.subr.mxu0 0.0
    %1949 = vmatpush1.msra.mxu0 %v164
    %1950 = vmatprep.subr.mxu0 0.0
    %1951 = vmatpush1.msra.mxu0 %v163
    %1952 = vmatprep.subr.mxu0 0.0
    %1953 = vmatpush1.msra.mxu0 %v162
    %1954 = vmatprep.subr.mxu0 0.0
    %1955 = vmatpush1.msra.mxu0 %v161
    %1956 = vmatprep.subr.mxu0 0.0
    %1957 = vmatpush2.msra.mxu0 0.0
    %1958 = vmatprep.subr.mxu0 0.0
    %1959 = vmatpush2.msra.mxu0 0.0
    %1960 = vmatprep.subr.mxu0 0.0
    %1961 = vmatpush2.msra.mxu0 0.0
    %1962 = vmatprep.subr.mxu0 0.0
    %1963 = vmatpush2.msra.mxu0 0.0
    %1964 = vmatprep.subr.mxu0 0.0
    %1965 = vmatpush2.msra.mxu0 0.0
    %1966 = vmatprep.subr.mxu0 0.0
    %1967 = vmatpush2.msra.mxu0 0.0
    %1968 = vmatprep.subr.mxu0 0.0
    %1969 = vmatpush2.msra.mxu0 0.0
    %1970 = vmatprep.subr.mxu0 0.0
    %1971 = vmatpush2.msra.mxu0 0.0
    %1972 = vmatprep.subr.mxu0 0.0
    %1973 = vmatpush2.msra.mxu0 0.0
    %1974 = vmatprep.subr.mxu0 0.0
    %1975 = vmatpush2.msra.mxu0 0.0
    %1976 = vmatprep.subr.mxu0 0.0
    %1977 = vmatpush2.msra.mxu0 0.0
    %1978 = vmatprep.subr.mxu0 0.0
    %1979 = vmatpush2.msra.mxu0 0.0
    %1980 = vmatprep.subr.mxu0 0.0
    %1981 = vmatpush2.msra.mxu0 0.0
    %1982 = vmatprep.subr.mxu0 0.0
    %1983 = vmatpush2.msra.mxu0 0.0
    %1984 = vmatprep.subr.mxu0 0.0
    %1985 = vmatpush2.msra.mxu0 0.0
    %1986 = vmatprep.subr.mxu0 0.0
    %1987 = vmatpush2.msra.mxu0 0.0
    %1988 = vmatprep.mubr.f32.mxu0 0.0
    %1989 = vmatmul.mubr.f32.gmra.mxu0 %v1923
    %v1990 = vpop.f32.mrf.mxu0
    %v1991 = vadd.f32 %v196, %v1990
    %v1992 = vpop.f32.mrf.mxu0
    %1993 = vdwg.mxu0
    %v1994 = vadd.f32 %v1694, %v1991
    %s1995 = scalar_lea.vmem [#allocation13], 40
    %1996 = vst [vmem:[%s1995] sm:$0xff] %v1994
    %s1997 = scalar_lea.vmem [#allocation5], 48
    %v1998 = vld [vmem:[%s1997] sm:$0xff]
    %1999 = vmatprep.subr.mxu0 0.0
    %2000 = vmatpush1.msra.mxu0 %v144
    %2001 = vmatprep.subr.mxu0 0.0
    %2002 = vmatpush1.msra.mxu0 %v143
    %2003 = vmatprep.subr.mxu0 0.0
    %2004 = vmatpush1.msra.mxu0 %v142
    %2005 = vmatprep.subr.mxu0 0.0
    %2006 = vmatpush1.msra.mxu0 %v141
    %2007 = vmatprep.subr.mxu0 0.0
    %2008 = vmatpush1.msra.mxu0 %v140
    %2009 = vmatprep.subr.mxu0 0.0
    %2010 = vmatpush1.msra.mxu0 %v139
    %2011 = vmatprep.subr.mxu0 0.0
    %2012 = vmatpush1.msra.mxu0 %v138
    %2013 = vmatprep.subr.mxu0 0.0
    %2014 = vmatpush1.msra.mxu0 %v137
    %2015 = vmatprep.subr.mxu0 0.0
    %2016 = vmatpush1.msra.mxu0 %v136
    %2017 = vmatprep.subr.mxu0 0.0
    %2018 = vmatpush1.msra.mxu0 %v135
    %2019 = vmatprep.subr.mxu0 0.0
    %2020 = vmatpush1.msra.mxu0 %v134
    %2021 = vmatprep.subr.mxu0 0.0
    %2022 = vmatpush1.msra.mxu0 %v133
    %2023 = vmatprep.subr.mxu0 0.0
    %2024 = vmatpush1.msra.mxu0 %v132
    %2025 = vmatprep.subr.mxu0 0.0
    %2026 = vmatpush1.msra.mxu0 %v131
    %2027 = vmatprep.subr.mxu0 0.0
    %2028 = vmatpush1.msra.mxu0 %v130
    %2029 = vmatprep.subr.mxu0 0.0
    %2030 = vmatpush1.msra.mxu0 %v129
    %2031 = vmatprep.subr.mxu0 0.0
    %2032 = vmatpush2.msra.mxu0 0.0
    %2033 = vmatprep.subr.mxu0 0.0
    %2034 = vmatpush2.msra.mxu0 0.0
    %2035 = vmatprep.subr.mxu0 0.0
    %2036 = vmatpush2.msra.mxu0 0.0
    %2037 = vmatprep.subr.mxu0 0.0
    %2038 = vmatpush2.msra.mxu0 0.0
    %2039 = vmatprep.subr.mxu0 0.0
    %2040 = vmatpush2.msra.mxu0 0.0
    %2041 = vmatprep.subr.mxu0 0.0
    %2042 = vmatpush2.msra.mxu0 0.0
    %2043 = vmatprep.subr.mxu0 0.0
    %2044 = vmatpush2.msra.mxu0 0.0
    %2045 = vmatprep.subr.mxu0 0.0
    %2046 = vmatpush2.msra.mxu0 0.0
    %2047 = vmatprep.subr.mxu0 0.0
    %2048 = vmatpush2.msra.mxu0 0.0
    %2049 = vmatprep.subr.mxu0 0.0
    %2050 = vmatpush2.msra.mxu0 0.0
    %2051 = vmatprep.subr.mxu0 0.0
    %2052 = vmatpush2.msra.mxu0 0.0
    %2053 = vmatprep.subr.mxu0 0.0
    %2054 = vmatpush2.msra.mxu0 0.0
    %2055 = vmatprep.subr.mxu0 0.0
    %2056 = vmatpush2.msra.mxu0 0.0
    %2057 = vmatprep.subr.mxu0 0.0
    %2058 = vmatpush2.msra.mxu0 0.0
    %2059 = vmatprep.subr.mxu0 0.0
    %2060 = vmatpush2.msra.mxu0 0.0
    %2061 = vmatprep.subr.mxu0 0.0
    %2062 = vmatpush2.msra.mxu0 0.0
    %2063 = vmatprep.mubr.f32.mxu0 0.0
    %2064 = vmatmul.mubr.f32.gmra.mxu0 %v1998
    %v2065 = vpop.f32.mrf.mxu0
    %v2066 = vadd.f32 0.0, %v2065
    %v2067 = vpop.f32.mrf.mxu0
    %2068 = vdwg.mxu0
    %2069 = vmatprep.subr.mxu0 0.0
    %2070 = vmatpush1.msra.mxu0 %v128
    %2071 = vmatprep.subr.mxu0 0.0
    %2072 = vmatpush1.msra.mxu0 %v127
    %2073 = vmatprep.subr.mxu0 0.0
    %2074 = vmatpush1.msra.mxu0 %v126
    %2075 = vmatprep.subr.mxu0 0.0
    %2076 = vmatpush1.msra.mxu0 %v125
    %2077 = vmatprep.subr.mxu0 0.0
    %2078 = vmatpush1.msra.mxu0 %v124
    %2079 = vmatprep.subr.mxu0 0.0
    %2080 = vmatpush1.msra.mxu0 %v123
    %2081 = vmatprep.subr.mxu0 0.0
    %2082 = vmatpush1.msra.mxu0 %v122
    %2083 = vmatprep.subr.mxu0 0.0
    %2084 = vmatpush1.msra.mxu0 %v121
    %2085 = vmatprep.subr.mxu0 0.0
    %2086 = vmatpush1.msra.mxu0 %v120
    %2087 = vmatprep.subr.mxu0 0.0
    %2088 = vmatpush1.msra.mxu0 %v119
    %2089 = vmatprep.subr.mxu0 0.0
    %2090 = vmatpush1.msra.mxu0 %v118
    %2091 = vmatprep.subr.mxu0 0.0
    %2092 = vmatpush1.msra.mxu0 %v117
    %2093 = vmatprep.subr.mxu0 0.0
    %2094 = vmatpush1.msra.mxu0 %v116
    %2095 = vmatprep.subr.mxu0 0.0
    %2096 = vmatpush1.msra.mxu0 %v115
    %2097 = vmatprep.subr.mxu0 0.0
    %2098 = vmatpush1.msra.mxu0 %v114
    %2099 = vmatprep.subr.mxu0 0.0
    %2100 = vmatpush1.msra.mxu0 %v113
    %2101 = vmatprep.subr.mxu0 0.0
    %2102 = vmatpush2.msra.mxu0 0.0
    %2103 = vmatprep.subr.mxu0 0.0
    %2104 = vmatpush2.msra.mxu0 0.0
    %2105 = vmatprep.subr.mxu0 0.0
    %2106 = vmatpush2.msra.mxu0 0.0
    %2107 = vmatprep.subr.mxu0 0.0
    %2108 = vmatpush2.msra.mxu0 0.0
    %2109 = vmatprep.subr.mxu0 0.0
    %2110 = vmatpush2.msra.mxu0 0.0
    %2111 = vmatprep.subr.mxu0 0.0
    %2112 = vmatpush2.msra.mxu0 0.0
    %2113 = vmatprep.subr.mxu0 0.0
    %2114 = vmatpush2.msra.mxu0 0.0
    %2115 = vmatprep.subr.mxu0 0.0
    %2116 = vmatpush2.msra.mxu0 0.0
    %2117 = vmatprep.subr.mxu0 0.0
    %2118 = vmatpush2.msra.mxu0 0.0
    %2119 = vmatprep.subr.mxu0 0.0
    %2120 = vmatpush2.msra.mxu0 0.0
    %2121 = vmatprep.subr.mxu0 0.0
    %2122 = vmatpush2.msra.mxu0 0.0
    %2123 = vmatprep.subr.mxu0 0.0
    %2124 = vmatpush2.msra.mxu0 0.0
    %2125 = vmatprep.subr.mxu0 0.0
    %2126 = vmatpush2.msra.mxu0 0.0
    %2127 = vmatprep.subr.mxu0 0.0
    %2128 = vmatpush2.msra.mxu0 0.0
    %2129 = vmatprep.subr.mxu0 0.0
    %2130 = vmatpush2.msra.mxu0 0.0
    %2131 = vmatprep.subr.mxu0 0.0
    %2132 = vmatpush2.msra.mxu0 0.0
    %2133 = vmatprep.mubr.f32.mxu0 0.0
    %2134 = vmatmul.mubr.f32.gmra.mxu0 %v1994
    %v2135 = vpop.f32.mrf.mxu0
    %v2136 = vadd.f32 %v2066, %v2135
    %v2137 = vpop.f32.mrf.mxu0
    %2138 = vdwg.mxu0
    %v2139 = vadd.f32 %v2136, %v182
    %v2140 = vxor.u32 %v2139, 2147483648
    %v2141 = vmul.f32 %v2140, 1.442695
    %v2142 = vpow.pop %v2141
    %v2143 = vadd.f32 %v2142, 1.0
    %v2144 = vrcp.pop %v2143
    %v2145 = vmul.f32 1.0, %v2144
    %v2146 = vmul.f32 %v2139, %v2145
    %2147 = vmatprep.subr.mxu0 0.0
    %2148 = vmatpush1.msra.mxu0 %v160
    %2149 = vmatprep.subr.mxu0 0.0
    %2150 = vmatpush1.msra.mxu0 %v159
    %2151 = vmatprep.subr.mxu0 0.0
    %2152 = vmatpush1.msra.mxu0 %v158
    %2153 = vmatprep.subr.mxu0 0.0
    %2154 = vmatpush1.msra.mxu0 %v157
    %2155 = vmatprep.subr.mxu0 0.0
    %2156 = vmatpush1.msra.mxu0 %v156
    %2157 = vmatprep.subr.mxu0 0.0
    %2158 = vmatpush1.msra.mxu0 %v155
    %2159 = vmatprep.subr.mxu0 0.0
    %2160 = vmatpush1.msra.mxu0 %v154
    %2161 = vmatprep.subr.mxu0 0.0
    %2162 = vmatpush1.msra.mxu0 %v153
    %2163 = vmatprep.subr.mxu0 0.0
    %2164 = vmatpush1.msra.mxu0 %v152
    %2165 = vmatprep.subr.mxu0 0.0
    %2166 = vmatpush1.msra.mxu0 %v151
    %2167 = vmatprep.subr.mxu0 0.0
    %2168 = vmatpush1.msra.mxu0 %v150
    %2169 = vmatprep.subr.mxu0 0.0
    %2170 = vmatpush1.msra.mxu0 %v149
    %2171 = vmatprep.subr.mxu0 0.0
    %2172 = vmatpush1.msra.mxu0 %v148
    %2173 = vmatprep.subr.mxu0 0.0
    %2174 = vmatpush1.msra.mxu0 %v147
    %2175 = vmatprep.subr.mxu0 0.0
    %2176 = vmatpush1.msra.mxu0 %v146
    %2177 = vmatprep.subr.mxu0 0.0
    %2178 = vmatpush1.msra.mxu0 %v145
    %2179 = vmatprep.subr.mxu0 0.0
    %2180 = vmatpush2.msra.mxu0 0.0
    %2181 = vmatprep.subr.mxu0 0.0
    %2182 = vmatpush2.msra.mxu0 0.0
    %2183 = vmatprep.subr.mxu0 0.0
    %2184 = vmatpush2.msra.mxu0 0.0
    %2185 = vmatprep.subr.mxu0 0.0
    %2186 = vmatpush2.msra.mxu0 0.0
    %2187 = vmatprep.subr.mxu0 0.0
    %2188 = vmatpush2.msra.mxu0 0.0
    %2189 = vmatprep.subr.mxu0 0.0
    %2190 = vmatpush2.msra.mxu0 0.0
    %2191 = vmatprep.subr.mxu0 0.0
    %2192 = vmatpush2.msra.mxu0 0.0
    %2193 = vmatprep.subr.mxu0 0.0
    %2194 = vmatpush2.msra.mxu0 0.0
    %2195 = vmatprep.subr.mxu0 0.0
    %2196 = vmatpush2.msra.mxu0 0.0
    %2197 = vmatprep.subr.mxu0 0.0
    %2198 = vmatpush2.msra.mxu0 0.0
    %2199 = vmatprep.subr.mxu0 0.0
    %2200 = vmatpush2.msra.mxu0 0.0
    %2201 = vmatprep.subr.mxu0 0.0
    %2202 = vmatpush2.msra.mxu0 0.0
    %2203 = vmatprep.subr.mxu0 0.0
    %2204 = vmatpush2.msra.mxu0 0.0
    %2205 = vmatprep.subr.mxu0 0.0
    %2206 = vmatpush2.msra.mxu0 0.0
    %2207 = vmatprep.subr.mxu0 0.0
    %2208 = vmatpush2.msra.mxu0 0.0
    %2209 = vmatprep.subr.mxu0 0.0
    %2210 = vmatpush2.msra.mxu0 0.0
    %2211 = vmatprep.mubr.f32.mxu0 0.0
    %2212 = vmatmul.mubr.f32.gmra.mxu0 %v2146
    %v2213 = vpop.f32.mrf.mxu0
    %v2214 = vadd.f32 %v189, %v2213
    %v2215 = vpop.f32.mrf.mxu0
    %2216 = vdwg.mxu0
    %v2217 = vxor.u32 %v2214, 2147483648
    %v2218 = vmul.f32 %v2217, 1.442695
    %v2219 = vpow.pop %v2218
    %v2220 = vadd.f32 %v2219, 1.0
    %v2221 = vrcp.pop %v2220
    %v2222 = vmul.f32 1.0, %v2221
    %v2223 = vmul.f32 %v2214, %v2222
    %2224 = vmatprep.subr.mxu0 0.0
    %2225 = vmatpush1.msra.mxu0 %v176
    %2226 = vmatprep.subr.mxu0 0.0
    %2227 = vmatpush1.msra.mxu0 %v175
    %2228 = vmatprep.subr.mxu0 0.0
    %2229 = vmatpush1.msra.mxu0 %v174
    %2230 = vmatprep.subr.mxu0 0.0
    %2231 = vmatpush1.msra.mxu0 %v173
    %2232 = vmatprep.subr.mxu0 0.0
    %2233 = vmatpush1.msra.mxu0 %v172
    %2234 = vmatprep.subr.mxu0 0.0
    %2235 = vmatpush1.msra.mxu0 %v171
    %2236 = vmatprep.subr.mxu0 0.0
    %2237 = vmatpush1.msra.mxu0 %v170
    %2238 = vmatprep.subr.mxu0 0.0
    %2239 = vmatpush1.msra.mxu0 %v169
    %2240 = vmatprep.subr.mxu0 0.0
    %2241 = vmatpush1.msra.mxu0 %v168
    %2242 = vmatprep.subr.mxu0 0.0
    %2243 = vmatpush1.msra.mxu0 %v167
    %2244 = vmatprep.subr.mxu0 0.0
    %2245 = vmatpush1.msra.mxu0 %v166
    %2246 = vmatprep.subr.mxu0 0.0
    %2247 = vmatpush1.msra.mxu0 %v165
    %2248 = vmatprep.subr.mxu0 0.0
    %2249 = vmatpush1.msra.mxu0 %v164
    %2250 = vmatprep.subr.mxu0 0.0
    %2251 = vmatpush1.msra.mxu0 %v163
    %2252 = vmatprep.subr.mxu0 0.0
    %2253 = vmatpush1.msra.mxu0 %v162
    %2254 = vmatprep.subr.mxu0 0.0
    %2255 = vmatpush1.msra.mxu0 %v161
    %2256 = vmatprep.subr.mxu0 0.0
    %2257 = vmatpush2.msra.mxu0 0.0
    %2258 = vmatprep.subr.mxu0 0.0
    %2259 = vmatpush2.msra.mxu0 0.0
    %2260 = vmatprep.subr.mxu0 0.0
    %2261 = vmatpush2.msra.mxu0 0.0
    %2262 = vmatprep.subr.mxu0 0.0
    %2263 = vmatpush2.msra.mxu0 0.0
    %2264 = vmatprep.subr.mxu0 0.0
    %2265 = vmatpush2.msra.mxu0 0.0
    %2266 = vmatprep.subr.mxu0 0.0
    %2267 = vmatpush2.msra.mxu0 0.0
    %2268 = vmatprep.subr.mxu0 0.0
    %2269 = vmatpush2.msra.mxu0 0.0
    %2270 = vmatprep.subr.mxu0 0.0
    %2271 = vmatpush2.msra.mxu0 0.0
    %2272 = vmatprep.subr.mxu0 0.0
    %2273 = vmatpush2.msra.mxu0 0.0
    %2274 = vmatprep.subr.mxu0 0.0
    %2275 = vmatpush2.msra.mxu0 0.0
    %2276 = vmatprep.subr.mxu0 0.0
    %2277 = vmatpush2.msra.mxu0 0.0
    %2278 = vmatprep.subr.mxu0 0.0
    %2279 = vmatpush2.msra.mxu0 0.0
    %2280 = vmatprep.subr.mxu0 0.0
    %2281 = vmatpush2.msra.mxu0 0.0
    %2282 = vmatprep.subr.mxu0 0.0
    %2283 = vmatpush2.msra.mxu0 0.0
    %2284 = vmatprep.subr.mxu0 0.0
    %2285 = vmatpush2.msra.mxu0 0.0
    %2286 = vmatprep.subr.mxu0 0.0
    %2287 = vmatpush2.msra.mxu0 0.0
    %2288 = vmatprep.mubr.f32.mxu0 0.0
    %2289 = vmatmul.mubr.f32.gmra.mxu0 %v2223
    %v2290 = vpop.f32.mrf.mxu0
    %v2291 = vadd.f32 %v196, %v2290
    %v2292 = vpop.f32.mrf.mxu0
    %2293 = vdwg.mxu0
    %v2294 = vadd.f32 %v1994, %v2291
    %s2295 = scalar_lea.vmem [#allocation13], 48
    %2296 = vst [vmem:[%s2295] sm:$0xff] %v2294
    %s2297 = scalar_lea.vmem [#allocation5], 56
    %v2298 = vld [vmem:[%s2297] sm:$0xff]
    %2299 = vmatprep.subr.mxu0 0.0
    %2300 = vmatpush1.msra.mxu0 %v144
    %2301 = vmatprep.subr.mxu0 0.0
    %2302 = vmatpush1.msra.mxu0 %v143
    %2303 = vmatprep.subr.mxu0 0.0
    %2304 = vmatpush1.msra.mxu0 %v142
    %2305 = vmatprep.subr.mxu0 0.0
    %2306 = vmatpush1.msra.mxu0 %v141
    %2307 = vmatprep.subr.mxu0 0.0
    %2308 = vmatpush1.msra.mxu0 %v140
    %2309 = vmatprep.subr.mxu0 0.0
    %2310 = vmatpush1.msra.mxu0 %v139
    %2311 = vmatprep.subr.mxu0 0.0
    %2312 = vmatpush1.msra.mxu0 %v138
    %2313 = vmatprep.subr.mxu0 0.0
    %2314 = vmatpush1.msra.mxu0 %v137
    %2315 = vmatprep.subr.mxu0 0.0
    %2316 = vmatpush1.msra.mxu0 %v136
    %2317 = vmatprep.subr.mxu0 0.0
    %2318 = vmatpush1.msra.mxu0 %v135
    %2319 = vmatprep.subr.mxu0 0.0
    %2320 = vmatpush1.msra.mxu0 %v134
    %2321 = vmatprep.subr.mxu0 0.0
    %2322 = vmatpush1.msra.mxu0 %v133
    %2323 = vmatprep.subr.mxu0 0.0
    %2324 = vmatpush1.msra.mxu0 %v132
    %2325 = vmatprep.subr.mxu0 0.0
    %2326 = vmatpush1.msra.mxu0 %v131
    %2327 = vmatprep.subr.mxu0 0.0
    %2328 = vmatpush1.msra.mxu0 %v130
    %2329 = vmatprep.subr.mxu0 0.0
    %2330 = vmatpush1.msra.mxu0 %v129
    %2331 = vmatprep.subr.mxu0 0.0
    %2332 = vmatpush2.msra.mxu0 0.0
    %2333 = vmatprep.subr.mxu0 0.0
    %2334 = vmatpush2.msra.mxu0 0.0
    %2335 = vmatprep.subr.mxu0 0.0
    %2336 = vmatpush2.msra.mxu0 0.0
    %2337 = vmatprep.subr.mxu0 0.0
    %2338 = vmatpush2.msra.mxu0 0.0
    %2339 = vmatprep.subr.mxu0 0.0
    %2340 = vmatpush2.msra.mxu0 0.0
    %2341 = vmatprep.subr.mxu0 0.0
    %2342 = vmatpush2.msra.mxu0 0.0
    %2343 = vmatprep.subr.mxu0 0.0
    %2344 = vmatpush2.msra.mxu0 0.0
    %2345 = vmatprep.subr.mxu0 0.0
    %2346 = vmatpush2.msra.mxu0 0.0
    %2347 = vmatprep.subr.mxu0 0.0
    %2348 = vmatpush2.msra.mxu0 0.0
    %2349 = vmatprep.subr.mxu0 0.0
    %2350 = vmatpush2.msra.mxu0 0.0
    %2351 = vmatprep.subr.mxu0 0.0
    %2352 = vmatpush2.msra.mxu0 0.0
    %2353 = vmatprep.subr.mxu0 0.0
    %2354 = vmatpush2.msra.mxu0 0.0
    %2355 = vmatprep.subr.mxu0 0.0
    %2356 = vmatpush2.msra.mxu0 0.0
    %2357 = vmatprep.subr.mxu0 0.0
    %2358 = vmatpush2.msra.mxu0 0.0
    %2359 = vmatprep.subr.mxu0 0.0
    %2360 = vmatpush2.msra.mxu0 0.0
    %2361 = vmatprep.subr.mxu0 0.0
    %2362 = vmatpush2.msra.mxu0 0.0
    %2363 = vmatprep.mubr.f32.mxu0 0.0
    %2364 = vmatmul.mubr.f32.gmra.mxu0 %v2298
    %v2365 = vpop.f32.mrf.mxu0
    %v2366 = vadd.f32 0.0, %v2365
    %v2367 = vpop.f32.mrf.mxu0
    %2368 = vdwg.mxu0
    %2369 = vmatprep.subr.mxu0 0.0
    %2370 = vmatpush1.msra.mxu0 %v128
    %2371 = vmatprep.subr.mxu0 0.0
    %2372 = vmatpush1.msra.mxu0 %v127
    %2373 = vmatprep.subr.mxu0 0.0
    %2374 = vmatpush1.msra.mxu0 %v126
    %2375 = vmatprep.subr.mxu0 0.0
    %2376 = vmatpush1.msra.mxu0 %v125
    %2377 = vmatprep.subr.mxu0 0.0
    %2378 = vmatpush1.msra.mxu0 %v124
    %2379 = vmatprep.subr.mxu0 0.0
    %2380 = vmatpush1.msra.mxu0 %v123
    %2381 = vmatprep.subr.mxu0 0.0
    %2382 = vmatpush1.msra.mxu0 %v122
    %2383 = vmatprep.subr.mxu0 0.0
    %2384 = vmatpush1.msra.mxu0 %v121
    %2385 = vmatprep.subr.mxu0 0.0
    %2386 = vmatpush1.msra.mxu0 %v120
    %2387 = vmatprep.subr.mxu0 0.0
    %2388 = vmatpush1.msra.mxu0 %v119
    %2389 = vmatprep.subr.mxu0 0.0
    %2390 = vmatpush1.msra.mxu0 %v118
    %2391 = vmatprep.subr.mxu0 0.0
    %2392 = vmatpush1.msra.mxu0 %v117
    %2393 = vmatprep.subr.mxu0 0.0
    %2394 = vmatpush1.msra.mxu0 %v116
    %2395 = vmatprep.subr.mxu0 0.0
    %2396 = vmatpush1.msra.mxu0 %v115
    %2397 = vmatprep.subr.mxu0 0.0
    %2398 = vmatpush1.msra.mxu0 %v114
    %2399 = vmatprep.subr.mxu0 0.0
    %2400 = vmatpush1.msra.mxu0 %v113
    %2401 = vmatprep.subr.mxu0 0.0
    %2402 = vmatpush2.msra.mxu0 0.0
    %2403 = vmatprep.subr.mxu0 0.0
    %2404 = vmatpush2.msra.mxu0 0.0
    %2405 = vmatprep.subr.mxu0 0.0
    %2406 = vmatpush2.msra.mxu0 0.0
    %2407 = vmatprep.subr.mxu0 0.0
    %2408 = vmatpush2.msra.mxu0 0.0
    %2409 = vmatprep.subr.mxu0 0.0
    %2410 = vmatpush2.msra.mxu0 0.0
    %2411 = vmatprep.subr.mxu0 0.0
    %2412 = vmatpush2.msra.mxu0 0.0
    %2413 = vmatprep.subr.mxu0 0.0
    %2414 = vmatpush2.msra.mxu0 0.0
    %2415 = vmatprep.subr.mxu0 0.0
    %2416 = vmatpush2.msra.mxu0 0.0
    %2417 = vmatprep.subr.mxu0 0.0
    %2418 = vmatpush2.msra.mxu0 0.0
    %2419 = vmatprep.subr.mxu0 0.0
    %2420 = vmatpush2.msra.mxu0 0.0
    %2421 = vmatprep.subr.mxu0 0.0
    %2422 = vmatpush2.msra.mxu0 0.0
    %2423 = vmatprep.subr.mxu0 0.0
    %2424 = vmatpush2.msra.mxu0 0.0
    %2425 = vmatprep.subr.mxu0 0.0
    %2426 = vmatpush2.msra.mxu0 0.0
    %2427 = vmatprep.subr.mxu0 0.0
    %2428 = vmatpush2.msra.mxu0 0.0
    %2429 = vmatprep.subr.mxu0 0.0
    %2430 = vmatpush2.msra.mxu0 0.0
    %2431 = vmatprep.subr.mxu0 0.0
    %2432 = vmatpush2.msra.mxu0 0.0
    %2433 = vmatprep.mubr.f32.mxu0 0.0
    %2434 = vmatmul.mubr.f32.gmra.mxu0 %v2294
    %v2435 = vpop.f32.mrf.mxu0
    %v2436 = vadd.f32 %v2366, %v2435
    %v2437 = vpop.f32.mrf.mxu0
    %2438 = vdwg.mxu0
    %v2439 = vadd.f32 %v2436, %v182
    %v2440 = vxor.u32 %v2439, 2147483648
    %v2441 = vmul.f32 %v2440, 1.442695
    %v2442 = vpow.pop %v2441
    %v2443 = vadd.f32 %v2442, 1.0
    %v2444 = vrcp.pop %v2443
    %v2445 = vmul.f32 1.0, %v2444
    %v2446 = vmul.f32 %v2439, %v2445
    %2447 = vmatprep.subr.mxu0 0.0
    %2448 = vmatpush1.msra.mxu0 %v160
    %2449 = vmatprep.subr.mxu0 0.0
    %2450 = vmatpush1.msra.mxu0 %v159
    %2451 = vmatprep.subr.mxu0 0.0
    %2452 = vmatpush1.msra.mxu0 %v158
    %2453 = vmatprep.subr.mxu0 0.0
    %2454 = vmatpush1.msra.mxu0 %v157
    %2455 = vmatprep.subr.mxu0 0.0
    %2456 = vmatpush1.msra.mxu0 %v156
    %2457 = vmatprep.subr.mxu0 0.0
    %2458 = vmatpush1.msra.mxu0 %v155
    %2459 = vmatprep.subr.mxu0 0.0
    %2460 = vmatpush1.msra.mxu0 %v154
    %2461 = vmatprep.subr.mxu0 0.0
    %2462 = vmatpush1.msra.mxu0 %v153
    %2463 = vmatprep.subr.mxu0 0.0
    %2464 = vmatpush1.msra.mxu0 %v152
    %2465 = vmatprep.subr.mxu0 0.0
    %2466 = vmatpush1.msra.mxu0 %v151
    %2467 = vmatprep.subr.mxu0 0.0
    %2468 = vmatpush1.msra.mxu0 %v150
    %2469 = vmatprep.subr.mxu0 0.0
    %2470 = vmatpush1.msra.mxu0 %v149
    %2471 = vmatprep.subr.mxu0 0.0
    %2472 = vmatpush1.msra.mxu0 %v148
    %2473 = vmatprep.subr.mxu0 0.0
    %2474 = vmatpush1.msra.mxu0 %v147
    %2475 = vmatprep.subr.mxu0 0.0
    %2476 = vmatpush1.msra.mxu0 %v146
    %2477 = vmatprep.subr.mxu0 0.0
    %2478 = vmatpush1.msra.mxu0 %v145
    %2479 = vmatprep.subr.mxu0 0.0
    %2480 = vmatpush2.msra.mxu0 0.0
    %2481 = vmatprep.subr.mxu0 0.0
    %2482 = vmatpush2.msra.mxu0 0.0
    %2483 = vmatprep.subr.mxu0 0.0
    %2484 = vmatpush2.msra.mxu0 0.0
    %2485 = vmatprep.subr.mxu0 0.0
    %2486 = vmatpush2.msra.mxu0 0.0
    %2487 = vmatprep.subr.mxu0 0.0
    %2488 = vmatpush2.msra.mxu0 0.0
    %2489 = vmatprep.subr.mxu0 0.0
    %2490 = vmatpush2.msra.mxu0 0.0
    %2491 = vmatprep.subr.mxu0 0.0
    %2492 = vmatpush2.msra.mxu0 0.0
    %2493 = vmatprep.subr.mxu0 0.0
    %2494 = vmatpush2.msra.mxu0 0.0
    %2495 = vmatprep.subr.mxu0 0.0
    %2496 = vmatpush2.msra.mxu0 0.0
    %2497 = vmatprep.subr.mxu0 0.0
    %2498 = vmatpush2.msra.mxu0 0.0
    %2499 = vmatprep.subr.mxu0 0.0
    %2500 = vmatpush2.msra.mxu0 0.0
    %2501 = vmatprep.subr.mxu0 0.0
    %2502 = vmatpush2.msra.mxu0 0.0
    %2503 = vmatprep.subr.mxu0 0.0
    %2504 = vmatpush2.msra.mxu0 0.0
    %2505 = vmatprep.subr.mxu0 0.0
    %2506 = vmatpush2.msra.mxu0 0.0
    %2507 = vmatprep.subr.mxu0 0.0
    %2508 = vmatpush2.msra.mxu0 0.0
    %2509 = vmatprep.subr.mxu0 0.0
    %2510 = vmatpush2.msra.mxu0 0.0
    %2511 = vmatprep.mubr.f32.mxu0 0.0
    %2512 = vmatmul.mubr.f32.gmra.mxu0 %v2446
    %v2513 = vpop.f32.mrf.mxu0
    %v2514 = vadd.f32 %v189, %v2513
    %v2515 = vpop.f32.mrf.mxu0
    %2516 = vdwg.mxu0
    %v2517 = vxor.u32 %v2514, 2147483648
    %v2518 = vmul.f32 %v2517, 1.442695
    %v2519 = vpow.pop %v2518
    %v2520 = vadd.f32 %v2519, 1.0
    %v2521 = vrcp.pop %v2520
    %v2522 = vmul.f32 1.0, %v2521
    %v2523 = vmul.f32 %v2514, %v2522
    %2524 = vmatprep.subr.mxu0 0.0
    %2525 = vmatpush1.msra.mxu0 %v176
    %2526 = vmatprep.subr.mxu0 0.0
    %2527 = vmatpush1.msra.mxu0 %v175
    %2528 = vmatprep.subr.mxu0 0.0
    %2529 = vmatpush1.msra.mxu0 %v174
    %2530 = vmatprep.subr.mxu0 0.0
    %2531 = vmatpush1.msra.mxu0 %v173
    %2532 = vmatprep.subr.mxu0 0.0
    %2533 = vmatpush1.msra.mxu0 %v172
    %2534 = vmatprep.subr.mxu0 0.0
    %2535 = vmatpush1.msra.mxu0 %v171
    %2536 = vmatprep.subr.mxu0 0.0
    %2537 = vmatpush1.msra.mxu0 %v170
    %2538 = vmatprep.subr.mxu0 0.0
    %2539 = vmatpush1.msra.mxu0 %v169
    %2540 = vmatprep.subr.mxu0 0.0
    %2541 = vmatpush1.msra.mxu0 %v168
    %2542 = vmatprep.subr.mxu0 0.0
    %2543 = vmatpush1.msra.mxu0 %v167
    %2544 = vmatprep.subr.mxu0 0.0
    %2545 = vmatpush1.msra.mxu0 %v166
    %2546 = vmatprep.subr.mxu0 0.0
    %2547 = vmatpush1.msra.mxu0 %v165
    %2548 = vmatprep.subr.mxu0 0.0
    %2549 = vmatpush1.msra.mxu0 %v164
    %2550 = vmatprep.subr.mxu0 0.0
    %2551 = vmatpush1.msra.mxu0 %v163
    %2552 = vmatprep.subr.mxu0 0.0
    %2553 = vmatpush1.msra.mxu0 %v162
    %2554 = vmatprep.subr.mxu0 0.0
    %2555 = vmatpush1.msra.mxu0 %v161
    %2556 = vmatprep.subr.mxu0 0.0
    %2557 = vmatpush2.msra.mxu0 0.0
    %2558 = vmatprep.subr.mxu0 0.0
    %2559 = vmatpush2.msra.mxu0 0.0
    %2560 = vmatprep.subr.mxu0 0.0
    %2561 = vmatpush2.msra.mxu0 0.0
    %2562 = vmatprep.subr.mxu0 0.0
    %2563 = vmatpush2.msra.mxu0 0.0
    %2564 = vmatprep.subr.mxu0 0.0
    %2565 = vmatpush2.msra.mxu0 0.0
    %2566 = vmatprep.subr.mxu0 0.0
    %2567 = vmatpush2.msra.mxu0 0.0
    %2568 = vmatprep.subr.mxu0 0.0
    %2569 = vmatpush2.msra.mxu0 0.0
    %2570 = vmatprep.subr.mxu0 0.0
    %2571 = vmatpush2.msra.mxu0 0.0
    %2572 = vmatprep.subr.mxu0 0.0
    %2573 = vmatpush2.msra.mxu0 0.0
    %2574 = vmatprep.subr.mxu0 0.0
    %2575 = vmatpush2.msra.mxu0 0.0
    %2576 = vmatprep.subr.mxu0 0.0
    %2577 = vmatpush2.msra.mxu0 0.0
    %2578 = vmatprep.subr.mxu0 0.0
    %2579 = vmatpush2.msra.mxu0 0.0
    %2580 = vmatprep.subr.mxu0 0.0
    %2581 = vmatpush2.msra.mxu0 0.0
    %2582 = vmatprep.subr.mxu0 0.0
    %2583 = vmatpush2.msra.mxu0 0.0
    %2584 = vmatprep.subr.mxu0 0.0
    %2585 = vmatpush2.msra.mxu0 0.0
    %2586 = vmatprep.subr.mxu0 0.0
    %2587 = vmatpush2.msra.mxu0 0.0
    %2588 = vmatprep.mubr.f32.mxu0 0.0
    %2589 = vmatmul.mubr.f32.gmra.mxu0 %v2523
    %v2590 = vpop.f32.mrf.mxu0
    %v2591 = vadd.f32 %v196, %v2590
    %v2592 = vpop.f32.mrf.mxu0
    %2593 = vdwg.mxu0
    %v2594 = vadd.f32 %v2294, %v2591
    %s2595 = scalar_lea.vmem [#allocation13], 56
    %2596 = vst [vmem:[%s2595] sm:$0xff] %v2594
    // Predicated region
    $region62: #{tpu_custom_call.1} parent=1 // pred_check
      _
    $region63: #{tpu_custom_call.1} parent=1 // pred_check_branch
      %2598 = sbr.rel (0) target = $region65
    $region64: #{tpu_custom_call.1} parent=1 // pred_region
      %s2600 = ssub.s32 1024, 1024
      %2601 = vsyncadd [#allocation4], %s2600
      %s2602 = sshll.u32 [#allocation13], 4
      %s2603 = int_to_ptr.vmem [resolvable:$true] %s2602
      %2608 = dma.vmem_to_hbm [thread:$0]  %s2603, 1024, %s9, [#allocation4], 128, 128, 8
    $region65: #{tpu_custom_call.1} parent=1 // pred_fallthru
      _
    // Predicated region
    $region66: #{tpu_custom_call.1} parent=1 // pred_check
      _
    $region67: #{tpu_custom_call.1} parent=1 // pred_check_branch
      %2610 = sbr.rel (0) target = $region69
    $region68: #{tpu_custom_call.1} parent=1 // pred_region
      %2611 = dma.done [#allocation4], 1024
    $region69: #{tpu_custom_call.1} parent=1 // pred_fallthru
      _
    %2612 = vsyncpa [#allocation3], 1
    %2613 = vsyncpa [#allocation6], 1
    %2614 = vsyncpa [#allocation9], 1
    %2615 = vsyncpa [#allocation12], 1
    %2616 = vsyncpa [#allocation4], 1

</llo_original>
